<compile_context>
chip_gen: v6e
topology: v6e:2x2x1
jax: 0.10.0
libtpu: 0.0.40
codegen_flags: <defaults>
</compile_context>

<pallas_src>
import jax
import jax.numpy as jnp
from jax.experimental import pallas as pl
from jax.experimental.pallas import tpu as pltpu


# ----------------------------- in-kernel math ------------------------------

def _erf(x):
    # Abramowitz & Stegun 7.1.26 polynomial, |err| < 1.5e-7 (f32-exact).
    a1, a2, a3, a4, a5 = 0.254829592, -0.284496736, 1.421413741, -1.453152027, 1.061405429
    p = 0.3275911
    s = jnp.where(x < 0.0, -1.0, 1.0)
    ax = jnp.abs(x)
    t = 1.0 / (1.0 + p * ax)
    poly = ((((a5 * t + a4) * t + a3) * t + a2) * t + a1) * t
    return s * (1.0 - poly * jnp.exp(-ax * ax))


def _gelu(x):  # exact (erf-based) GELU, matching torch.nn.GELU()
    return 0.5 * x * (1.0 + _erf(x * 0.7071067811865476))


def _layernorm(v, g, b, eps=1e-5):
    mu = jnp.mean(v, axis=-1, keepdims=True)
    c = v - mu
    var = jnp.mean(c * c, axis=-1, keepdims=True)
    return c * jax.lax.rsqrt(var + eps) * g + b


# --------------------------- kernel 1: decoder ------------------------------

def _make_decoder_kernel(n_layers, n_heads, n_cls, n_patches):
    def kernel(x_ref, cls_ref, pdw_ref, pdb_ref,
               ln1g_ref, ln1b_ref, wqkv_ref, bqkv_ref, wpo_ref, bpo_ref,
               ln2g_ref, ln2b_ref, w1_ref, b1_ref, w2_ref, b2_ref,
               dng_ref, dnb_ref, ppat_ref, pcls_ref, mng_ref, mnb_ref,
               out_ref, xcat_ref):
        l = pl.program_id(1)
        d_model = pdw_ref.shape[1]
        hd = d_model // n_heads
        scale = hd ** -0.5
        cdt = pdw_ref.dtype            # matmul operand dtype (bf16), f32 accumulate

        # ---- first layer step of each batch item: proj_dec + cls-token concat ----
        @pl.when(l == 0)
        def _():
            xp = jnp.dot(x_ref[0].astype(cdt), pdw_ref[...],
                         preferred_element_type=jnp.float32) + pdb_ref[...]
            xcat_ref[pl.ds(0, n_patches), :] = xp
            xcat_ref[pl.ds(n_patches, n_cls), :] = cls_ref[...]

        x = xcat_ref[...]                         # (n_tok, d_model) f32 carry

        # ---- multi-head self-attention (pre-norm), heads kept as values ----
        xn = _layernorm(x, ln1g_ref[0], ln1b_ref[0])
        qkv = jnp.dot(xn.astype(cdt), wqkv_ref[0],
                      preferred_element_type=jnp.float32) + bqkv_ref[0]
        wpo = wpo_ref[0]
        y = jnp.zeros_like(x)
        for h in range(n_heads):                  # n_heads is small (2-3)
            q = qkv[:, h * hd:(h + 1) * hd]
            k = qkv[:, d_model + h * hd:d_model + (h + 1) * hd]
            v = qkv[:, 2 * d_model + h * hd:2 * d_model + (h + 1) * hd]
            s = jax.lax.dot_general(q.astype(cdt), k.astype(cdt),
                                    (((1,), (1,)), ((), ())),
                                    preferred_element_type=jnp.float32) * scale
            s = s - jnp.max(s, axis=-1, keepdims=True)
            p = jnp.exp(s)
            p = p * pl.reciprocal(jnp.sum(p, axis=-1, keepdims=True), approx=True)
            o = jnp.dot(p.astype(cdt), v.astype(cdt),
                        preferred_element_type=jnp.float32)         # (n_tok, hd)
            # concat(heads) @ W_o  ==  sum_h head_h @ W_o[h*hd:(h+1)*hd, :]
            y = y + jnp.dot(o.astype(cdt), wpo[h * hd:(h + 1) * hd, :],
                            preferred_element_type=jnp.float32)
        x = x + y + bpo_ref[0]

        # ---- MLP (pre-norm) ----
        xn2 = _layernorm(x, ln2g_ref[0], ln2b_ref[0])
        h1 = _gelu(jnp.dot(xn2.astype(cdt), w1_ref[0],
                           preferred_element_type=jnp.float32) + b1_ref[0])
        x = x + jnp.dot(h1.astype(cdt), w2_ref[0],
                        preferred_element_type=jnp.float32) + b2_ref[0]
        xcat_ref[...] = x                         # carry to the next layer step

        # ---- last layer step: decoder norm, projections, similarity, mask norm ----
        @pl.when(l == n_layers - 1)
        def _():
            xf = _layernorm(x, dng_ref[...], dnb_ref[...])
            patches = jnp.dot(xf[:n_patches, :].astype(cdt), ppat_ref[...],
                              preferred_element_type=jnp.float32)
            cls_feat = jnp.dot(xf[n_patches:, :].astype(cdt), pcls_ref[...],
                               preferred_element_type=jnp.float32)
            patches = patches * jax.lax.rsqrt(
                jnp.sum(patches * patches, axis=-1, keepdims=True) + 1e-12)
            cls_feat = cls_feat * jax.lax.rsqrt(
                jnp.sum(cls_feat * cls_feat, axis=-1, keepdims=True) + 1e-12)
            # masks^T: (n_cls, n_patches) -> lane-dense output (patches on lanes)
            masks_t = jax.lax.dot_general(cls_feat, patches,
                                          (((1,), (1,)), ((), ())),
                                          preferred_element_type=jnp.float32)
            # mask_norm = LayerNorm(n_cls): normalize over the class axis (axis 0)
            mu = jnp.mean(masks_t, axis=0, keepdims=True)
            c = masks_t - mu
            var = jnp.mean(c * c, axis=0, keepdims=True)
            out_ref[0] = c * jax.lax.rsqrt(var + 1e-5) * mng_ref[...] + mnb_ref[...]

    return kernel


def run_decoder(x, p, *, n_layers, n_heads, n_cls, use_bf16=True):
    B, n_patches, d_encoder = x.shape
    d_model = p["pdw"].shape[1]
    d_ff = p["w1"].shape[2]
    n_tok = n_patches + n_cls
    wdt = jnp.bfloat16 if use_bf16 else jnp.float32

    # MXU operand weights in bf16 (halves resident weight VMEM); biases / LN
    # params / cls token stay f32, accumulation is always f32.
    w = dict(p)
    for name in ("pdw", "wqkv", "wpo", "w1", "w2", "ppat", "pcls"):
        w[name] = p[name].astype(wdt)

    kernel = _make_decoder_kernel(n_layers, n_heads, n_cls, n_patches)

    def const2(arr):     # 2-D parameter, identical block for every grid step
        return pl.BlockSpec(arr.shape, lambda b, l: (0, 0))

    def per_layer(arr):  # (L, ...) stacked parameter, streamed one layer at a time
        return pl.BlockSpec((1,) + tuple(arr.shape[1:]), lambda b, l: (l, 0, 0))

    in_specs = [
        pl.BlockSpec((1, n_patches, d_encoder), lambda b, l: (b, 0, 0)),
        const2(w["cls"]), const2(w["pdw"]), const2(w["pdb"]),
        per_layer(w["ln1g"]), per_layer(w["ln1b"]),
        per_layer(w["wqkv"]), per_layer(w["bqkv"]),
        per_layer(w["wpo"]), per_layer(w["bpo"]),
        per_layer(w["ln2g"]), per_layer(w["ln2b"]),
        per_layer(w["w1"]), per_layer(w["b1"]),
        per_layer(w["w2"]), per_layer(w["b2"]),
        const2(w["dng"]), const2(w["dnb"]),
        const2(w["ppat"]), const2(w["pcls"]),
        const2(w["mng"]), const2(w["mnb"]),
    ]

    # Explicit scoped-VMEM budget: double-buffered streamed layer weights +
    # resident constants + activation temporaries + margin; capped < 64 MiB (v7x).
    itm = 2 if use_bf16 else 4
    per_layer_bytes = (4 * d_model * d_model + 2 * d_model * d_ff) * itm \
                      + (8 * d_model + d_ff) * 4
    const_bytes = (d_encoder * d_model + 2 * d_model * d_model) * itm \
                  + (n_cls * d_model + 4 * d_model + 2 * n_cls) * 4
    io_bytes = (n_patches * d_encoder + n_cls * n_patches) * 4
    act_bytes = (n_tok * (4 * d_model + d_ff) + 2 * n_tok * n_tok) * 4
    need = 2 * (per_layer_bytes + const_bytes + io_bytes) \
           + n_tok * d_model * 4 + act_bytes
    vmem_limit = int(min(max(need + (4 << 20), 16 << 20), 48 << 20))

    return pl.pallas_call(
        kernel,
        out_shape=jax.ShapeDtypeStruct((B, n_cls, n_patches), jnp.float32),
        grid_spec=pltpu.PrefetchScalarGridSpec(
            num_scalar_prefetch=0,
            grid=(B, n_layers),                   # batch (parallel) x layer (stream)
            in_specs=in_specs,
            out_specs=pl.BlockSpec((1, n_cls, n_patches), lambda b, l: (b, 0, 0)),
            scratch_shapes=[pltpu.VMEM((n_tok, d_model), jnp.float32)]),
        compiler_params=pltpu.CompilerParams(
            dimension_semantics=("parallel", "arbitrary"),
            vmem_limit_bytes=vmem_limit),
    )(x, w["cls"], w["pdw"], w["pdb"],
      w["ln1g"], w["ln1b"], w["wqkv"], w["bqkv"], w["wpo"], w["bpo"],
      w["ln2g"], w["ln2b"], w["w1"], w["b1"], w["w2"], w["b2"],
      w["dng"], w["dnb"], w["ppat"], w["pcls"], w["mng"], w["mnb"])


# ------------------- kernel 2: bilinear upsample + softmax ------------------

def _make_upsample_kernel(n_cls):
    def kernel(m_ref, ah_ref, awt_ref, out_ref):
        H = ah_ref.shape[0]
        W = awt_ref.shape[1]
        # height interpolation: per-class tiny (H, gs) @ (gs, gs) matmuls,
        # concatenated into a single (n_cls*H, gs) slab
        t = jnp.concatenate(
            [jnp.dot(ah_ref[...], m_ref[0, k], preferred_element_type=jnp.float32)
             for k in range(n_cls)], axis=0)
        # width interpolation for ALL classes in ONE MXU call
        u = jnp.dot(t, awt_ref[...],
                    preferred_element_type=jnp.float32).reshape(n_cls, H, W)
        # class softmax via array reductions (no per-class Python max/add chains)
        mx = jnp.max(u, axis=0, keepdims=True)
        e = jnp.exp(u - mx)
        den = jnp.sum(e, axis=0, keepdims=True)
        out_ref[0] = e * pl.reciprocal(den, approx=True)
    return kernel


def run_upsample_softmax(m, a_h, a_wt, *, n_cls):
    B, K, gs, _ = m.shape
    H = a_h.shape[0]
    W = a_wt.shape[1]
    kernel = _make_upsample_kernel(n_cls)
    need = (2 * (K * gs * gs + H * gs + gs * W + K * H * W) + 3 * K * H * W) * 4
    vmem_limit = int(min(max(need + (4 << 20), 16 << 20), 48 << 20))
    return pl.pallas_call(
        kernel,
        out_shape=jax.ShapeDtypeStruct((B, K, H, W), jnp.float32),
        grid_spec=pltpu.PrefetchScalarGridSpec(
            num_scalar_prefetch=0,
            grid=(B,),
            in_specs=[pl.BlockSpec((1, K, gs, gs), lambda b: (b, 0, 0, 0)),
                      pl.BlockSpec((H, gs), lambda b: (0, 0)),
                      pl.BlockSpec((gs, W), lambda b: (0, 0))],
            out_specs=pl.BlockSpec((1, K, H, W), lambda b: (b, 0, 0, 0))),
        compiler_params=pltpu.CompilerParams(
            dimension_semantics=("parallel",),
            vmem_limit_bytes=vmem_limit),
    )(m, a_h, a_wt)


# ------------------------------- glue / init --------------------------------

def bilinear_matrix(out_size, in_size):
    """Row-interpolation matrix matching F.interpolate(mode='bilinear',
    align_corners=False): out = A @ in (1-D)."""
    scale = in_size / out_size
    dst = jnp.arange(out_size, dtype=jnp.float32)
    src = jnp.maximum((dst + 0.5) * scale - 0.5, 0.0)
    i0 = jnp.clip(jnp.floor(src).astype(jnp.int32), 0, in_size - 1)
    i1 = jnp.minimum(i0 + 1, in_size - 1)
    lam = src - i0.astype(jnp.float32)
    rows = jnp.arange(out_size)
    A = jnp.zeros((out_size, in_size), jnp.float32)
    A = A.at[rows, i0].add(1.0 - lam)
    A = A.at[rows, i1].add(lam)
    return A


def init_params(key, *, n_layers, n_cls, d_encoder, d_model, d_ff):
    keys = iter(jax.random.split(key, 6 * n_layers + 8))
    std = 0.02

    def tn(shape):  # trunc_normal_(std=0.02)
        return std * jax.random.truncated_normal(next(keys), -2.0, 2.0, shape, jnp.float32)

    L, Dm, Dff, De, K = n_layers, d_model, d_ff, d_encoder, n_cls
    p = {}
    p["cls"] = tn((K, Dm))                                   # cls_emb
    p["pdw"] = jnp.transpose(tn((Dm, De)))                   # proj_dec W^T: (De, Dm)
    p["pdb"] = jnp.zeros((1, Dm), jnp.float32)
    p["ln1g"] = jnp.ones((L, 1, Dm), jnp.float32)
    p["ln1b"] = jnp.zeros((L, 1, Dm), jnp.float32)
    p["ln2g"] = jnp.ones((L, 1, Dm), jnp.float32)
    p["ln2b"] = jnp.zeros((L, 1, Dm), jnp.float32)
    p["wqkv"] = jnp.stack([jnp.transpose(tn((3 * Dm, Dm))) for _ in range(L)])
    p["bqkv"] = jnp.zeros((L, 1, 3 * Dm), jnp.float32)
    p["wpo"] = jnp.stack([jnp.transpose(tn((Dm, Dm))) for _ in range(L)])
    p["bpo"] = jnp.zeros((L, 1, Dm), jnp.float32)
    p["w1"] = jnp.stack([jnp.transpose(tn((Dff, Dm))) for _ in range(L)])
    p["b1"] = jnp.zeros((L, 1, Dff), jnp.float32)
    p["w2"] = jnp.stack([jnp.transpose(tn((Dm, Dff))) for _ in range(L)])
    p["b2"] = jnp.zeros((L, 1, Dm), jnp.float32)
    p["dng"] = jnp.ones((1, Dm), jnp.float32)
    p["dnb"] = jnp.zeros((1, Dm), jnp.float32)
    sc = Dm ** -0.5
    p["ppat"] = sc * jax.random.normal(next(keys), (Dm, Dm), jnp.float32)
    p["pcls"] = sc * jax.random.normal(next(keys), (Dm, Dm), jnp.float32)
    p["mng"] = jnp.ones((K, 1), jnp.float32)                 # mask_norm gamma (class axis)
    p["mnb"] = jnp.zeros((K, 1), jnp.float32)                # mask_norm beta
    return p


def transformer_decoder_forward(x, params, *, n_layers, n_heads, n_cls,
                                patch_size, im_size, use_bf16=True):
    H, W = im_size
    GS = H // patch_size
    B = x.shape[0]
    # (B, n_cls, n_patches): lane-dense decoder output; a pure reshape (no
    # transpose) turns it into the (B, n_cls, GS, GS) grid kernel 2 expects.
    masks = run_decoder(x, params, n_layers=n_layers, n_heads=n_heads,
                        n_cls=n_cls, use_bf16=use_bf16)
    m_bnhw = masks.reshape(B, n_cls, GS, GS)
    a_h = bilinear_matrix(H, GS)
    a_wt = jnp.transpose(bilinear_matrix(W, GS))
    return run_upsample_softmax(m_bnhw, a_h, a_wt, n_cls=n_cls)


# ---------------------------------- main ------------------------------------

if __name__ == "__main__":
    # Small config consistent with the module (d_encoder == d_model, seq = GS*GS + n_cls)
    B = 2
    n_cls = 2
    patch_size = 16
    d_encoder = 32
    d_model = 32
    n_heads = 2
    d_ff = 64
    n_layers = 2
    im_size = (64, 64)
    H, W = im_size
    GS = H // patch_size          # 4
    n_patches = GS * GS           # 16

    key = jax.random.PRNGKey(0)
    kx, kp = jax.random.split(key)
    x = jax.random.normal(kx, (B, n_patches, d_encoder), jnp.float32)
    params = init_params(kp, n_layers=n_layers, n_cls=n_cls,
                         d_encoder=d_encoder, d_model=d_model, d_ff=d_ff)

    out = transformer_decoder_forward(
        x, params, n_layers=n_layers, n_heads=n_heads, n_cls=n_cls,
        patch_size=patch_size, im_size=im_size)
    out = jax.block_until_ready(out)
    assert out.shape == (B, n_cls, H, W)
    assert bool(jnp.all(jnp.isfinite(out)))
    print("KERNEL_OK")
</pallas_src>

<mosaic_0001>
module attributes {stable_mosaic.version = 11 : i64} {
  func.func @kernel(%arg0: i32, %arg1: i32, %arg2: memref<1x16x32xf32, #tpu.memory_space<vmem>>, %arg3: memref<2x32xf32, #tpu.memory_space<vmem>>, %arg4: memref<32x32xbf16, #tpu.memory_space<vmem>>, %arg5: memref<1x32xf32, #tpu.memory_space<vmem>>, %arg6: memref<1x1x32xf32, #tpu.memory_space<vmem>>, %arg7: memref<1x1x32xf32, #tpu.memory_space<vmem>>, %arg8: memref<1x32x96xbf16, #tpu.memory_space<vmem>>, %arg9: memref<1x1x96xf32, #tpu.memory_space<vmem>>, %arg10: memref<1x32x32xbf16, #tpu.memory_space<vmem>>, %arg11: memref<1x1x32xf32, #tpu.memory_space<vmem>>, %arg12: memref<1x1x32xf32, #tpu.memory_space<vmem>>, %arg13: memref<1x1x32xf32, #tpu.memory_space<vmem>>, %arg14: memref<1x32x64xbf16, #tpu.memory_space<vmem>>, %arg15: memref<1x1x64xf32, #tpu.memory_space<vmem>>, %arg16: memref<1x64x32xbf16, #tpu.memory_space<vmem>>, %arg17: memref<1x1x32xf32, #tpu.memory_space<vmem>>, %arg18: memref<1x32xf32, #tpu.memory_space<vmem>>, %arg19: memref<1x32xf32, #tpu.memory_space<vmem>>, %arg20: memref<32x32xbf16, #tpu.memory_space<vmem>>, %arg21: memref<32x32xbf16, #tpu.memory_space<vmem>>, %arg22: memref<2x1xf32, #tpu.memory_space<vmem>>, %arg23: memref<2x1xf32, #tpu.memory_space<vmem>>, %arg24: memref<1x2x16xf32, #tpu.memory_space<vmem>>, %arg25: memref<18x32xf32, #tpu.memory_space<vmem>>) attributes {dimension_semantics = [#tpu.dimension_semantics<parallel>, #tpu.dimension_semantics<arbitrary>], iteration_bounds = array<i64: 2, 2>, scalar_prefetch = 0 : i64, scratch_operands = 1 : i64, tpu.core_type = #tpu.core_type<tc>, window_params = [{transform_indices = @transform_0, window_bounds = array<i64: 1, 16, 32>}, {pipeline_mode = #tpu.pipeline_mode<synchronous>, transform_indices = @transform_1, window_bounds = array<i64: 2, 32>}, {pipeline_mode = #tpu.pipeline_mode<synchronous>, transform_indices = @transform_2, window_bounds = array<i64: 32, 32>}, {pipeline_mode = #tpu.pipeline_mode<synchronous>, transform_indices = @transform_3, window_bounds = array<i64: 1, 32>}, {transform_indices = @transform_4, window_bounds = array<i64: 1, 1, 32>}, {transform_indices = @transform_5, window_bounds = array<i64: 1, 1, 32>}, {transform_indices = @transform_6, window_bounds = array<i64: 1, 32, 96>}, {transform_indices = @transform_7, window_bounds = array<i64: 1, 1, 96>}, {transform_indices = @transform_8, window_bounds = array<i64: 1, 32, 32>}, {transform_indices = @transform_9, window_bounds = array<i64: 1, 1, 32>}, {transform_indices = @transform_10, window_bounds = array<i64: 1, 1, 32>}, {transform_indices = @transform_11, window_bounds = array<i64: 1, 1, 32>}, {transform_indices = @transform_12, window_bounds = array<i64: 1, 32, 64>}, {transform_indices = @transform_13, window_bounds = array<i64: 1, 1, 64>}, {transform_indices = @transform_14, window_bounds = array<i64: 1, 64, 32>}, {transform_indices = @transform_15, window_bounds = array<i64: 1, 1, 32>}, {pipeline_mode = #tpu.pipeline_mode<synchronous>, transform_indices = @transform_16, window_bounds = array<i64: 1, 32>}, {pipeline_mode = #tpu.pipeline_mode<synchronous>, transform_indices = @transform_17, window_bounds = array<i64: 1, 32>}, {pipeline_mode = #tpu.pipeline_mode<synchronous>, transform_indices = @transform_18, window_bounds = array<i64: 32, 32>}, {pipeline_mode = #tpu.pipeline_mode<synchronous>, transform_indices = @transform_19, window_bounds = array<i64: 32, 32>}, {pipeline_mode = #tpu.pipeline_mode<synchronous>, transform_indices = @transform_20, window_bounds = array<i64: 2, 1>}, {pipeline_mode = #tpu.pipeline_mode<synchronous>, transform_indices = @transform_21, window_bounds = array<i64: 2, 1>}, {transform_indices = @transform_22, window_bounds = array<i64: 1, 2, 16>}]} {
    %c0_i32 = arith.constant 0 : i32
    %0 = arith.cmpi eq, %arg1, %c0_i32 : i32
    %1 = arith.extui %0 : i1 to i32
    %c0_i32_0 = arith.constant 0 : i32
    %2 = arith.cmpi ne, %1, %c0_i32_0 : i32
    scf.if %2 {
      %c0_82 = arith.constant 0 : index
      %c0_83 = arith.constant 0 : index
      %c0_84 = arith.constant 0 : index
      %180 = vector.load %arg2[%c0_82, %c0_83, %c0_84] : memref<1x16x32xf32, #tpu.memory_space<vmem>>, vector<1x16x32xf32>
      %181 = vector.shape_cast %180 : vector<1x16x32xf32> to vector<16x32xf32>
      %182 = arith.truncf %181 : vector<16x32xf32> to vector<16x32xbf16>
      %c0_85 = arith.constant 0 : index
      %c0_86 = arith.constant 0 : index
      %183 = vector.load %arg4[%c0_85, %c0_86] : memref<32x32xbf16, #tpu.memory_space<vmem>>, vector<32x32xbf16>
      %cst_87 = arith.constant dense<0.000000e+00> : vector<16x32xf32>
      %184 = tpu.matmul %182, %183, %cst_87 {dimension_numbers = #tpu.dot_dimension_numbers<[1], [0], [0], [1], [0, 0, 1, 1], [], []>} : vector<16x32xbf16>, vector<32x32xbf16>, vector<16x32xf32> -> vector<16x32xf32>
      %c0_88 = arith.constant 0 : index
      %c0_89 = arith.constant 0 : index
      %185 = vector.load %arg5[%c0_88, %c0_89] : memref<1x32xf32, #tpu.memory_space<vmem>>, vector<1x32xf32>
      %186 = vector.broadcast %185 : vector<1x32xf32> to vector<16x32xf32>
      %187 = arith.addf %184, %186 : vector<16x32xf32>
      %c0_90 = arith.constant 0 : index
      %c0_91 = arith.constant 0 : index
      %188 = vector.load %arg25[%c0_90, %c0_91] : memref<18x32xf32, #tpu.memory_space<vmem>>, vector<16x32xf32>
      tpu.vector_store %arg25[%c0_90, %c0_91], %187 {strides = array<i32>} : memref<18x32xf32, #tpu.memory_space<vmem>>, vector<16x32xf32>,
      %c0_92 = arith.constant 0 : index
      %c0_93 = arith.constant 0 : index
      %189 = vector.load %arg3[%c0_92, %c0_93] : memref<2x32xf32, #tpu.memory_space<vmem>>, vector<2x32xf32>
      %c16 = arith.constant 16 : index
      %c0_94 = arith.constant 0 : index
      %190 = vector.load %arg25[%c16, %c0_94] : memref<18x32xf32, #tpu.memory_space<vmem>>, vector<2x32xf32>
      tpu.vector_store %arg25[%c16, %c0_94], %189 {strides = array<i32>} : memref<18x32xf32, #tpu.memory_space<vmem>>, vector<2x32xf32>,
    } else {
    }
    %c0 = arith.constant 0 : index
    %c0_1 = arith.constant 0 : index
    %3 = vector.load %arg25[%c0, %c0_1] : memref<18x32xf32, #tpu.memory_space<vmem>>, vector<18x32xf32>
    %c0_2 = arith.constant 0 : index
    %c0_3 = arith.constant 0 : index
    %c0_4 = arith.constant 0 : index
    %4 = vector.load %arg6[%c0_2, %c0_3, %c0_4] : memref<1x1x32xf32, #tpu.memory_space<vmem>>, vector<1x1x32xf32>
    %5 = vector.shape_cast %4 : vector<1x1x32xf32> to vector<1x32xf32>
    %c0_5 = arith.constant 0 : index
    %c0_6 = arith.constant 0 : index
    %c0_7 = arith.constant 0 : index
    %6 = vector.load %arg7[%c0_5, %c0_6, %c0_7] : memref<1x1x32xf32, #tpu.memory_space<vmem>>, vector<1x1x32xf32>
    %7 = vector.shape_cast %6 : vector<1x1x32xf32> to vector<1x32xf32>
    %cst = arith.constant dense<0.000000e+00> : vector<18xf32>
    %8 = vector.multi_reduction <add>, %3, %cst [1] : vector<18x32xf32> to vector<18xf32>
    %9 = vector.shape_cast %8 : vector<18xf32> to vector<18x1xf32>
    %cst_8 = arith.constant 3.200000e+01 : f32
    %10 = vector.broadcast %cst_8 : f32 to vector<18x1xf32>
    %11 = arith.divf %9, %10 : vector<18x1xf32>
    %12 = vector.broadcast %11 : vector<18x1xf32> to vector<18x32xf32>
    %13 = arith.subf %3, %12 : vector<18x32xf32>
    %14 = arith.mulf %13, %13 : vector<18x32xf32>
    %cst_9 = arith.constant dense<0.000000e+00> : vector<18xf32>
    %15 = vector.multi_reduction <add>, %14, %cst_9 [1] : vector<18x32xf32> to vector<18xf32>
    %16 = vector.shape_cast %15 : vector<18xf32> to vector<18x1xf32>
    %cst_10 = arith.constant 3.200000e+01 : f32
    %17 = vector.broadcast %cst_10 : f32 to vector<18x1xf32>
    %18 = arith.divf %16, %17 : vector<18x1xf32>
    %cst_11 = arith.constant 9.99999974E-6 : f32
    %19 = vector.broadcast %cst_11 : f32 to vector<18x1xf32>
    %20 = arith.addf %18, %19 : vector<18x1xf32>
    %21 = math.rsqrt %20 : vector<18x1xf32>
    %22 = vector.broadcast %21 : vector<18x1xf32> to vector<18x32xf32>
    %23 = arith.mulf %13, %22 : vector<18x32xf32>
    %24 = vector.broadcast %5 : vector<1x32xf32> to vector<18x32xf32>
    %25 = arith.mulf %23, %24 : vector<18x32xf32>
    %26 = vector.broadcast %7 : vector<1x32xf32> to vector<18x32xf32>
    %27 = arith.addf %25, %26 : vector<18x32xf32>
    %28 = arith.truncf %27 : vector<18x32xf32> to vector<18x32xbf16>
    %c0_12 = arith.constant 0 : index
    %c0_13 = arith.constant 0 : index
    %c0_14 = arith.constant 0 : index
    %29 = vector.load %arg8[%c0_12, %c0_13, %c0_14] : memref<1x32x96xbf16, #tpu.memory_space<vmem>>, vector<1x32x96xbf16>
    %30 = vector.shape_cast %29 : vector<1x32x96xbf16> to vector<32x96xbf16>
    %cst_15 = arith.constant dense<0.000000e+00> : vector<18x96xf32>
    %31 = tpu.matmul %28, %30, %cst_15 {dimension_numbers = #tpu.dot_dimension_numbers<[1], [0], [0], [1], [0, 0, 1, 1], [], []>} : vector<18x32xbf16>, vector<32x96xbf16>, vector<18x96xf32> -> vector<18x96xf32>
    %c0_16 = arith.constant 0 : index
    %c0_17 = arith.constant 0 : index
    %c0_18 = arith.constant 0 : index
    %32 = vector.load %arg9[%c0_16, %c0_17, %c0_18] : memref<1x1x96xf32, #tpu.memory_space<vmem>>, vector<1x1x96xf32>
    %33 = vector.shape_cast %32 : vector<1x1x96xf32> to vector<1x96xf32>
    %34 = vector.broadcast %33 : vector<1x96xf32> to vector<18x96xf32>
    %35 = arith.addf %31, %34 : vector<18x96xf32>
    %c0_19 = arith.constant 0 : index
    %c0_20 = arith.constant 0 : index
    %c0_21 = arith.constant 0 : index
    %36 = vector.load %arg10[%c0_19, %c0_20, %c0_21] : memref<1x32x32xbf16, #tpu.memory_space<vmem>>, vector<1x32x32xbf16>
    %37 = vector.shape_cast %36 : vector<1x32x32xbf16> to vector<32x32xbf16>
    %cst_22 = arith.constant 0.000000e+00 : f32
    %38 = vector.broadcast %cst_22 : f32 to vector<18x32xf32>
    %39 = vector.extract_strided_slice %35 {offsets = [0, 0], sizes = [18, 16], strides = [1, 1]} : vector<18x96xf32> to vector<18x16xf32>
    %40 = vector.extract_strided_slice %35 {offsets = [0, 32], sizes = [18, 16], strides = [1, 1]} : vector<18x96xf32> to vector<18x16xf32>
    %41 = vector.extract_strided_slice %35 {offsets = [0, 64], sizes = [18, 16], strides = [1, 1]} : vector<18x96xf32> to vector<18x16xf32>
    %42 = arith.truncf %39 : vector<18x16xf32> to vector<18x16xbf16>
    %43 = arith.truncf %40 : vector<18x16xf32> to vector<18x16xbf16>
    %cst_23 = arith.constant dense<0.000000e+00> : vector<18x18xf32>
    %44 = tpu.matmul %42, %43, %cst_23 {dimension_numbers = #tpu.dot_dimension_numbers<[1], [1], [0], [0], [0, 0, 1, 0], [], []>} : vector<18x16xbf16>, vector<18x16xbf16>, vector<18x18xf32> -> vector<18x18xf32>
    %cst_24 = arith.constant 2.500000e-01 : f32
    %45 = vector.broadcast %cst_24 : f32 to vector<18x18xf32>
    %46 = arith.mulf %44, %45 : vector<18x18xf32>
    %cst_25 = arith.constant dense<0xFF800000> : vector<18xf32>
    %47 = vector.multi_reduction <maximumf>, %46, %cst_25 [1] : vector<18x18xf32> to vector<18xf32>
    %48 = vector.shape_cast %47 : vector<18xf32> to vector<18x1xf32>
    %49 = vector.broadcast %48 : vector<18x1xf32> to vector<18x18xf32>
    %50 = arith.subf %46, %49 : vector<18x18xf32>
    %51 = math.exp %50 : vector<18x18xf32>
    %cst_26 = arith.constant dense<0.000000e+00> : vector<18xf32>
    %52 = vector.multi_reduction <add>, %51, %cst_26 [1] : vector<18x18xf32> to vector<18xf32>
    %53 = vector.shape_cast %52 : vector<18xf32> to vector<18x1xf32>
    %54 = tpu.reciprocal %53 {approx = true} : vector<18x1xf32> -> vector<18x1xf32>
    %55 = vector.broadcast %54 : vector<18x1xf32> to vector<18x18xf32>
    %56 = arith.mulf %51, %55 : vector<18x18xf32>
    %57 = arith.truncf %56 : vector<18x18xf32> to vector<18x18xbf16>
    %58 = arith.truncf %41 : vector<18x16xf32> to vector<18x16xbf16>
    %cst_27 = arith.constant dense<0.000000e+00> : vector<18x16xf32>
    %59 = tpu.matmul %57, %58, %cst_27 {dimension_numbers = #tpu.dot_dimension_numbers<[1], [0], [0], [1], [0, 0, 1, 1], [], []>} : vector<18x18xbf16>, vector<18x16xbf16>, vector<18x16xf32> -> vector<18x16xf32>
    %60 = arith.truncf %59 : vector<18x16xf32> to vector<18x16xbf16>
    %61 = vector.extract_strided_slice %37 {offsets = [0, 0], sizes = [16, 32], strides = [1, 1]} : vector<32x32xbf16> to vector<16x32xbf16>
    %cst_28 = arith.constant dense<0.000000e+00> : vector<18x32xf32>
    %62 = tpu.matmul %60, %61, %cst_28 {dimension_numbers = #tpu.dot_dimension_numbers<[1], [0], [0], [1], [0, 0, 1, 1], [], []>} : vector<18x16xbf16>, vector<16x32xbf16>, vector<18x32xf32> -> vector<18x32xf32>
    %63 = arith.addf %38, %62 : vector<18x32xf32>
    %64 = vector.extract_strided_slice %35 {offsets = [0, 16], sizes = [18, 16], strides = [1, 1]} : vector<18x96xf32> to vector<18x16xf32>
    %65 = vector.extract_strided_slice %35 {offsets = [0, 48], sizes = [18, 16], strides = [1, 1]} : vector<18x96xf32> to vector<18x16xf32>
    %66 = vector.extract_strided_slice %35 {offsets = [0, 80], sizes = [18, 16], strides = [1, 1]} : vector<18x96xf32> to vector<18x16xf32>
    %67 = arith.truncf %64 : vector<18x16xf32> to vector<18x16xbf16>
    %68 = arith.truncf %65 : vector<18x16xf32> to vector<18x16xbf16>
    %cst_29 = arith.constant dense<0.000000e+00> : vector<18x18xf32>
    %69 = tpu.matmul %67, %68, %cst_29 {dimension_numbers = #tpu.dot_dimension_numbers<[1], [1], [0], [0], [0, 0, 1, 0], [], []>} : vector<18x16xbf16>, vector<18x16xbf16>, vector<18x18xf32> -> vector<18x18xf32>
    %cst_30 = arith.constant 2.500000e-01 : f32
    %70 = vector.broadcast %cst_30 : f32 to vector<18x18xf32>
    %71 = arith.mulf %69, %70 : vector<18x18xf32>
    %cst_31 = arith.constant dense<0xFF800000> : vector<18xf32>
    %72 = vector.multi_reduction <maximumf>, %71, %cst_31 [1] : vector<18x18xf32> to vector<18xf32>
    %73 = vector.shape_cast %72 : vector<18xf32> to vector<18x1xf32>
    %74 = vector.broadcast %73 : vector<18x1xf32> to vector<18x18xf32>
    %75 = arith.subf %71, %74 : vector<18x18xf32>
    %76 = math.exp %75 : vector<18x18xf32>
    %cst_32 = arith.constant dense<0.000000e+00> : vector<18xf32>
    %77 = vector.multi_reduction <add>, %76, %cst_32 [1] : vector<18x18xf32> to vector<18xf32>
    %78 = vector.shape_cast %77 : vector<18xf32> to vector<18x1xf32>
    %79 = tpu.reciprocal %78 {approx = true} : vector<18x1xf32> -> vector<18x1xf32>
    %80 = vector.broadcast %79 : vector<18x1xf32> to vector<18x18xf32>
    %81 = arith.mulf %76, %80 : vector<18x18xf32>
    %82 = arith.truncf %81 : vector<18x18xf32> to vector<18x18xbf16>
    %83 = arith.truncf %66 : vector<18x16xf32> to vector<18x16xbf16>
    %cst_33 = arith.constant dense<0.000000e+00> : vector<18x16xf32>
    %84 = tpu.matmul %82, %83, %cst_33 {dimension_numbers = #tpu.dot_dimension_numbers<[1], [0], [0], [1], [0, 0, 1, 1], [], []>} : vector<18x18xbf16>, vector<18x16xbf16>, vector<18x16xf32> -> vector<18x16xf32>
    %85 = arith.truncf %84 : vector<18x16xf32> to vector<18x16xbf16>
    %86 = vector.extract_strided_slice %37 {offsets = [16, 0], sizes = [16, 32], strides = [1, 1]} : vector<32x32xbf16> to vector<16x32xbf16>
    %cst_34 = arith.constant dense<0.000000e+00> : vector<18x32xf32>
    %87 = tpu.matmul %85, %86, %cst_34 {dimension_numbers = #tpu.dot_dimension_numbers<[1], [0], [0], [1], [0, 0, 1, 1], [], []>} : vector<18x16xbf16>, vector<16x32xbf16>, vector<18x32xf32> -> vector<18x32xf32>
    %88 = arith.addf %63, %87 : vector<18x32xf32>
    %89 = arith.addf %3, %88 : vector<18x32xf32>
    %c0_35 = arith.constant 0 : index
    %c0_36 = arith.constant 0 : index
    %c0_37 = arith.constant 0 : index
    %90 = vector.load %arg11[%c0_35, %c0_36, %c0_37] : memref<1x1x32xf32, #tpu.memory_space<vmem>>, vector<1x1x32xf32>
    %91 = vector.shape_cast %90 : vector<1x1x32xf32> to vector<1x32xf32>
    %92 = vector.broadcast %91 : vector<1x32xf32> to vector<18x32xf32>
    %93 = arith.addf %89, %92 : vector<18x32xf32>
    %c0_38 = arith.constant 0 : index
    %c0_39 = arith.constant 0 : index
    %c0_40 = arith.constant 0 : index
    %94 = vector.load %arg12[%c0_38, %c0_39, %c0_40] : memref<1x1x32xf32, #tpu.memory_space<vmem>>, vector<1x1x32xf32>
    %95 = vector.shape_cast %94 : vector<1x1x32xf32> to vector<1x32xf32>
    %c0_41 = arith.constant 0 : index
    %c0_42 = arith.constant 0 : index
    %c0_43 = arith.constant 0 : index
    %96 = vector.load %arg13[%c0_41, %c0_42, %c0_43] : memref<1x1x32xf32, #tpu.memory_space<vmem>>, vector<1x1x32xf32>
    %97 = vector.shape_cast %96 : vector<1x1x32xf32> to vector<1x32xf32>
    %cst_44 = arith.constant dense<0.000000e+00> : vector<18xf32>
    %98 = vector.multi_reduction <add>, %93, %cst_44 [1] : vector<18x32xf32> to vector<18xf32>
    %99 = vector.shape_cast %98 : vector<18xf32> to vector<18x1xf32>
    %cst_45 = arith.constant 3.200000e+01 : f32
    %100 = vector.broadcast %cst_45 : f32 to vector<18x1xf32>
    %101 = arith.divf %99, %100 : vector<18x1xf32>
    %102 = vector.broadcast %101 : vector<18x1xf32> to vector<18x32xf32>
    %103 = arith.subf %93, %102 : vector<18x32xf32>
    %104 = arith.mulf %103, %103 : vector<18x32xf32>
    %cst_46 = arith.constant dense<0.000000e+00> : vector<18xf32>
    %105 = vector.multi_reduction <add>, %104, %cst_46 [1] : vector<18x32xf32> to vector<18xf32>
    %106 = vector.shape_cast %105 : vector<18xf32> to vector<18x1xf32>
    %cst_47 = arith.constant 3.200000e+01 : f32
    %107 = vector.broadcast %cst_47 : f32 to vector<18x1xf32>
    %108 = arith.divf %106, %107 : vector<18x1xf32>
    %cst_48 = arith.constant 9.99999974E-6 : f32
    %109 = vector.broadcast %cst_48 : f32 to vector<18x1xf32>
    %110 = arith.addf %108, %109 : vector<18x1xf32>
    %111 = math.rsqrt %110 : vector<18x1xf32>
    %112 = vector.broadcast %111 : vector<18x1xf32> to vector<18x32xf32>
    %113 = arith.mulf %103, %112 : vector<18x32xf32>
    %114 = vector.broadcast %95 : vector<1x32xf32> to vector<18x32xf32>
    %115 = arith.mulf %113, %114 : vector<18x32xf32>
    %116 = vector.broadcast %97 : vector<1x32xf32> to vector<18x32xf32>
    %117 = arith.addf %115, %116 : vector<18x32xf32>
    %118 = arith.truncf %117 : vector<18x32xf32> to vector<18x32xbf16>
    %c0_49 = arith.constant 0 : index
    %c0_50 = arith.constant 0 : index
    %c0_51 = arith.constant 0 : index
    %119 = vector.load %arg14[%c0_49, %c0_50, %c0_51] : memref<1x32x64xbf16, #tpu.memory_space<vmem>>, vector<1x32x64xbf16>
    %120 = vector.shape_cast %119 : vector<1x32x64xbf16> to vector<32x64xbf16>
    %cst_52 = arith.constant dense<0.000000e+00> : vector<18x64xf32>
    %121 = tpu.matmul %118, %120, %cst_52 {dimension_numbers = #tpu.dot_dimension_numbers<[1], [0], [0], [1], [0, 0, 1, 1], [], []>} : vector<18x32xbf16>, vector<32x64xbf16>, vector<18x64xf32> -> vector<18x64xf32>
    %c0_53 = arith.constant 0 : index
    %c0_54 = arith.constant 0 : index
    %c0_55 = arith.constant 0 : index
    %122 = vector.load %arg15[%c0_53, %c0_54, %c0_55] : memref<1x1x64xf32, #tpu.memory_space<vmem>>, vector<1x1x64xf32>
    %123 = vector.shape_cast %122 : vector<1x1x64xf32> to vector<1x64xf32>
    %124 = vector.broadcast %123 : vector<1x64xf32> to vector<18x64xf32>
    %125 = arith.addf %121, %124 : vector<18x64xf32>
    %cst_56 = arith.constant 5.000000e-01 : f32
    %126 = vector.broadcast %cst_56 : f32 to vector<18x64xf32>
    %127 = arith.mulf %126, %125 : vector<18x64xf32>
    %cst_57 = arith.constant 0.707106769 : f32
    %128 = vector.broadcast %cst_57 : f32 to vector<18x64xf32>
    %129 = arith.mulf %125, %128 : vector<18x64xf32>
    %cst_58 = arith.constant 0.000000e+00 : f32
    %130 = vector.broadcast %cst_58 : f32 to vector<18x64xf32>
    %131 = arith.cmpf olt, %129, %130 : vector<18x64xf32>
    %cst_59 = arith.constant -1.000000e+00 : f32
    %cst_60 = arith.constant 1.000000e+00 : f32
    %132 = vector.broadcast %cst_59 : f32 to vector<18x64xf32>
    %133 = vector.broadcast %cst_60 : f32 to vector<18x64xf32>
    %134 = arith.select %131, %132, %133 : vector<18x64xi1>, vector<18x64xf32>
    %135 = math.absf %129 : vector<18x64xf32>
    %cst_61 = arith.constant 0.327591091 : f32
    %136 = vector.broadcast %cst_61 : f32 to vector<18x64xf32>
    %137 = arith.mulf %136, %135 : vector<18x64xf32>
    %cst_62 = arith.constant 1.000000e+00 : f32
    %138 = vector.broadcast %cst_62 : f32 to vector<18x64xf32>
    %139 = arith.addf %138, %137 : vector<18x64xf32>
    %cst_63 = arith.constant 1.000000e+00 : f32
    %140 = vector.broadcast %cst_63 : f32 to vector<18x64xf32>
    %141 = arith.divf %140, %139 : vector<18x64xf32>
    %cst_64 = arith.constant 1.06140542 : f32
    %142 = vector.broadcast %cst_64 : f32 to vector<18x64xf32>
    %143 = arith.mulf %142, %141 : vector<18x64xf32>
    %cst_65 = arith.constant -1.45315206 : f32
    %144 = vector.broadcast %cst_65 : f32 to vector<18x64xf32>
    %145 = arith.addf %143, %144 : vector<18x64xf32>
    %146 = arith.mulf %145, %141 : vector<18x64xf32>
    %cst_66 = arith.constant 1.42141378 : f32
    %147 = vector.broadcast %cst_66 : f32 to vector<18x64xf32>
    %148 = arith.addf %146, %147 : vector<18x64xf32>
    %149 = arith.mulf %148, %141 : vector<18x64xf32>
    %cst_67 = arith.constant -0.284496725 : f32
    %150 = vector.broadcast %cst_67 : f32 to vector<18x64xf32>
    %151 = arith.addf %149, %150 : vector<18x64xf32>
    %152 = arith.mulf %151, %141 : vector<18x64xf32>
    %cst_68 = arith.constant 0.254829586 : f32
    %153 = vector.broadcast %cst_68 : f32 to vector<18x64xf32>
    %154 = arith.addf %152, %153 : vector<18x64xf32>
    %155 = arith.mulf %154, %141 : vector<18x64xf32>
    %cst_69 = arith.constant 0.000000e+00 : f32
    %156 = vector.broadcast %cst_69 : f32 to vector<18x64xf32>
    %157 = arith.subf %156, %135 : vector<18x64xf32>
    %158 = arith.mulf %157, %135 : vector<18x64xf32>
    %159 = math.exp %158 : vector<18x64xf32>
    %160 = arith.mulf %155, %159 : vector<18x64xf32>
    %cst_70 = arith.constant 1.000000e+00 : f32
    %161 = vector.broadcast %cst_70 : f32 to vector<18x64xf32>
    %162 = arith.subf %161, %160 : vector<18x64xf32>
    %163 = arith.mulf %134, %162 : vector<18x64xf32>
    %cst_71 = arith.constant 1.000000e+00 : f32
    %164 = vector.broadcast %cst_71 : f32 to vector<18x64xf32>
    %165 = arith.addf %164, %163 : vector<18x64xf32>
    %166 = arith.mulf %127, %165 : vector<18x64xf32>
    %167 = arith.truncf %166 : vector<18x64xf32> to vector<18x64xbf16>
    %c0_72 = arith.constant 0 : index
    %c0_73 = arith.constant 0 : index
    %c0_74 = arith.constant 0 : index
    %168 = vector.load %arg16[%c0_72, %c0_73, %c0_74] : memref<1x64x32xbf16, #tpu.memory_space<vmem>>, vector<1x64x32xbf16>
    %169 = vector.shape_cast %168 : vector<1x64x32xbf16> to vector<64x32xbf16>
    %cst_75 = arith.constant dense<0.000000e+00> : vector<18x32xf32>
    %170 = tpu.matmul %167, %169, %cst_75 {dimension_numbers = #tpu.dot_dimension_numbers<[1], [0], [0], [1], [0, 0, 1, 1], [], []>} : vector<18x64xbf16>, vector<64x32xbf16>, vector<18x32xf32> -> vector<18x32xf32>
    %171 = arith.addf %93, %170 : vector<18x32xf32>
    %c0_76 = arith.constant 0 : index
    %c0_77 = arith.constant 0 : index
    %c0_78 = arith.constant 0 : index
    %172 = vector.load %arg17[%c0_76, %c0_77, %c0_78] : memref<1x1x32xf32, #tpu.memory_space<vmem>>, vector<1x1x32xf32>
    %173 = vector.shape_cast %172 : vector<1x1x32xf32> to vector<1x32xf32>
    %174 = vector.broadcast %173 : vector<1x32xf32> to vector<18x32xf32>
    %175 = arith.addf %171, %174 : vector<18x32xf32>
    %c0_79 = arith.constant 0 : index
    %c0_80 = arith.constant 0 : index
    %176 = vector.load %arg25[%c0_79, %c0_80] : memref<18x32xf32, #tpu.memory_space<vmem>>, vector<18x32xf32>
    tpu.vector_store %arg25[%c0_79, %c0_80], %175 {strides = array<i32>} : memref<18x32xf32, #tpu.memory_space<vmem>>, vector<18x32xf32>,
    %c1_i32 = arith.constant 1 : i32
    %177 = arith.cmpi eq, %arg1, %c1_i32 : i32
    %178 = arith.extui %177 : i1 to i32
    %c0_i32_81 = arith.constant 0 : i32
    %179 = arith.cmpi ne, %178, %c0_i32_81 : i32
    scf.if %179 {
      %c0_82 = arith.constant 0 : index
      %c0_83 = arith.constant 0 : index
      %180 = vector.load %arg18[%c0_82, %c0_83] : memref<1x32xf32, #tpu.memory_space<vmem>>, vector<1x32xf32>
      %c0_84 = arith.constant 0 : index
      %c0_85 = arith.constant 0 : index
      %181 = vector.load %arg19[%c0_84, %c0_85] : memref<1x32xf32, #tpu.memory_space<vmem>>, vector<1x32xf32>
      %cst_86 = arith.constant dense<0.000000e+00> : vector<18xf32>
      %182 = vector.multi_reduction <add>, %175, %cst_86 [1] : vector<18x32xf32> to vector<18xf32>
      %183 = vector.shape_cast %182 : vector<18xf32> to vector<18x1xf32>
      %cst_87 = arith.constant 3.200000e+01 : f32
      %184 = vector.broadcast %cst_87 : f32 to vector<18x1xf32>
      %185 = arith.divf %183, %184 : vector<18x1xf32>
      %186 = vector.broadcast %185 : vector<18x1xf32> to vector<18x32xf32>
      %187 = arith.subf %175, %186 : vector<18x32xf32>
      %188 = arith.mulf %187, %187 : vector<18x32xf32>
      %cst_88 = arith.constant dense<0.000000e+00> : vector<18xf32>
      %189 = vector.multi_reduction <add>, %188, %cst_88 [1] : vector<18x32xf32> to vector<18xf32>
      %190 = vector.shape_cast %189 : vector<18xf32> to vector<18x1xf32>
      %cst_89 = arith.constant 3.200000e+01 : f32
      %191 = vector.broadcast %cst_89 : f32 to vector<18x1xf32>
      %192 = arith.divf %190, %191 : vector<18x1xf32>
      %cst_90 = arith.constant 9.99999974E-6 : f32
      %193 = vector.broadcast %cst_90 : f32 to vector<18x1xf32>
      %194 = arith.addf %192, %193 : vector<18x1xf32>
      %195 = math.rsqrt %194 : vector<18x1xf32>
      %196 = vector.broadcast %195 : vector<18x1xf32> to vector<18x32xf32>
      %197 = arith.mulf %187, %196 : vector<18x32xf32>
      %198 = vector.broadcast %180 : vector<1x32xf32> to vector<18x32xf32>
      %199 = arith.mulf %197, %198 : vector<18x32xf32>
      %200 = vector.broadcast %181 : vector<1x32xf32> to vector<18x32xf32>
      %201 = arith.addf %199, %200 : vector<18x32xf32>
      %202 = vector.extract_strided_slice %201 {offsets = [0, 0], sizes = [16, 32], strides = [1, 1]} : vector<18x32xf32> to vector<16x32xf32>
      %203 = arith.truncf %202 : vector<16x32xf32> to vector<16x32xbf16>
      %c0_91 = arith.constant 0 : index
      %c0_92 = arith.constant 0 : index
      %204 = vector.load %arg20[%c0_91, %c0_92] : memref<32x32xbf16, #tpu.memory_space<vmem>>, vector<32x32xbf16>
      %cst_93 = arith.constant dense<0.000000e+00> : vector<16x32xf32>
      %205 = tpu.matmul %203, %204, %cst_93 {dimension_numbers = #tpu.dot_dimension_numbers<[1], [0], [0], [1], [0, 0, 1, 1], [], []>} : vector<16x32xbf16>, vector<32x32xbf16>, vector<16x32xf32> -> vector<16x32xf32>
      %206 = vector.extract_strided_slice %201 {offsets = [16, 0], sizes = [2, 32], strides = [1, 1]} : vector<18x32xf32> to vector<2x32xf32>
      %207 = arith.truncf %206 : vector<2x32xf32> to vector<2x32xbf16>
      %c0_94 = arith.constant 0 : index
      %c0_95 = arith.constant 0 : index
      %208 = vector.load %arg21[%c0_94, %c0_95] : memref<32x32xbf16, #tpu.memory_space<vmem>>, vector<32x32xbf16>
      %cst_96 = arith.constant dense<0.000000e+00> : vector<2x32xf32>
      %209 = tpu.matmul %207, %208, %cst_96 {dimension_numbers = #tpu.dot_dimension_numbers<[1], [0], [0], [1], [0, 0, 1, 1], [], []>} : vector<2x32xbf16>, vector<32x32xbf16>, vector<2x32xf32> -> vector<2x32xf32>
      %210 = arith.mulf %205, %205 : vector<16x32xf32>
      %cst_97 = arith.constant dense<0.000000e+00> : vector<16xf32>
      %211 = vector.multi_reduction <add>, %210, %cst_97 [1] : vector<16x32xf32> to vector<16xf32>
      %212 = vector.shape_cast %211 : vector<16xf32> to vector<16x1xf32>
      %cst_98 = arith.constant 9.99999996E-13 : f32
      %213 = vector.broadcast %cst_98 : f32 to vector<16x1xf32>
      %214 = arith.addf %212, %213 : vector<16x1xf32>
      %215 = math.rsqrt %214 : vector<16x1xf32>
      %216 = vector.broadcast %215 : vector<16x1xf32> to vector<16x32xf32>
      %217 = arith.mulf %205, %216 : vector<16x32xf32>
      %218 = arith.mulf %209, %209 : vector<2x32xf32>
      %cst_99 = arith.constant dense<0.000000e+00> : vector<2xf32>
      %219 = vector.multi_reduction <add>, %218, %cst_99 [1] : vector<2x32xf32> to vector<2xf32>
      %220 = vector.shape_cast %219 : vector<2xf32> to vector<2x1xf32>
      %cst_100 = arith.constant 9.99999996E-13 : f32
      %221 = vector.broadcast %cst_100 : f32 to vector<2x1xf32>
      %222 = arith.addf %220, %221 : vector<2x1xf32>
      %223 = math.rsqrt %222 : vector<2x1xf32>
      %224 = vector.broadcast %223 : vector<2x1xf32> to vector<2x32xf32>
      %225 = arith.mulf %209, %224 : vector<2x32xf32>
      %cst_101 = arith.constant dense<0.000000e+00> : vector<2x16xf32>
      %226 = tpu.matmul %225, %217, %cst_101 {dimension_numbers = #tpu.dot_dimension_numbers<[1], [1], [0], [0], [0, 0, 1, 0], [], []>} : vector<2x32xf32>, vector<16x32xf32>, vector<2x16xf32> -> vector<2x16xf32>
      %cst_102 = arith.constant dense<0.000000e+00> : vector<16xf32>
      %227 = vector.multi_reduction <add>, %226, %cst_102 [0] : vector<2x16xf32> to vector<16xf32>
      %228 = vector.shape_cast %227 : vector<16xf32> to vector<1x16xf32>
      %cst_103 = arith.constant 2.000000e+00 : f32
      %229 = vector.broadcast %cst_103 : f32 to vector<1x16xf32>
      %230 = arith.divf %228, %229 : vector<1x16xf32>
      %231 = vector.broadcast %230 : vector<1x16xf32> to vector<2x16xf32>
      %232 = arith.subf %226, %231 : vector<2x16xf32>
      %233 = arith.mulf %232, %232 : vector<2x16xf32>
      %cst_104 = arith.constant dense<0.000000e+00> : vector<16xf32>
      %234 = vector.multi_reduction <add>, %233, %cst_104 [0] : vector<2x16xf32> to vector<16xf32>
      %235 = vector.shape_cast %234 : vector<16xf32> to vector<1x16xf32>
      %cst_105 = arith.constant 2.000000e+00 : f32
      %236 = vector.broadcast %cst_105 : f32 to vector<1x16xf32>
      %237 = arith.divf %235, %236 : vector<1x16xf32>
      %cst_106 = arith.constant 9.99999974E-6 : f32
      %238 = vector.broadcast %cst_106 : f32 to vector<1x16xf32>
      %239 = arith.addf %237, %238 : vector<1x16xf32>
      %240 = math.rsqrt %239 : vector<1x16xf32>
      %241 = vector.broadcast %240 : vector<1x16xf32> to vector<2x16xf32>
      %242 = arith.mulf %232, %241 : vector<2x16xf32>
      %c0_107 = arith.constant 0 : index
      %c0_108 = arith.constant 0 : index
      %243 = vector.load %arg22[%c0_107, %c0_108] : memref<2x1xf32, #tpu.memory_space<vmem>>, vector<2x1xf32>
      %244 = vector.broadcast %243 : vector<2x1xf32> to vector<2x16xf32>
      %245 = arith.mulf %242, %244 : vector<2x16xf32>
      %c0_109 = arith.constant 0 : index
      %c0_110 = arith.constant 0 : index
      %246 = vector.load %arg23[%c0_109, %c0_110] : memref<2x1xf32, #tpu.memory_space<vmem>>, vector<2x1xf32>
      %247 = vector.broadcast %246 : vector<2x1xf32> to vector<2x16xf32>
      %248 = arith.addf %245, %247 : vector<2x16xf32>
      %c0_111 = arith.constant 0 : index
      %c0_112 = arith.constant 0 : index
      %c0_113 = arith.constant 0 : index
      %249 = vector.load %arg24[%c0_111, %c0_112, %c0_113] : memref<1x2x16xf32, #tpu.memory_space<vmem>>, vector<1x2x16xf32>
      %250 = vector.shape_cast %249 : vector<1x2x16xf32> to vector<2x16xf32>
      %251 = vector.shape_cast %248 : vector<2x16xf32> to vector<1x2x16xf32>
      tpu.vector_store %arg24[%c0_111, %c0_112, %c0_113], %251 {strides = array<i32>} : memref<1x2x16xf32, #tpu.memory_space<vmem>>, vector<1x2x16xf32>,
    } else {
    }
    return
  }
  func.func @transform_0(%arg0: i32, %arg1: i32) -> (i32, i32, i32) {
    %c0_i32 = arith.constant 0 : i32
    %c0_i32_0 = arith.constant 0 : i32
    %c0_i32_1 = arith.constant 0 : i32
    return %arg0, %c0_i32, %c0_i32_0 : i32, i32, i32
  }
  func.func @transform_1(%arg0: i32, %arg1: i32) -> (i32, i32) {
    %c0_i32 = arith.constant 0 : i32
    %c0_i32_0 = arith.constant 0 : i32
    %c0_i32_1 = arith.constant 0 : i32
    return %c0_i32, %c0_i32_0 : i32, i32
  }
  func.func @transform_2(%arg0: i32, %arg1: i32) -> (i32, i32) {
    %c0_i32 = arith.constant 0 : i32
    %c0_i32_0 = arith.constant 0 : i32
    %c0_i32_1 = arith.constant 0 : i32
    return %c0_i32, %c0_i32_0 : i32, i32
  }
  func.func @transform_3(%arg0: i32, %arg1: i32) -> (i32, i32) {
    %c0_i32 = arith.constant 0 : i32
    %c0_i32_0 = arith.constant 0 : i32
    %c0_i32_1 = arith.constant 0 : i32
    return %c0_i32, %c0_i32_0 : i32, i32
  }
  func.func @transform_4(%arg0: i32, %arg1: i32) -> (i32, i32, i32) {
    %c0_i32 = arith.constant 0 : i32
    %c0_i32_0 = arith.constant 0 : i32
    %c0_i32_1 = arith.constant 0 : i32
    return %arg1, %c0_i32, %c0_i32_0 : i32, i32, i32
  }
  func.func @transform_5(%arg0: i32, %arg1: i32) -> (i32, i32, i32) {
    %c0_i32 = arith.constant 0 : i32
    %c0_i32_0 = arith.constant 0 : i32
    %c0_i32_1 = arith.constant 0 : i32
    return %arg1, %c0_i32, %c0_i32_0 : i32, i32, i32
  }
  func.func @transform_6(%arg0: i32, %arg1: i32) -> (i32, i32, i32) {
    %c0_i32 = arith.constant 0 : i32
    %c0_i32_0 = arith.constant 0 : i32
    %c0_i32_1 = arith.constant 0 : i32
    return %arg1, %c0_i32, %c0_i32_0 : i32, i32, i32
  }
  func.func @transform_7(%arg0: i32, %arg1: i32) -> (i32, i32, i32) {
    %c0_i32 = arith.constant 0 : i32
    %c0_i32_0 = arith.constant 0 : i32
    %c0_i32_1 = arith.constant 0 : i32
    return %arg1, %c0_i32, %c0_i32_0 : i32, i32, i32
  }
  func.func @transform_8(%arg0: i32, %arg1: i32) -> (i32, i32, i32) {
    %c0_i32 = arith.constant 0 : i32
    %c0_i32_0 = arith.constant 0 : i32
    %c0_i32_1 = arith.constant 0 : i32
    return %arg1, %c0_i32, %c0_i32_0 : i32, i32, i32
  }
  func.func @transform_9(%arg0: i32, %arg1: i32) -> (i32, i32, i32) {
    %c0_i32 = arith.constant 0 : i32
    %c0_i32_0 = arith.constant 0 : i32
    %c0_i32_1 = arith.constant 0 : i32
    return %arg1, %c0_i32, %c0_i32_0 : i32, i32, i32
  }
  func.func @transform_10(%arg0: i32, %arg1: i32) -> (i32, i32, i32) {
    %c0_i32 = arith.constant 0 : i32
    %c0_i32_0 = arith.constant 0 : i32
    %c0_i32_1 = arith.constant 0 : i32
    return %arg1, %c0_i32, %c0_i32_0 : i32, i32, i32
  }
  func.func @transform_11(%arg0: i32, %arg1: i32) -> (i32, i32, i32) {
    %c0_i32 = arith.constant 0 : i32
    %c0_i32_0 = arith.constant 0 : i32
    %c0_i32_1 = arith.constant 0 : i32
    return %arg1, %c0_i32, %c0_i32_0 : i32, i32, i32
  }
  func.func @transform_12(%arg0: i32, %arg1: i32) -> (i32, i32, i32) {
    %c0_i32 = arith.constant 0 : i32
    %c0_i32_0 = arith.constant 0 : i32
    %c0_i32_1 = arith.constant 0 : i32
    return %arg1, %c0_i32, %c0_i32_0 : i32, i32, i32
  }
  func.func @transform_13(%arg0: i32, %arg1: i32) -> (i32, i32, i32) {
    %c0_i32 = arith.constant 0 : i32
    %c0_i32_0 = arith.constant 0 : i32
    %c0_i32_1 = arith.constant 0 : i32
    return %arg1, %c0_i32, %c0_i32_0 : i32, i32, i32
  }
  func.func @transform_14(%arg0: i32, %arg1: i32) -> (i32, i32, i32) {
    %c0_i32 = arith.constant 0 : i32
    %c0_i32_0 = arith.constant 0 : i32
    %c0_i32_1 = arith.constant 0 : i32
    return %arg1, %c0_i32, %c0_i32_0 : i32, i32, i32
  }
  func.func @transform_15(%arg0: i32, %arg1: i32) -> (i32, i32, i32) {
    %c0_i32 = arith.constant 0 : i32
    %c0_i32_0 = arith.constant 0 : i32
    %c0_i32_1 = arith.constant 0 : i32
    return %arg1, %c0_i32, %c0_i32_0 : i32, i32, i32
  }
  func.func @transform_16(%arg0: i32, %arg1: i32) -> (i32, i32) {
    %c0_i32 = arith.constant 0 : i32
    %c0_i32_0 = arith.constant 0 : i32
    %c0_i32_1 = arith.constant 0 : i32
    return %c0_i32, %c0_i32_0 : i32, i32
  }
  func.func @transform_17(%arg0: i32, %arg1: i32) -> (i32, i32) {
    %c0_i32 = arith.constant 0 : i32
    %c0_i32_0 = arith.constant 0 : i32
    %c0_i32_1 = arith.constant 0 : i32
    return %c0_i32, %c0_i32_0 : i32, i32
  }
  func.func @transform_18(%arg0: i32, %arg1: i32) -> (i32, i32) {
    %c0_i32 = arith.constant 0 : i32
    %c0_i32_0 = arith.constant 0 : i32
    %c0_i32_1 = arith.constant 0 : i32
    return %c0_i32, %c0_i32_0 : i32, i32
  }
  func.func @transform_19(%arg0: i32, %arg1: i32) -> (i32, i32) {
    %c0_i32 = arith.constant 0 : i32
    %c0_i32_0 = arith.constant 0 : i32
    %c0_i32_1 = arith.constant 0 : i32
    return %c0_i32, %c0_i32_0 : i32, i32
  }
  func.func @transform_20(%arg0: i32, %arg1: i32) -> (i32, i32) {
    %c0_i32 = arith.constant 0 : i32
    %c0_i32_0 = arith.constant 0 : i32
    %c0_i32_1 = arith.constant 0 : i32
    return %c0_i32, %c0_i32_0 : i32, i32
  }
  func.func @transform_21(%arg0: i32, %arg1: i32) -> (i32, i32) {
    %c0_i32 = arith.constant 0 : i32
    %c0_i32_0 = arith.constant 0 : i32
    %c0_i32_1 = arith.constant 0 : i32
    return %c0_i32, %c0_i32_0 : i32, i32
  }
  func.func @transform_22(%arg0: i32, %arg1: i32) -> (i32, i32, i32) {
    %c0_i32 = arith.constant 0 : i32
    %c0_i32_0 = arith.constant 0 : i32
    %c0_i32_1 = arith.constant 0 : i32
    return %arg0, %c0_i32, %c0_i32_0 : i32, i32, i32
  }
}

</mosaic_0001>

<llo_original>
// kernel: tpu_custom_call.1
$region0: #{tpu_custom_call.1}
  #allocation0 [shape = 'u32[]', space=smem, size = 0x4, offset = 0x4, fixed_abs, tag = 'smem constant byte address 0x4 - core index']
  #allocation1 [shape = 'u32[144,128]{1,0:T(1,128)}', space=vmem, size = 0x12000, scoped, tag = 'internal scratch']
  #allocation2 [shape = 'f32[18,32]{1,0:T(8,128)}', space=vmem, size = 0x3000, scoped, tag = 'scratch operand']
  %s0 = inlined_call_operand.vmem [shape: f32[2,16,32], index: 0, kind: input, shape index: {}]
  %s1 = inlined_call_operand.hbm [shape: f32[2,32], index: 1, kind: input, shape index: {}]
  %s2 = inlined_call_operand.hbm [shape: bf16[32,32], index: 2, kind: input, shape index: {}]
  %s3 = inlined_call_operand.hbm [shape: f32[1,32], index: 3, kind: input, shape index: {}]
  %s4 = inlined_call_operand.hbm [shape: f32[2,1,32], index: 4, kind: input, shape index: {}]
  %s5 = inlined_call_operand.hbm [shape: f32[2,1,32], index: 5, kind: input, shape index: {}]
  %s6 = inlined_call_operand.vmem [shape: bf16[2,32,96], index: 6, kind: input, shape index: {}]
  %s7 = inlined_call_operand.hbm [shape: f32[2,1,96], index: 7, kind: input, shape index: {}]
  %s8 = inlined_call_operand.vmem [shape: bf16[2,32,32], index: 8, kind: input, shape index: {}]
  %s9 = inlined_call_operand.hbm [shape: f32[2,1,32], index: 9, kind: input, shape index: {}]
  %s10 = inlined_call_operand.hbm [shape: f32[2,1,32], index: 10, kind: input, shape index: {}]
  %s11 = inlined_call_operand.hbm [shape: f32[2,1,32], index: 11, kind: input, shape index: {}]
  %s12 = inlined_call_operand.hbm [shape: bf16[2,32,64], index: 12, kind: input, shape index: {}]
  %s13 = inlined_call_operand.hbm [shape: f32[2,1,64], index: 13, kind: input, shape index: {}]
  %s14 = inlined_call_operand.vmem [shape: bf16[2,64,32], index: 14, kind: input, shape index: {}]
  %s15 = inlined_call_operand.hbm [shape: f32[2,1,32], index: 15, kind: input, shape index: {}]
  %s16 = inlined_call_operand.vmem [shape: f32[1,32], index: 16, kind: input, shape index: {}]
  %s17 = inlined_call_operand.vmem [shape: f32[1,32], index: 17, kind: input, shape index: {}]
  %s18 = inlined_call_operand.vmem [shape: bf16[32,32], index: 18, kind: input, shape index: {}]
  %s19 = inlined_call_operand.vmem [shape: bf16[32,32], index: 19, kind: input, shape index: {}]
  %s20 = inlined_call_operand.vmem [shape: f32[2,1], index: 20, kind: input, shape index: {}]
  %s21 = inlined_call_operand.vmem [shape: f32[2,1], index: 21, kind: input, shape index: {}]
  %s22 = inlined_call_operand.hbm [shape: f32[2,2,16], index: 22, kind: output, shape index: {}]
  %s23 = sld [smem:[#allocation0]]
  $region177: #{tpu_custom_call.1} parent=0
    _
  %s25 = ssub.s32 1, %s23
  %s26 = scalar_select 0, %s25, %s23
  $region1: #{tpu_custom_call.1} parent=0
    #allocation3 [shape = 'u8[1024]{0}', space=vmem, size = 0x400, scoped, tag = 'input window, operand 1, single buffered']
    #allocation4 [shape = 's32[2]{0}', space=sflag, size = 0x8, scoped, tag = 'scoped memory for tpu_custom_call.1']
    #allocation5 [shape = 's32[2]{0}', space=sflag, size = 0x8, scoped, tag = 'scoped memory for tpu_custom_call.1']
    #allocation6 [shape = 'u8[8192]{0}', space=vmem, size = 0x2000, scoped, tag = 'input window, operand 2, single buffered']
    #allocation7 [shape = 's32[1]{0}', space=sflag, size = 0x4, scoped, tag = 'scoped memory for tpu_custom_call.1']
    #allocation8 [shape = 'u8[512]{0}', space=vmem, size = 0x400, scoped, tag = 'input window, operand 3, single buffered']
    #allocation9 [shape = 'u8[1024]{0}', space=vmem, size = 0x400, scoped, tag = 'input window, operand 4']
    #allocation10 [shape = 's32[2]{0}', space=sflag, size = 0x8, scoped, tag = 'scoped memory for tpu_custom_call.1']
    #allocation11 [shape = 'u8[1024]{0}', space=vmem, size = 0x400, scoped, tag = 'input window, operand 5']
    #allocation12 [shape = 'u8[1024]{0}', space=vmem, size = 0x400, scoped, tag = 'input window, operand 7']
    #allocation13 [shape = 's32[2]{0}', space=sflag, size = 0x8, scoped, tag = 'scoped memory for tpu_custom_call.1']
    #allocation14 [shape = 'u8[1024]{0}', space=vmem, size = 0x400, scoped, tag = 'input window, operand 9']
    #allocation15 [shape = 'u8[1024]{0}', space=vmem, size = 0x400, scoped, tag = 'input window, operand 10']
    #allocation16 [shape = 's32[2]{0}', space=sflag, size = 0x8, scoped, tag = 'scoped memory for tpu_custom_call.1']
    #allocation17 [shape = 'u8[1024]{0}', space=vmem, size = 0x400, scoped, tag = 'input window, operand 11']
    #allocation18 [shape = 'u8[16384]{0}', space=vmem, size = 0x4000, scoped, tag = 'input window, operand 12']
    #allocation19 [shape = 's32[2]{0}', space=sflag, size = 0x8, scoped, tag = 'scoped memory for tpu_custom_call.1']
    #allocation20 [shape = 'u8[1024]{0}', space=vmem, size = 0x400, scoped, tag = 'input window, operand 13']
    #allocation21 [shape = 'u8[1024]{0}', space=vmem, size = 0x400, scoped, tag = 'input window, operand 15']
    #allocation22 [shape = 's32[2]{0}', space=sflag, size = 0x8, scoped, tag = 'scoped memory for tpu_custom_call.1']
    #allocation23 [shape = 'u8[2048]{0}', space=vmem, size = 0x800, scoped, tag = 'output window, operand 0']
    %27 = vsyncpa [#allocation4], 0
    %28 = vsyncpa [#allocation7], 0
    %29 = vsyncpa [#allocation10], 0
    %s30 = scalar_lea.sflag [#allocation10], 1
    %31 = vsyncpa %s30, 0
    %32 = vsyncpa [#allocation13], 0
    %s33 = scalar_lea.sflag [#allocation13], 1
    %34 = vsyncpa %s33, 0
    %35 = vsyncpa [#allocation16], 0
    %s36 = scalar_lea.sflag [#allocation16], 1
    %37 = vsyncpa %s36, 0
    %38 = vsyncpa [#allocation19], 0
    %s39 = scalar_lea.sflag [#allocation19], 1
    %40 = vsyncpa %s39, 0
    %41 = vsyncpa [#allocation22], 0
    %s42 = scalar_lea.sflag [#allocation22], 1
    %43 = vsyncpa %s42, 0
    %44 = vsyncpa [#allocation5], 0
    %s45 = scalar_lea.sflag [#allocation5], 1
    %46 = vsyncpa %s45, 0
    loop: start=0, step=1, limit=6
    $region2: #{tpu_custom_call.1} parent=1 // loop_pre_header
      _
    $region3: #{tpu_custom_call.1} parent=1 // loop_header
      %s48 = sphi 0, %s52
      %p49 = scmp.ge.s32.totalorder %s48, 6
      %s55 = sphi 0, %s67
      %s56 = sphi 0, %s63
      %s57 = sphi 0, %s55
      %s58 = sphi 0, %s56
      %s59 = sphi 0, %s57
      %s60 = sphi 0, %s58
      %s70 = sphi 0, %s72
      %s73 = sphi 0, %s70
      %s74 = sphi 0, %s73
      %s90 = sphi 0, %s74
      %s94 = sphi 0, %s94
      %s96 = sphi 0, %s94
      %s97 = sphi 0, %s96
      %s111 = sphi 0, %s97
      %s115 = sphi 0, %s115
      %s117 = sphi 0, %s115
      %s118 = sphi 0, %s117
      %s132 = sphi 0, %s118
      %s136 = sphi 0, %s136
      %s138 = sphi 0, %s136
      %s139 = sphi 0, %s138
      %s153 = sphi 0, %s139
      %s159 = sphi 0, %s161
      %s162 = sphi 0, %s159
      %s163 = sphi 0, %s162
      %s179 = sphi 0, %s163
      %s185 = sphi 0, %s187
      %s188 = sphi 0, %s185
      %s189 = sphi 0, %s188
      %s205 = sphi 0, %s189
      %s211 = sphi 0, %s213
      %s214 = sphi 0, %s211
      %s215 = sphi 0, %s214
      %s231 = sphi 0, %s215
      %s237 = sphi 0, %s239
      %s240 = sphi 0, %s237
      %s241 = sphi 0, %s240
      %s257 = sphi 0, %s241
      %s263 = sphi 0, %s265
      %s266 = sphi 0, %s263
      %s267 = sphi 0, %s266
      %s283 = sphi 0, %s267
      %s289 = sphi 0, %s291
      %s292 = sphi 0, %s289
      %s293 = sphi 0, %s292
      %s309 = sphi 0, %s293
      %s315 = sphi 0, %s317
      %s318 = sphi 0, %s315
      %s319 = sphi 0, %s318
      %s335 = sphi 0, %s319
      %s341 = sphi 0, %s343
      %s344 = sphi 0, %s341
      %s345 = sphi 0, %s344
      %s361 = sphi 0, %s345
      %s367 = sphi 0, %s369
      %s370 = sphi 0, %s367
      %s371 = sphi 0, %s370
      %s387 = sphi 0, %s371
      %s393 = sphi 0, %s395
      %s396 = sphi 0, %s393
      %s397 = sphi 0, %s396
      %s413 = sphi 0, %s397
      %s419 = sphi 0, %s421
      %s422 = sphi 0, %s419
      %s423 = sphi 0, %s422
      %s439 = sphi 0, %s423
      %s445 = sphi 0, %s447
      %s448 = sphi 0, %s445
      %s449 = sphi 0, %s448
      %s465 = sphi 0, %s449
      %s469 = sphi 0, %s469
      %s471 = sphi 0, %s469
      %s472 = sphi 0, %s471
      %s486 = sphi 0, %s472
      %s490 = sphi 0, %s490
      %s492 = sphi 0, %s490
      %s493 = sphi 0, %s492
      %s507 = sphi 0, %s493
      %s511 = sphi 0, %s511
      %s513 = sphi 0, %s511
      %s514 = sphi 0, %s513
      %s528 = sphi 0, %s514
      %s532 = sphi 0, %s532
      %s534 = sphi 0, %s532
      %s535 = sphi 0, %s534
      %s549 = sphi 0, %s535
      %s553 = sphi 0, %s553
      %s555 = sphi 0, %s553
      %s556 = sphi 0, %s555
      %s570 = sphi 0, %s556
      %s574 = sphi 0, %s574
      %s576 = sphi 0, %s574
      %s577 = sphi 0, %s576
      %s591 = sphi 0, %s577
      %s597 = sphi 0, %s599
      %s600 = sphi 0, %s597
      %s601 = sphi 0, %s600
      %s617 = sphi 0, %s601
    $region4: #{tpu_custom_call.1} parent=1 // loop_header_branch
      %51 = sbr.rel (%p49) target = $region8
    $region5: #{tpu_custom_call.1} parent=1 // loop_body
      %s53 = ssub.s32 %s48, 1
      %s54 = ssub.s32 %s48, 2
      %s61 = sadd.s32 1, %s56
      %p62 = scmp.ge.s32.totalorder %s61, 2
      %s63 = scalar_select %p62, 0, %s61
      %s64 = sadd.s32 1, %s55
      %s65 = scalar_select %p62, %s64, %s55
      %p66 = scmp.ge.s32.totalorder %s65, 2
      %s67 = scalar_select %p66, 0, %s65
      %s68 = ssub.s32 %s55, %s67
      %p69 = scmp.eq.s32.totalorder %s68, 0
      %s71 = sadd.s32 %s70, 1
      %s72 = scalar_select %p69, %s70, %s71
      %p75 = pneg %p69
      %p76 = scmp.eq.s32.totalorder %s48, 3
      %p77 = por %p75, %p76
      %p78 = scmp.ne.s32.totalorder %s70, %s73
      %p79 = scmp.eq.s32.totalorder %s48, 0
      %p80 = por %p78, %p79
      %p81 = scmp.ne.s32.totalorder %s70, %s73
      %p82 = scmp.eq.s32.totalorder %s53, 3
      %p83 = por %p81, %p82
      %p84 = scmp.ne.s32.totalorder %s73, %s74
      %p85 = scmp.eq.s32.totalorder %s53, 0
      %p86 = por %p84, %p85
      %p87 = scmp.ne.s32.totalorder %s73, %s74
      %p88 = scmp.eq.s32.totalorder %s54, 3
      %p89 = por %p87, %p88
      %p91 = scmp.ne.s32.totalorder %s74, %s90
      %p92 = scmp.eq.s32.totalorder %s54, 0
      %p93 = por %p91, %p92
      %s95 = sadd.s32 %s94, 1
      %p98 = scmp.eq.s32.totalorder %s48, 3
      %p99 = scmp.ne.s32.totalorder %s94, %s96
      %p100 = scmp.eq.s32.totalorder %s48, 0
      %p101 = por %p99, %p100
      %p102 = scmp.ne.s32.totalorder %s94, %s96
      %p103 = scmp.eq.s32.totalorder %s53, 3
      %p104 = por %p102, %p103
      %p105 = scmp.ne.s32.totalorder %s96, %s97
      %p106 = scmp.eq.s32.totalorder %s53, 0
      %p107 = por %p105, %p106
      %p108 = scmp.ne.s32.totalorder %s96, %s97
      %p109 = scmp.eq.s32.totalorder %s54, 3
      %p110 = por %p108, %p109
      %p112 = scmp.ne.s32.totalorder %s97, %s111
      %p113 = scmp.eq.s32.totalorder %s54, 0
      %p114 = por %p112, %p113
      %s116 = sadd.s32 %s115, 1
      %p119 = scmp.eq.s32.totalorder %s48, 3
      %p120 = scmp.ne.s32.totalorder %s115, %s117
      %p121 = scmp.eq.s32.totalorder %s48, 0
      %p122 = por %p120, %p121
      %p123 = scmp.ne.s32.totalorder %s115, %s117
      %p124 = scmp.eq.s32.totalorder %s53, 3
      %p125 = por %p123, %p124
      %p126 = scmp.ne.s32.totalorder %s117, %s118
      %p127 = scmp.eq.s32.totalorder %s53, 0
      %p128 = por %p126, %p127
      %p129 = scmp.ne.s32.totalorder %s117, %s118
      %p130 = scmp.eq.s32.totalorder %s54, 3
      %p131 = por %p129, %p130
      %p133 = scmp.ne.s32.totalorder %s118, %s132
      %p134 = scmp.eq.s32.totalorder %s54, 0
      %p135 = por %p133, %p134
      %s137 = sadd.s32 %s136, 1
      %p140 = scmp.eq.s32.totalorder %s48, 3
      %p141 = scmp.ne.s32.totalorder %s136, %s138
      %p142 = scmp.eq.s32.totalorder %s48, 0
      %p143 = por %p141, %p142
      %p144 = scmp.ne.s32.totalorder %s136, %s138
      %p145 = scmp.eq.s32.totalorder %s53, 3
      %p146 = por %p144, %p145
      %p147 = scmp.ne.s32.totalorder %s138, %s139
      %p148 = scmp.eq.s32.totalorder %s53, 0
      %p149 = por %p147, %p148
      %p150 = scmp.ne.s32.totalorder %s138, %s139
      %p151 = scmp.eq.s32.totalorder %s54, 3
      %p152 = por %p150, %p151
      %p154 = scmp.ne.s32.totalorder %s139, %s153
      %p155 = scmp.eq.s32.totalorder %s54, 0
      %p156 = por %p154, %p155
      %s157 = ssub.s32 %s56, %s63
      %p158 = scmp.eq.s32.totalorder %s157, 0
      %s160 = sadd.s32 %s159, 1
      %s161 = scalar_select %p158, %s159, %s160
      %p164 = pneg %p158
      %p165 = scmp.eq.s32.totalorder %s48, 3
      %p166 = por %p164, %p165
      %p167 = scmp.ne.s32.totalorder %s159, %s162
      %p168 = scmp.eq.s32.totalorder %s48, 0
      %p169 = por %p167, %p168
      %p170 = scmp.ne.s32.totalorder %s159, %s162
      %p171 = scmp.eq.s32.totalorder %s53, 3
      %p172 = por %p170, %p171
      %p173 = scmp.ne.s32.totalorder %s162, %s163
      %p174 = scmp.eq.s32.totalorder %s53, 0
      %p175 = por %p173, %p174
      %p176 = scmp.ne.s32.totalorder %s162, %s163
      %p177 = scmp.eq.s32.totalorder %s54, 3
      %p178 = por %p176, %p177
      %p180 = scmp.ne.s32.totalorder %s163, %s179
      %p181 = scmp.eq.s32.totalorder %s54, 0
      %p182 = por %p180, %p181
      %s183 = ssub.s32 %s56, %s63
      %p184 = scmp.eq.s32.totalorder %s183, 0
      %s186 = sadd.s32 %s185, 1
      %s187 = scalar_select %p184, %s185, %s186
      %p190 = pneg %p184
      %p191 = scmp.eq.s32.totalorder %s48, 3
      %p192 = por %p190, %p191
      %p193 = scmp.ne.s32.totalorder %s185, %s188
      %p194 = scmp.eq.s32.totalorder %s48, 0
      %p195 = por %p193, %p194
      %p196 = scmp.ne.s32.totalorder %s185, %s188
      %p197 = scmp.eq.s32.totalorder %s53, 3
      %p198 = por %p196, %p197
      %p199 = scmp.ne.s32.totalorder %s188, %s189
      %p200 = scmp.eq.s32.totalorder %s53, 0
      %p201 = por %p199, %p200
      %p202 = scmp.ne.s32.totalorder %s188, %s189
      %p203 = scmp.eq.s32.totalorder %s54, 3
      %p204 = por %p202, %p203
      %p206 = scmp.ne.s32.totalorder %s189, %s205
      %p207 = scmp.eq.s32.totalorder %s54, 0
      %p208 = por %p206, %p207
      %s209 = ssub.s32 %s56, %s63
      %p210 = scmp.eq.s32.totalorder %s209, 0
      %s212 = sadd.s32 %s211, 1
      %s213 = scalar_select %p210, %s211, %s212
      %p216 = pneg %p210
      %p217 = scmp.eq.s32.totalorder %s48, 3
      %p218 = por %p216, %p217
      %p219 = scmp.ne.s32.totalorder %s211, %s214
      %p220 = scmp.eq.s32.totalorder %s48, 0
      %p221 = por %p219, %p220
      %p222 = scmp.ne.s32.totalorder %s211, %s214
      %p223 = scmp.eq.s32.totalorder %s53, 3
      %p224 = por %p222, %p223
      %p225 = scmp.ne.s32.totalorder %s214, %s215
      %p226 = scmp.eq.s32.totalorder %s53, 0
      %p227 = por %p225, %p226
      %p228 = scmp.ne.s32.totalorder %s214, %s215
      %p229 = scmp.eq.s32.totalorder %s54, 3
      %p230 = por %p228, %p229
      %p232 = scmp.ne.s32.totalorder %s215, %s231
      %p233 = scmp.eq.s32.totalorder %s54, 0
      %p234 = por %p232, %p233
      %s235 = ssub.s32 %s56, %s63
      %p236 = scmp.eq.s32.totalorder %s235, 0
      %s238 = sadd.s32 %s237, 1
      %s239 = scalar_select %p236, %s237, %s238
      %p242 = pneg %p236
      %p243 = scmp.eq.s32.totalorder %s48, 3
      %p244 = por %p242, %p243
      %p245 = scmp.ne.s32.totalorder %s237, %s240
      %p246 = scmp.eq.s32.totalorder %s48, 0
      %p247 = por %p245, %p246
      %p248 = scmp.ne.s32.totalorder %s237, %s240
      %p249 = scmp.eq.s32.totalorder %s53, 3
      %p250 = por %p248, %p249
      %p251 = scmp.ne.s32.totalorder %s240, %s241
      %p252 = scmp.eq.s32.totalorder %s53, 0
      %p253 = por %p251, %p252
      %p254 = scmp.ne.s32.totalorder %s240, %s241
      %p255 = scmp.eq.s32.totalorder %s54, 3
      %p256 = por %p254, %p255
      %p258 = scmp.ne.s32.totalorder %s241, %s257
      %p259 = scmp.eq.s32.totalorder %s54, 0
      %p260 = por %p258, %p259
      %s261 = ssub.s32 %s56, %s63
      %p262 = scmp.eq.s32.totalorder %s261, 0
      %s264 = sadd.s32 %s263, 1
      %s265 = scalar_select %p262, %s263, %s264
      %p268 = pneg %p262
      %p269 = scmp.eq.s32.totalorder %s48, 3
      %p270 = por %p268, %p269
      %p271 = scmp.ne.s32.totalorder %s263, %s266
      %p272 = scmp.eq.s32.totalorder %s48, 0
      %p273 = por %p271, %p272
      %p274 = scmp.ne.s32.totalorder %s263, %s266
      %p275 = scmp.eq.s32.totalorder %s53, 3
      %p276 = por %p274, %p275
      %p277 = scmp.ne.s32.totalorder %s266, %s267
      %p278 = scmp.eq.s32.totalorder %s53, 0
      %p279 = por %p277, %p278
      %p280 = scmp.ne.s32.totalorder %s266, %s267
      %p281 = scmp.eq.s32.totalorder %s54, 3
      %p282 = por %p280, %p281
      %p284 = scmp.ne.s32.totalorder %s267, %s283
      %p285 = scmp.eq.s32.totalorder %s54, 0
      %p286 = por %p284, %p285
      %s287 = ssub.s32 %s56, %s63
      %p288 = scmp.eq.s32.totalorder %s287, 0
      %s290 = sadd.s32 %s289, 1
      %s291 = scalar_select %p288, %s289, %s290
      %p294 = pneg %p288
      %p295 = scmp.eq.s32.totalorder %s48, 3
      %p296 = por %p294, %p295
      %p297 = scmp.ne.s32.totalorder %s289, %s292
      %p298 = scmp.eq.s32.totalorder %s48, 0
      %p299 = por %p297, %p298
      %p300 = scmp.ne.s32.totalorder %s289, %s292
      %p301 = scmp.eq.s32.totalorder %s53, 3
      %p302 = por %p300, %p301
      %p303 = scmp.ne.s32.totalorder %s292, %s293
      %p304 = scmp.eq.s32.totalorder %s53, 0
      %p305 = por %p303, %p304
      %p306 = scmp.ne.s32.totalorder %s292, %s293
      %p307 = scmp.eq.s32.totalorder %s54, 3
      %p308 = por %p306, %p307
      %p310 = scmp.ne.s32.totalorder %s293, %s309
      %p311 = scmp.eq.s32.totalorder %s54, 0
      %p312 = por %p310, %p311
      %s313 = ssub.s32 %s56, %s63
      %p314 = scmp.eq.s32.totalorder %s313, 0
      %s316 = sadd.s32 %s315, 1
      %s317 = scalar_select %p314, %s315, %s316
      %p320 = pneg %p314
      %p321 = scmp.eq.s32.totalorder %s48, 3
      %p322 = por %p320, %p321
      %p323 = scmp.ne.s32.totalorder %s315, %s318
      %p324 = scmp.eq.s32.totalorder %s48, 0
      %p325 = por %p323, %p324
      %p326 = scmp.ne.s32.totalorder %s315, %s318
      %p327 = scmp.eq.s32.totalorder %s53, 3
      %p328 = por %p326, %p327
      %p329 = scmp.ne.s32.totalorder %s318, %s319
      %p330 = scmp.eq.s32.totalorder %s53, 0
      %p331 = por %p329, %p330
      %p332 = scmp.ne.s32.totalorder %s318, %s319
      %p333 = scmp.eq.s32.totalorder %s54, 3
      %p334 = por %p332, %p333
      %p336 = scmp.ne.s32.totalorder %s319, %s335
      %p337 = scmp.eq.s32.totalorder %s54, 0
      %p338 = por %p336, %p337
      %s339 = ssub.s32 %s56, %s63
      %p340 = scmp.eq.s32.totalorder %s339, 0
      %s342 = sadd.s32 %s341, 1
      %s343 = scalar_select %p340, %s341, %s342
      %p346 = pneg %p340
      %p347 = scmp.eq.s32.totalorder %s48, 3
      %p348 = por %p346, %p347
      %p349 = scmp.ne.s32.totalorder %s341, %s344
      %p350 = scmp.eq.s32.totalorder %s48, 0
      %p351 = por %p349, %p350
      %p352 = scmp.ne.s32.totalorder %s341, %s344
      %p353 = scmp.eq.s32.totalorder %s53, 3
      %p354 = por %p352, %p353
      %p355 = scmp.ne.s32.totalorder %s344, %s345
      %p356 = scmp.eq.s32.totalorder %s53, 0
      %p357 = por %p355, %p356
      %p358 = scmp.ne.s32.totalorder %s344, %s345
      %p359 = scmp.eq.s32.totalorder %s54, 3
      %p360 = por %p358, %p359
      %p362 = scmp.ne.s32.totalorder %s345, %s361
      %p363 = scmp.eq.s32.totalorder %s54, 0
      %p364 = por %p362, %p363
      %s365 = ssub.s32 %s56, %s63
      %p366 = scmp.eq.s32.totalorder %s365, 0
      %s368 = sadd.s32 %s367, 1
      %s369 = scalar_select %p366, %s367, %s368
      %p372 = pneg %p366
      %p373 = scmp.eq.s32.totalorder %s48, 3
      %p374 = por %p372, %p373
      %p375 = scmp.ne.s32.totalorder %s367, %s370
      %p376 = scmp.eq.s32.totalorder %s48, 0
      %p377 = por %p375, %p376
      %p378 = scmp.ne.s32.totalorder %s367, %s370
      %p379 = scmp.eq.s32.totalorder %s53, 3
      %p380 = por %p378, %p379
      %p381 = scmp.ne.s32.totalorder %s370, %s371
      %p382 = scmp.eq.s32.totalorder %s53, 0
      %p383 = por %p381, %p382
      %p384 = scmp.ne.s32.totalorder %s370, %s371
      %p385 = scmp.eq.s32.totalorder %s54, 3
      %p386 = por %p384, %p385
      %p388 = scmp.ne.s32.totalorder %s371, %s387
      %p389 = scmp.eq.s32.totalorder %s54, 0
      %p390 = por %p388, %p389
      %s391 = ssub.s32 %s56, %s63
      %p392 = scmp.eq.s32.totalorder %s391, 0
      %s394 = sadd.s32 %s393, 1
      %s395 = scalar_select %p392, %s393, %s394
      %p398 = pneg %p392
      %p399 = scmp.eq.s32.totalorder %s48, 3
      %p400 = por %p398, %p399
      %p401 = scmp.ne.s32.totalorder %s393, %s396
      %p402 = scmp.eq.s32.totalorder %s48, 0
      %p403 = por %p401, %p402
      %p404 = scmp.ne.s32.totalorder %s393, %s396
      %p405 = scmp.eq.s32.totalorder %s53, 3
      %p406 = por %p404, %p405
      %p407 = scmp.ne.s32.totalorder %s396, %s397
      %p408 = scmp.eq.s32.totalorder %s53, 0
      %p409 = por %p407, %p408
      %p410 = scmp.ne.s32.totalorder %s396, %s397
      %p411 = scmp.eq.s32.totalorder %s54, 3
      %p412 = por %p410, %p411
      %p414 = scmp.ne.s32.totalorder %s397, %s413
      %p415 = scmp.eq.s32.totalorder %s54, 0
      %p416 = por %p414, %p415
      %s417 = ssub.s32 %s56, %s63
      %p418 = scmp.eq.s32.totalorder %s417, 0
      %s420 = sadd.s32 %s419, 1
      %s421 = scalar_select %p418, %s419, %s420
      %p424 = pneg %p418
      %p425 = scmp.eq.s32.totalorder %s48, 3
      %p426 = por %p424, %p425
      %p427 = scmp.ne.s32.totalorder %s419, %s422
      %p428 = scmp.eq.s32.totalorder %s48, 0
      %p429 = por %p427, %p428
      %p430 = scmp.ne.s32.totalorder %s419, %s422
      %p431 = scmp.eq.s32.totalorder %s53, 3
      %p432 = por %p430, %p431
      %p433 = scmp.ne.s32.totalorder %s422, %s423
      %p434 = scmp.eq.s32.totalorder %s53, 0
      %p435 = por %p433, %p434
      %p436 = scmp.ne.s32.totalorder %s422, %s423
      %p437 = scmp.eq.s32.totalorder %s54, 3
      %p438 = por %p436, %p437
      %p440 = scmp.ne.s32.totalorder %s423, %s439
      %p441 = scmp.eq.s32.totalorder %s54, 0
      %p442 = por %p440, %p441
      %s443 = ssub.s32 %s56, %s63
      %p444 = scmp.eq.s32.totalorder %s443, 0
      %s446 = sadd.s32 %s445, 1
      %s447 = scalar_select %p444, %s445, %s446
      %p450 = pneg %p444
      %p451 = scmp.eq.s32.totalorder %s48, 3
      %p452 = por %p450, %p451
      %p453 = scmp.ne.s32.totalorder %s445, %s448
      %p454 = scmp.eq.s32.totalorder %s48, 0
      %p455 = por %p453, %p454
      %p456 = scmp.ne.s32.totalorder %s445, %s448
      %p457 = scmp.eq.s32.totalorder %s53, 3
      %p458 = por %p456, %p457
      %p459 = scmp.ne.s32.totalorder %s448, %s449
      %p460 = scmp.eq.s32.totalorder %s53, 0
      %p461 = por %p459, %p460
      %p462 = scmp.ne.s32.totalorder %s448, %s449
      %p463 = scmp.eq.s32.totalorder %s54, 3
      %p464 = por %p462, %p463
      %p466 = scmp.ne.s32.totalorder %s449, %s465
      %p467 = scmp.eq.s32.totalorder %s54, 0
      %p468 = por %p466, %p467
      %s470 = sadd.s32 %s469, 1
      %p473 = scmp.eq.s32.totalorder %s48, 3
      %p474 = scmp.ne.s32.totalorder %s469, %s471
      %p475 = scmp.eq.s32.totalorder %s48, 0
      %p476 = por %p474, %p475
      %p477 = scmp.ne.s32.totalorder %s469, %s471
      %p478 = scmp.eq.s32.totalorder %s53, 3
      %p479 = por %p477, %p478
      %p480 = scmp.ne.s32.totalorder %s471, %s472
      %p481 = scmp.eq.s32.totalorder %s53, 0
      %p482 = por %p480, %p481
      %p483 = scmp.ne.s32.totalorder %s471, %s472
      %p484 = scmp.eq.s32.totalorder %s54, 3
      %p485 = por %p483, %p484
      %p487 = scmp.ne.s32.totalorder %s472, %s486
      %p488 = scmp.eq.s32.totalorder %s54, 0
      %p489 = por %p487, %p488
      %s491 = sadd.s32 %s490, 1
      %p494 = scmp.eq.s32.totalorder %s48, 3
      %p495 = scmp.ne.s32.totalorder %s490, %s492
      %p496 = scmp.eq.s32.totalorder %s48, 0
      %p497 = por %p495, %p496
      %p498 = scmp.ne.s32.totalorder %s490, %s492
      %p499 = scmp.eq.s32.totalorder %s53, 3
      %p500 = por %p498, %p499
      %p501 = scmp.ne.s32.totalorder %s492, %s493
      %p502 = scmp.eq.s32.totalorder %s53, 0
      %p503 = por %p501, %p502
      %p504 = scmp.ne.s32.totalorder %s492, %s493
      %p505 = scmp.eq.s32.totalorder %s54, 3
      %p506 = por %p504, %p505
      %p508 = scmp.ne.s32.totalorder %s493, %s507
      %p509 = scmp.eq.s32.totalorder %s54, 0
      %p510 = por %p508, %p509
      %s512 = sadd.s32 %s511, 1
      %p515 = scmp.eq.s32.totalorder %s48, 3
      %p516 = scmp.ne.s32.totalorder %s511, %s513
      %p517 = scmp.eq.s32.totalorder %s48, 0
      %p518 = por %p516, %p517
      %p519 = scmp.ne.s32.totalorder %s511, %s513
      %p520 = scmp.eq.s32.totalorder %s53, 3
      %p521 = por %p519, %p520
      %p522 = scmp.ne.s32.totalorder %s513, %s514
      %p523 = scmp.eq.s32.totalorder %s53, 0
      %p524 = por %p522, %p523
      %p525 = scmp.ne.s32.totalorder %s513, %s514
      %p526 = scmp.eq.s32.totalorder %s54, 3
      %p527 = por %p525, %p526
      %p529 = scmp.ne.s32.totalorder %s514, %s528
      %p530 = scmp.eq.s32.totalorder %s54, 0
      %p531 = por %p529, %p530
      %s533 = sadd.s32 %s532, 1
      %p536 = scmp.eq.s32.totalorder %s48, 3
      %p537 = scmp.ne.s32.totalorder %s532, %s534
      %p538 = scmp.eq.s32.totalorder %s48, 0
      %p539 = por %p537, %p538
      %p540 = scmp.ne.s32.totalorder %s532, %s534
      %p541 = scmp.eq.s32.totalorder %s53, 3
      %p542 = por %p540, %p541
      %p543 = scmp.ne.s32.totalorder %s534, %s535
      %p544 = scmp.eq.s32.totalorder %s53, 0
      %p545 = por %p543, %p544
      %p546 = scmp.ne.s32.totalorder %s534, %s535
      %p547 = scmp.eq.s32.totalorder %s54, 3
      %p548 = por %p546, %p547
      %p550 = scmp.ne.s32.totalorder %s535, %s549
      %p551 = scmp.eq.s32.totalorder %s54, 0
      %p552 = por %p550, %p551
      %s554 = sadd.s32 %s553, 1
      %p557 = scmp.eq.s32.totalorder %s48, 3
      %p558 = scmp.ne.s32.totalorder %s553, %s555
      %p559 = scmp.eq.s32.totalorder %s48, 0
      %p560 = por %p558, %p559
      %p561 = scmp.ne.s32.totalorder %s553, %s555
      %p562 = scmp.eq.s32.totalorder %s53, 3
      %p563 = por %p561, %p562
      %p564 = scmp.ne.s32.totalorder %s555, %s556
      %p565 = scmp.eq.s32.totalorder %s53, 0
      %p566 = por %p564, %p565
      %p567 = scmp.ne.s32.totalorder %s555, %s556
      %p568 = scmp.eq.s32.totalorder %s54, 3
      %p569 = por %p567, %p568
      %p571 = scmp.ne.s32.totalorder %s556, %s570
      %p572 = scmp.eq.s32.totalorder %s54, 0
      %p573 = por %p571, %p572
      %s575 = sadd.s32 %s574, 1
      %p578 = scmp.eq.s32.totalorder %s48, 3
      %p579 = scmp.ne.s32.totalorder %s574, %s576
      %p580 = scmp.eq.s32.totalorder %s48, 0
      %p581 = por %p579, %p580
      %p582 = scmp.ne.s32.totalorder %s574, %s576
      %p583 = scmp.eq.s32.totalorder %s53, 3
      %p584 = por %p582, %p583
      %p585 = scmp.ne.s32.totalorder %s576, %s577
      %p586 = scmp.eq.s32.totalorder %s53, 0
      %p587 = por %p585, %p586
      %p588 = scmp.ne.s32.totalorder %s576, %s577
      %p589 = scmp.eq.s32.totalorder %s54, 3
      %p590 = por %p588, %p589
      %p592 = scmp.ne.s32.totalorder %s577, %s591
      %p593 = scmp.eq.s32.totalorder %s54, 0
      %p594 = por %p592, %p593
      %s595 = ssub.s32 %s55, %s67
      %p596 = scmp.eq.s32.totalorder %s595, 0
      %s598 = sadd.s32 %s597, 1
      %s599 = scalar_select %p596, %s597, %s598
      %p602 = pneg %p596
      %p603 = scmp.eq.s32.totalorder %s48, 3
      %p604 = por %p602, %p603
      %p605 = scmp.ne.s32.totalorder %s597, %s600
      %p606 = scmp.eq.s32.totalorder %s48, 0
      %p607 = por %p605, %p606
      %p608 = scmp.ne.s32.totalorder %s597, %s600
      %p609 = scmp.eq.s32.totalorder %s53, 3
      %p610 = por %p608, %p609
      %p611 = scmp.ne.s32.totalorder %s600, %s601
      %p612 = scmp.eq.s32.totalorder %s53, 0
      %p613 = por %p611, %p612
      %p614 = scmp.ne.s32.totalorder %s600, %s601
      %p615 = scmp.eq.s32.totalorder %s54, 3
      %p616 = por %p614, %p615
      %p618 = scmp.ne.s32.totalorder %s601, %s617
      %p619 = scmp.eq.s32.totalorder %s54, 0
      %p620 = por %p618, %p619
      %p621 = scmp.le.s32.totalorder 1, %s48
      %p622 = scmp.lt.s32.totalorder %s48, 5
      %p623 = pnand %p621, %p622
      %p624 = pneg %p623
      // Predicated region
      $region9: #{tpu_custom_call.1} parent=5 // pred_check
        _
      $region10: #{tpu_custom_call.1} parent=5 // pred_check_branch
        %626 = sbr.rel (%p623) target = $region12
      $region11: #{tpu_custom_call.1} parent=5 // pred_region
        %s627 = ssub.s32 %s48, 1
        // Predicated region
        $region13: #{tpu_custom_call.1} parent=11 // pred_check
          %p628 = pneg %p107
        $region14: #{tpu_custom_call.1} parent=11 // pred_check_branch
          %630 = sbr.rel (%p628) target = $region16
        $region15: #{tpu_custom_call.1} parent=11 // pred_region
          %s632 = ssub.s32 32, 32
          %633 = vsyncadd [#allocation4], %s632
          %s635 = sshll.u32 [#allocation3], 4
          %s636 = int_to_ptr.vmem [resolvable:$true] %s635
          %638 = dma.hbm_to_vmem [thread:$0]  %s1, 32, %s636, [#allocation4]
        $region16: #{tpu_custom_call.1} parent=11 // pred_fallthru
          _
        // Predicated region
        $region17: #{tpu_custom_call.1} parent=11 // pred_check
          %p639 = pneg %p128
        $region18: #{tpu_custom_call.1} parent=11 // pred_check_branch
          %641 = sbr.rel (%p639) target = $region20
        $region19: #{tpu_custom_call.1} parent=11 // pred_region
          %s643 = ssub.s32 256, 256
          %644 = vsyncadd [#allocation7], %s643
          %s645 = sshll.u32 [#allocation6], 4
          %s646 = int_to_ptr.vmem [resolvable:$true] %s645
          %651 = dma.hbm_to_vmem [thread:$0]  %s2, 256, %s646, [#allocation7], 64, 64, 4
        $region20: #{tpu_custom_call.1} parent=11 // pred_fallthru
          _
        // Predicated region
        $region21: #{tpu_custom_call.1} parent=11 // pred_check
          %p652 = pneg %p149
        $region22: #{tpu_custom_call.1} parent=11 // pred_check_branch
          %654 = sbr.rel (%p652) target = $region24
        $region23: #{tpu_custom_call.1} parent=11 // pred_region
          %s656 = ssub.s32 16, 16
          %657 = vsyncadd [#allocation7], %s656
          %s659 = sshll.u32 [#allocation8], 4
          %s660 = int_to_ptr.vmem [resolvable:$true] %s659
          %662 = dma.hbm_to_vmem [thread:$0]  %s3, 16, %s660, [#allocation7]
        $region24: #{tpu_custom_call.1} parent=11 // pred_fallthru
          _
        // Predicated region
        $region25: #{tpu_custom_call.1} parent=11 // pred_check
          %p663 = pneg %p482
        $region26: #{tpu_custom_call.1} parent=11 // pred_check_branch
          %665 = sbr.rel (%p663) target = $region28
        $region27: #{tpu_custom_call.1} parent=11 // pred_region
          _
        $region28: #{tpu_custom_call.1} parent=11 // pred_fallthru
          _
        // Predicated region
        $region29: #{tpu_custom_call.1} parent=11 // pred_check
          %p666 = pneg %p503
        $region30: #{tpu_custom_call.1} parent=11 // pred_check_branch
          %668 = sbr.rel (%p666) target = $region32
        $region31: #{tpu_custom_call.1} parent=11 // pred_region
          _
        $region32: #{tpu_custom_call.1} parent=11 // pred_fallthru
          _
        // Predicated region
        $region33: #{tpu_custom_call.1} parent=11 // pred_check
          %p669 = pneg %p524
        $region34: #{tpu_custom_call.1} parent=11 // pred_check_branch
          %671 = sbr.rel (%p669) target = $region36
        $region35: #{tpu_custom_call.1} parent=11 // pred_region
          _
        $region36: #{tpu_custom_call.1} parent=11 // pred_fallthru
          _
        // Predicated region
        $region37: #{tpu_custom_call.1} parent=11 // pred_check
          %p672 = pneg %p545
        $region38: #{tpu_custom_call.1} parent=11 // pred_check_branch
          %674 = sbr.rel (%p672) target = $region40
        $region39: #{tpu_custom_call.1} parent=11 // pred_region
          _
        $region40: #{tpu_custom_call.1} parent=11 // pred_fallthru
          _
        // Predicated region
        $region41: #{tpu_custom_call.1} parent=11 // pred_check
          %p675 = pneg %p566
        $region42: #{tpu_custom_call.1} parent=11 // pred_check_branch
          %677 = sbr.rel (%p675) target = $region44
        $region43: #{tpu_custom_call.1} parent=11 // pred_region
          _
        $region44: #{tpu_custom_call.1} parent=11 // pred_fallthru
          _
        // Predicated region
        $region45: #{tpu_custom_call.1} parent=11 // pred_check
          %p678 = pneg %p587
        $region46: #{tpu_custom_call.1} parent=11 // pred_check_branch
          %680 = sbr.rel (%p678) target = $region48
        $region47: #{tpu_custom_call.1} parent=11 // pred_region
          _
        $region48: #{tpu_custom_call.1} parent=11 // pred_fallthru
          _
      $region12: #{tpu_custom_call.1} parent=5 // pred_fallthru
        _
      %p681 = scmp.lt.s32.totalorder %s48, 4
      // Predicated region
      $region49: #{tpu_custom_call.1} parent=5 // pred_check
        %p682 = pneg %p681
      $region50: #{tpu_custom_call.1} parent=5 // pred_check_branch
        %684 = sbr.rel (%p682) target = $region52
      $region51: #{tpu_custom_call.1} parent=5 // pred_region
        // Predicated region
        $region53: #{tpu_custom_call.1} parent=51 // pred_check
          %p685 = pneg %p80
        $region54: #{tpu_custom_call.1} parent=51 // pred_check_branch
          %687 = sbr.rel (%p685) target = $region56
        $region55: #{tpu_custom_call.1} parent=51 // pred_region
          %p688 = scmp.lt.s32.totalorder %s55, 1
          %s689 = scalar_select %p688, %s55, 1
          %s690 = smul.addr %s689, 2
          %s691 = smul.addr %s690, 8
          %s692 = scalar_lea.vmem %s0, %s691
        $region56: #{tpu_custom_call.1} parent=51 // pred_fallthru
          _
        // Predicated region
        $region57: #{tpu_custom_call.1} parent=51 // pred_check
          %p693 = pneg %p169
        $region58: #{tpu_custom_call.1} parent=51 // pred_check_branch
          %695 = sbr.rel (%p693) target = $region60
        $region59: #{tpu_custom_call.1} parent=51 // pred_region
          %s696 = sand.u32 %s48, 1
          %s697 = scalar_lea.sflag [#allocation10], %s696
          %s698 = sand.u32 %s159, 1
          %s699 = scalar_lea.vmem [#allocation9], %s698
          %s701 = ssub.s32 16, 16
          %702 = vsyncadd %s697, %s701
          %s703 = smul.addr %s56, 16
          %s704 = scalar_lea.hbm %s4, %s703
          %s706 = sshll.u32 %s699, 4
          %s707 = int_to_ptr.vmem [resolvable:$true] %s706
          %709 = dma.hbm_to_vmem [thread:$0]  %s704, 16, %s707, %s697
        $region60: #{tpu_custom_call.1} parent=51 // pred_fallthru
          _
        // Predicated region
        $region61: #{tpu_custom_call.1} parent=51 // pred_check
          %p710 = pneg %p195
        $region62: #{tpu_custom_call.1} parent=51 // pred_check_branch
          %712 = sbr.rel (%p710) target = $region64
        $region63: #{tpu_custom_call.1} parent=51 // pred_region
          %s713 = sand.u32 %s48, 1
          %s714 = scalar_lea.sflag [#allocation10], %s713
          %s715 = sand.u32 %s185, 1
          %s716 = scalar_lea.vmem [#allocation11], %s715
          %s718 = ssub.s32 16, 16
          %719 = vsyncadd %s714, %s718
          %s720 = smul.addr %s56, 16
          %s721 = scalar_lea.hbm %s5, %s720
          %s723 = sshll.u32 %s716, 4
          %s724 = int_to_ptr.vmem [resolvable:$true] %s723
          %726 = dma.hbm_to_vmem [thread:$0]  %s721, 16, %s724, %s714
        $region64: #{tpu_custom_call.1} parent=51 // pred_fallthru
          _
        // Predicated region
        $region65: #{tpu_custom_call.1} parent=51 // pred_check
          %p727 = pneg %p221
        $region66: #{tpu_custom_call.1} parent=51 // pred_check_branch
          %729 = sbr.rel (%p727) target = $region68
        $region67: #{tpu_custom_call.1} parent=51 // pred_region
          %p730 = scmp.lt.s32.totalorder %s56, 1
          %s731 = scalar_select %p730, %s56, 1
          %s732 = smul.addr %s731, 4
          %s733 = smul.addr %s732, 4
          %s734 = scalar_lea.vmem %s6, %s733
        $region68: #{tpu_custom_call.1} parent=51 // pred_fallthru
          _
        // Predicated region
        $region69: #{tpu_custom_call.1} parent=51 // pred_check
          %p735 = pneg %p247
        $region70: #{tpu_custom_call.1} parent=51 // pred_check_branch
          %737 = sbr.rel (%p735) target = $region72
        $region71: #{tpu_custom_call.1} parent=51 // pred_region
          %s738 = sand.u32 %s48, 1
          %s739 = scalar_lea.sflag [#allocation13], %s738
          %s740 = sand.u32 %s237, 1
          %s741 = scalar_lea.vmem [#allocation12], %s740
          %s743 = ssub.s32 16, 16
          %744 = vsyncadd %s739, %s743
          %s745 = smul.addr %s56, 16
          %s746 = scalar_lea.hbm %s7, %s745
          %s748 = sshll.u32 %s741, 4
          %s749 = int_to_ptr.vmem [resolvable:$true] %s748
          %751 = dma.hbm_to_vmem [thread:$0]  %s746, 16, %s749, %s739
        $region72: #{tpu_custom_call.1} parent=51 // pred_fallthru
          _
        // Predicated region
        $region73: #{tpu_custom_call.1} parent=51 // pred_check
          %p752 = pneg %p273
        $region74: #{tpu_custom_call.1} parent=51 // pred_check_branch
          %754 = sbr.rel (%p752) target = $region76
        $region75: #{tpu_custom_call.1} parent=51 // pred_region
          %p755 = scmp.lt.s32.totalorder %s56, 1
          %s756 = scalar_select %p755, %s56, 1
          %s757 = smul.addr %s756, 4
          %s758 = smul.addr %s757, 4
          %s759 = scalar_lea.vmem %s8, %s758
        $region76: #{tpu_custom_call.1} parent=51 // pred_fallthru
          _
        // Predicated region
        $region77: #{tpu_custom_call.1} parent=51 // pred_check
          %p760 = pneg %p299
        $region78: #{tpu_custom_call.1} parent=51 // pred_check_branch
          %762 = sbr.rel (%p760) target = $region80
        $region79: #{tpu_custom_call.1} parent=51 // pred_region
          %s763 = sand.u32 %s48, 1
          %s764 = scalar_lea.sflag [#allocation13], %s763
          %s765 = sand.u32 %s289, 1
          %s766 = scalar_lea.vmem [#allocation14], %s765
          %s768 = ssub.s32 16, 16
          %769 = vsyncadd %s764, %s768
          %s770 = smul.addr %s56, 16
          %s771 = scalar_lea.hbm %s9, %s770
          %s773 = sshll.u32 %s766, 4
          %s774 = int_to_ptr.vmem [resolvable:$true] %s773
          %776 = dma.hbm_to_vmem [thread:$0]  %s771, 16, %s774, %s764
        $region80: #{tpu_custom_call.1} parent=51 // pred_fallthru
          _
        // Predicated region
        $region81: #{tpu_custom_call.1} parent=51 // pred_check
          %p777 = pneg %p325
        $region82: #{tpu_custom_call.1} parent=51 // pred_check_branch
          %779 = sbr.rel (%p777) target = $region84
        $region83: #{tpu_custom_call.1} parent=51 // pred_region
          %s780 = sand.u32 %s48, 1
          %s781 = scalar_lea.sflag [#allocation16], %s780
          %s782 = sand.u32 %s315, 1
          %s783 = scalar_lea.vmem [#allocation15], %s782
          %s785 = ssub.s32 16, 16
          %786 = vsyncadd %s781, %s785
          %s787 = smul.addr %s56, 16
          %s788 = scalar_lea.hbm %s10, %s787
          %s790 = sshll.u32 %s783, 4
          %s791 = int_to_ptr.vmem [resolvable:$true] %s790
          %793 = dma.hbm_to_vmem [thread:$0]  %s788, 16, %s791, %s781
        $region84: #{tpu_custom_call.1} parent=51 // pred_fallthru
          _
        // Predicated region
        $region85: #{tpu_custom_call.1} parent=51 // pred_check
          %p794 = pneg %p351
        $region86: #{tpu_custom_call.1} parent=51 // pred_check_branch
          %796 = sbr.rel (%p794) target = $region88
        $region87: #{tpu_custom_call.1} parent=51 // pred_region
          %s797 = sand.u32 %s48, 1
          %s798 = scalar_lea.sflag [#allocation16], %s797
          %s799 = sand.u32 %s341, 1
          %s800 = scalar_lea.vmem [#allocation17], %s799
          %s802 = ssub.s32 16, 16
          %803 = vsyncadd %s798, %s802
          %s804 = smul.addr %s56, 16
          %s805 = scalar_lea.hbm %s11, %s804
          %s807 = sshll.u32 %s800, 4
          %s808 = int_to_ptr.vmem [resolvable:$true] %s807
          %810 = dma.hbm_to_vmem [thread:$0]  %s805, 16, %s808, %s798
        $region88: #{tpu_custom_call.1} parent=51 // pred_fallthru
          _
        // Predicated region
        $region89: #{tpu_custom_call.1} parent=51 // pred_check
          %p811 = pneg %p377
        $region90: #{tpu_custom_call.1} parent=51 // pred_check_branch
          %813 = sbr.rel (%p811) target = $region92
        $region91: #{tpu_custom_call.1} parent=51 // pred_region
          %s814 = sand.u32 %s48, 1
          %s815 = scalar_lea.sflag [#allocation19], %s814
          %s816 = sand.u32 %s367, 1
          %s817 = smul.addr %s816, 16
          %s818 = scalar_lea.vmem [#allocation18], %s817
          %s820 = ssub.s32 256, 256
          %821 = vsyncadd %s815, %s820
          %s822 = smul.addr %s56, 4
          %s823 = smul.addr %s822, 64
          %s824 = scalar_lea.hbm %s12, %s823
          %s825 = sshll.u32 %s818, 4
          %s826 = int_to_ptr.vmem [resolvable:$true] %s825
          %831 = dma.hbm_to_vmem [thread:$0]  %s824, 256, %s826, %s815, 64, 64, 4
        $region92: #{tpu_custom_call.1} parent=51 // pred_fallthru
          _
        // Predicated region
        $region93: #{tpu_custom_call.1} parent=51 // pred_check
          %p832 = pneg %p403
        $region94: #{tpu_custom_call.1} parent=51 // pred_check_branch
          %834 = sbr.rel (%p832) target = $region96
        $region95: #{tpu_custom_call.1} parent=51 // pred_region
          %s835 = sand.u32 %s48, 1
          %s836 = scalar_lea.sflag [#allocation19], %s835
          %s837 = sand.u32 %s393, 1
          %s838 = scalar_lea.vmem [#allocation20], %s837
          %s840 = ssub.s32 16, 16
          %841 = vsyncadd %s836, %s840
          %s842 = smul.addr %s56, 16
          %s843 = scalar_lea.hbm %s13, %s842
          %s845 = sshll.u32 %s838, 4
          %s846 = int_to_ptr.vmem [resolvable:$true] %s845
          %848 = dma.hbm_to_vmem [thread:$0]  %s843, 16, %s846, %s836
        $region96: #{tpu_custom_call.1} parent=51 // pred_fallthru
          _
        // Predicated region
        $region97: #{tpu_custom_call.1} parent=51 // pred_check
          %p849 = pneg %p429
        $region98: #{tpu_custom_call.1} parent=51 // pred_check_branch
          %851 = sbr.rel (%p849) target = $region100
        $region99: #{tpu_custom_call.1} parent=51 // pred_region
          %p852 = scmp.lt.s32.totalorder %s56, 1
          %s853 = scalar_select %p852, %s56, 1
          %s854 = smul.addr %s853, 8
          %s855 = smul.addr %s854, 4
          %s856 = scalar_lea.vmem %s14, %s855
        $region100: #{tpu_custom_call.1} parent=51 // pred_fallthru
          _
        // Predicated region
        $region101: #{tpu_custom_call.1} parent=51 // pred_check
          %p857 = pneg %p455
        $region102: #{tpu_custom_call.1} parent=51 // pred_check_branch
          %859 = sbr.rel (%p857) target = $region104
        $region103: #{tpu_custom_call.1} parent=51 // pred_region
          %s860 = sand.u32 %s445, 1
          %s861 = scalar_lea.sflag [#allocation22], %s860
          %s862 = sand.u32 %s445, 1
          %s863 = scalar_lea.vmem [#allocation21], %s862
          %s865 = ssub.s32 16, 16
          %866 = vsyncadd %s861, %s865
          %s867 = smul.addr %s56, 16
          %s868 = scalar_lea.hbm %s15, %s867
          %s870 = sshll.u32 %s863, 4
          %s871 = int_to_ptr.vmem [resolvable:$true] %s870
          %873 = dma.hbm_to_vmem [thread:$0]  %s868, 16, %s871, %s861
        $region104: #{tpu_custom_call.1} parent=51 // pred_fallthru
          _
      $region52: #{tpu_custom_call.1} parent=5 // pred_fallthru
        _
      %p874 = scmp.le.s32.totalorder 1, %s48
      %p875 = scmp.lt.s32.totalorder %s48, 5
      %p876 = pnand %p874, %p875
      %p877 = pneg %p876
      // Predicated region
      $region105: #{tpu_custom_call.1} parent=5 // pred_check
        _
      $region106: #{tpu_custom_call.1} parent=5 // pred_check_branch
        %879 = sbr.rel (%p876) target = $region108
      $region107: #{tpu_custom_call.1} parent=5 // pred_region
        %s880 = ssub.s32 %s48, 1
        // Predicated region
        $region109: #{tpu_custom_call.1} parent=107 // pred_check
          %p881 = pneg %p107
        $region110: #{tpu_custom_call.1} parent=107 // pred_check_branch
          %883 = sbr.rel (%p881) target = $region112
        $region111: #{tpu_custom_call.1} parent=107 // pred_region
          %884 = dma.done [#allocation4], 32
        $region112: #{tpu_custom_call.1} parent=107 // pred_fallthru
          _
        // Predicated region
        $region113: #{tpu_custom_call.1} parent=107 // pred_check
          %p885 = pneg %p128
        $region114: #{tpu_custom_call.1} parent=107 // pred_check_branch
          %887 = sbr.rel (%p885) target = $region116
        $region115: #{tpu_custom_call.1} parent=107 // pred_region
          %888 = dma.done [#allocation7], 256
        $region116: #{tpu_custom_call.1} parent=107 // pred_fallthru
          _
        // Predicated region
        $region117: #{tpu_custom_call.1} parent=107 // pred_check
          %p889 = pneg %p149
        $region118: #{tpu_custom_call.1} parent=107 // pred_check_branch
          %891 = sbr.rel (%p889) target = $region120
        $region119: #{tpu_custom_call.1} parent=107 // pred_region
          %892 = dma.done [#allocation7], 16
        $region120: #{tpu_custom_call.1} parent=107 // pred_fallthru
          _
        %s893 = sand.u32 %s53, 1
        %s894 = scalar_lea.sflag [#allocation10], %s893
        %s895 = sand.u32 %s162, 1
        %s896 = scalar_lea.vmem [#allocation9], %s895
        // Predicated region
        $region121: #{tpu_custom_call.1} parent=107 // pred_check
          %p897 = pneg %p175
        $region122: #{tpu_custom_call.1} parent=107 // pred_check_branch
          %899 = sbr.rel (%p897) target = $region124
        $region123: #{tpu_custom_call.1} parent=107 // pred_region
          %900 = dma.done %s894, 16
        $region124: #{tpu_custom_call.1} parent=107 // pred_fallthru
          _
        %s901 = sand.u32 %s53, 1
        %s902 = scalar_lea.sflag [#allocation10], %s901
        %s903 = sand.u32 %s188, 1
        %s904 = scalar_lea.vmem [#allocation11], %s903
        // Predicated region
        $region125: #{tpu_custom_call.1} parent=107 // pred_check
          %p905 = pneg %p201
        $region126: #{tpu_custom_call.1} parent=107 // pred_check_branch
          %907 = sbr.rel (%p905) target = $region128
        $region127: #{tpu_custom_call.1} parent=107 // pred_region
          %908 = dma.done %s902, 16
        $region128: #{tpu_custom_call.1} parent=107 // pred_fallthru
          _
        %s909 = sand.u32 %s53, 1
        %s910 = scalar_lea.sflag [#allocation13], %s909
        %s911 = sand.u32 %s240, 1
        %s912 = scalar_lea.vmem [#allocation12], %s911
        // Predicated region
        $region129: #{tpu_custom_call.1} parent=107 // pred_check
          %p913 = pneg %p253
        $region130: #{tpu_custom_call.1} parent=107 // pred_check_branch
          %915 = sbr.rel (%p913) target = $region132
        $region131: #{tpu_custom_call.1} parent=107 // pred_region
          %916 = dma.done %s910, 16
        $region132: #{tpu_custom_call.1} parent=107 // pred_fallthru
          _
        %s917 = sand.u32 %s53, 1
        %s918 = scalar_lea.sflag [#allocation13], %s917
        %s919 = sand.u32 %s292, 1
        %s920 = scalar_lea.vmem [#allocation14], %s919
        // Predicated region
        $region133: #{tpu_custom_call.1} parent=107 // pred_check
          %p921 = pneg %p305
        $region134: #{tpu_custom_call.1} parent=107 // pred_check_branch
          %923 = sbr.rel (%p921) target = $region136
        $region135: #{tpu_custom_call.1} parent=107 // pred_region
          %924 = dma.done %s918, 16
        $region136: #{tpu_custom_call.1} parent=107 // pred_fallthru
          _
        %s925 = sand.u32 %s53, 1
        %s926 = scalar_lea.sflag [#allocation16], %s925
        %s927 = sand.u32 %s318, 1
        %s928 = scalar_lea.vmem [#allocation15], %s927
        // Predicated region
        $region137: #{tpu_custom_call.1} parent=107 // pred_check
          %p929 = pneg %p331
        $region138: #{tpu_custom_call.1} parent=107 // pred_check_branch
          %931 = sbr.rel (%p929) target = $region140
        $region139: #{tpu_custom_call.1} parent=107 // pred_region
          %932 = dma.done %s926, 16
        $region140: #{tpu_custom_call.1} parent=107 // pred_fallthru
          _
        %s933 = sand.u32 %s53, 1
        %s934 = scalar_lea.sflag [#allocation16], %s933
        %s935 = sand.u32 %s344, 1
        %s936 = scalar_lea.vmem [#allocation17], %s935
        // Predicated region
        $region141: #{tpu_custom_call.1} parent=107 // pred_check
          %p937 = pneg %p357
        $region142: #{tpu_custom_call.1} parent=107 // pred_check_branch
          %939 = sbr.rel (%p937) target = $region144
        $region143: #{tpu_custom_call.1} parent=107 // pred_region
          %940 = dma.done %s934, 16
        $region144: #{tpu_custom_call.1} parent=107 // pred_fallthru
          _
        %s941 = sand.u32 %s53, 1
        %s942 = scalar_lea.sflag [#allocation19], %s941
        %s943 = sand.u32 %s370, 1
        %s944 = smul.addr %s943, 16
        %s945 = scalar_lea.vmem [#allocation18], %s944
        // Predicated region
        $region145: #{tpu_custom_call.1} parent=107 // pred_check
          %p946 = pneg %p383
        $region146: #{tpu_custom_call.1} parent=107 // pred_check_branch
          %948 = sbr.rel (%p946) target = $region148
        $region147: #{tpu_custom_call.1} parent=107 // pred_region
          %949 = dma.done %s942, 256
        $region148: #{tpu_custom_call.1} parent=107 // pred_fallthru
          _
        %s950 = sand.u32 %s53, 1
        %s951 = scalar_lea.sflag [#allocation19], %s950
        %s952 = sand.u32 %s396, 1
        %s953 = scalar_lea.vmem [#allocation20], %s952
        // Predicated region
        $region149: #{tpu_custom_call.1} parent=107 // pred_check
          %p954 = pneg %p409
        $region150: #{tpu_custom_call.1} parent=107 // pred_check_branch
          %956 = sbr.rel (%p954) target = $region152
        $region151: #{tpu_custom_call.1} parent=107 // pred_region
          %957 = dma.done %s951, 16
        $region152: #{tpu_custom_call.1} parent=107 // pred_fallthru
          _
        %s958 = sand.u32 %s448, 1
        %s959 = scalar_lea.sflag [#allocation22], %s958
        %s960 = sand.u32 %s448, 1
        %s961 = scalar_lea.vmem [#allocation21], %s960
        // Predicated region
        $region153: #{tpu_custom_call.1} parent=107 // pred_check
          %p962 = pneg %p461
        $region154: #{tpu_custom_call.1} parent=107 // pred_check_branch
          %964 = sbr.rel (%p962) target = $region156
        $region155: #{tpu_custom_call.1} parent=107 // pred_region
          %965 = dma.done %s959, 16
        $region156: #{tpu_custom_call.1} parent=107 // pred_fallthru
          _
        %p966 = scmp.lt.s32.totalorder %s57, 1
        %s967 = scalar_select %p966, %s57, 1
        %s968 = smul.addr %s967, 2
        %s969 = smul.addr %s968, 8
        %s970 = scalar_lea.vmem %s0, %s969
        %p971 = pneg %p86
        %p972 = pneg %p83
        %p973 = pneg %p107
        %p974 = pneg %p104
        %p975 = pneg %p128
        %p976 = pneg %p125
        %p977 = pneg %p149
        %p978 = pneg %p146
        %s979 = sand.u32 %s53, 1
        %s980 = scalar_lea.sflag [#allocation10], %s979
        %s981 = sand.u32 %s162, 1
        %s982 = scalar_lea.vmem [#allocation9], %s981
        %p983 = pneg %p175
        %p984 = pneg %p172
        %s985 = sand.u32 %s53, 1
        %s986 = scalar_lea.sflag [#allocation10], %s985
        %s987 = sand.u32 %s188, 1
        %s988 = scalar_lea.vmem [#allocation11], %s987
        %p989 = pneg %p201
        %p990 = pneg %p198
        %p991 = scmp.lt.s32.totalorder %s58, 1
        %s992 = scalar_select %p991, %s58, 1
        %s993 = smul.addr %s992, 4
        %s994 = smul.addr %s993, 4
        %s995 = scalar_lea.vmem %s6, %s994
        %p996 = pneg %p227
        %p997 = pneg %p224
        %s998 = sand.u32 %s53, 1
        %s999 = scalar_lea.sflag [#allocation13], %s998
        %s1000 = sand.u32 %s240, 1
        %s1001 = scalar_lea.vmem [#allocation12], %s1000
        %p1002 = pneg %p253
        %p1003 = pneg %p250
        %p1004 = scmp.lt.s32.totalorder %s58, 1
        %s1005 = scalar_select %p1004, %s58, 1
        %s1006 = smul.addr %s1005, 4
        %s1007 = smul.addr %s1006, 4
        %s1008 = scalar_lea.vmem %s8, %s1007
        %p1009 = pneg %p279
        %p1010 = pneg %p276
        %s1011 = sand.u32 %s53, 1
        %s1012 = scalar_lea.sflag [#allocation13], %s1011
        %s1013 = sand.u32 %s292, 1
        %s1014 = scalar_lea.vmem [#allocation14], %s1013
        %p1015 = pneg %p305
        %p1016 = pneg %p302
        %s1017 = sand.u32 %s53, 1
        %s1018 = scalar_lea.sflag [#allocation16], %s1017
        %s1019 = sand.u32 %s318, 1
        %s1020 = scalar_lea.vmem [#allocation15], %s1019
        %p1021 = pneg %p331
        %p1022 = pneg %p328
        %s1023 = sand.u32 %s53, 1
        %s1024 = scalar_lea.sflag [#allocation16], %s1023
        %s1025 = sand.u32 %s344, 1
        %s1026 = scalar_lea.vmem [#allocation17], %s1025
        %p1027 = pneg %p357
        %p1028 = pneg %p354
        %s1029 = sand.u32 %s53, 1
        %s1030 = scalar_lea.sflag [#allocation19], %s1029
        %s1031 = sand.u32 %s370, 1
        %s1032 = smul.addr %s1031, 16
        %s1033 = scalar_lea.vmem [#allocation18], %s1032
        %p1034 = pneg %p383
        %p1035 = pneg %p380
        %s1036 = sand.u32 %s53, 1
        %s1037 = scalar_lea.sflag [#allocation19], %s1036
        %s1038 = sand.u32 %s396, 1
        %s1039 = scalar_lea.vmem [#allocation20], %s1038
        %p1040 = pneg %p409
        %p1041 = pneg %p406
        %p1042 = scmp.lt.s32.totalorder %s58, 1
        %s1043 = scalar_select %p1042, %s58, 1
        %s1044 = smul.addr %s1043, 8
        %s1045 = smul.addr %s1044, 4
        %s1046 = scalar_lea.vmem %s14, %s1045
        %p1047 = pneg %p435
        %p1048 = pneg %p432
        %s1049 = sand.u32 %s448, 1
        %s1050 = scalar_lea.sflag [#allocation22], %s1049
        %s1051 = sand.u32 %s448, 1
        %s1052 = scalar_lea.vmem [#allocation21], %s1051
        %p1053 = pneg %p461
        %p1054 = pneg %p458
        %p1055 = pneg %p482
        %p1056 = pneg %p479
        %p1057 = pneg %p503
        %p1058 = pneg %p500
        %p1059 = pneg %p524
        %p1060 = pneg %p521
        %p1061 = pneg %p545
        %p1062 = pneg %p542
        %p1063 = pneg %p566
        %p1064 = pneg %p563
        %p1065 = pneg %p587
        %p1066 = pneg %p584
        %p1067 = pneg %p613
        %p1068 = pneg %p610
        %s1069 = sand.u32 %s600, 1
        %s1070 = scalar_lea.sflag [#allocation5], %s1069
        %s1071 = sand.u32 %s600, 1
        %s1072 = smul.addr %s1071, 2
        %s1073 = scalar_lea.vmem [#allocation23], %s1072
        %p1074 = scmp.lt.s32.totalorder %s57, 1
        %s1075 = scalar_select %p1074, %s57, 1
        %s1076 = smul.addr %s1075, 2
        %s1077 = smul.addr %s1076, 8
        %s1078 = scalar_lea.vmem %s0, %s1077
        %p1079 = scmp.lt.s32.totalorder %s58, 1
        %s1080 = scalar_select %p1079, %s58, 1
        %s1081 = smul.addr %s1080, 4
        %s1082 = smul.addr %s1081, 4
        %s1083 = scalar_lea.vmem %s6, %s1082
        %p1084 = scmp.lt.s32.totalorder %s58, 1
        %s1085 = scalar_select %p1084, %s58, 1
        %s1086 = smul.addr %s1085, 4
        %s1087 = smul.addr %s1086, 4
        %s1088 = scalar_lea.vmem %s8, %s1087
        %p1089 = scmp.lt.s32.totalorder %s58, 1
        %s1090 = scalar_select %p1089, %s58, 1
        %s1091 = smul.addr %s1090, 8
        %s1092 = smul.addr %s1091, 4
        %s1093 = scalar_lea.vmem %s14, %s1092
        %p1095 = scmp.eq.s32.totalorder %s58, 0
        // Predicated region
        $region157: #{tpu_custom_call.1} parent=107 // pred_check
          %p1096 = pneg %p1095
        $region158: #{tpu_custom_call.1} parent=107 // pred_check_branch
          %1098 = sbr.rel (%p1096) target = $region160
        $region159: #{tpu_custom_call.1} parent=107 // pred_region
          %v1099 = vld [vmem:[%s1078] sm:$0xff]
          %v1100 = vld [vmem:[%s1078 + $0x8] sm:$0xff]
          %v1101 = vpack.c.bf16 %v1100, %v1099
          %v1102 = vld [vmem:[#allocation6] sm:$0xf]
          %v1103 = vld [vmem:[#allocation6 + $0x4] sm:$0xf]
          %v1104 = vld [vmem:[#allocation6 + $0x8] sm:$0xf]
          %v1105 = vld [vmem:[#allocation6 + $0xc] sm:$0xf]
          %v1106 = vld [vmem:[#allocation8] sm:$0x1]
          %v1108 = vlaneseq
          %v1109 = vshrl.u32 %v1108, 7
          %v1110 = vsub.s32 0, %v1109
          %v1111 = vrot.slane %v1106, %v1110
          %v1117 = vunpack.c.l.b16 %v1102
          %v1118 = vunpack.c.l.b16 %v1103
          %v1119 = vunpack.c.l.b16 %v1104
          %v1120 = vunpack.c.l.b16 %v1105
          %v1121 = vpack.c.b16 %v1118, %v1117
          %v1122 = vpack.c.b16 %v1120, %v1119
          %vm1125 = vcmask 261120
          %v1127 = vsel %vm1125, %v1101, 0
          %1129 = vmatprep.subr.bf16.mxu0 0
          %1130 = vmatpush1.bf16.msra.mxu0 0
          %1131 = vmatprep.subr.bf16.mxu0 0
          %1132 = vmatpush1.bf16.msra.mxu0 0
          %1133 = vmatprep.subr.bf16.mxu0 0
          %1134 = vmatpush1.bf16.msra.mxu0 0
          %1135 = vmatprep.subr.bf16.mxu0 0
          %1136 = vmatpush1.bf16.msra.mxu0 0
          %1137 = vmatprep.subr.bf16.mxu0 0
          %1138 = vmatpush1.bf16.msra.mxu0 0
          %1139 = vmatprep.subr.bf16.mxu0 0
          %1140 = vmatpush1.bf16.msra.mxu0 0
          %1141 = vmatprep.subr.bf16.mxu0 0
          %1142 = vmatpush1.bf16.msra.mxu0 %v1122
          %1143 = vmatprep.subr.bf16.mxu0 0
          %1144 = vmatpush1.bf16.msra.mxu0 %v1121
          %1145 = vmatprep.subr.bf16.mxu0 0
          %1146 = vmatpush2.bf16.msra.mxu0 0
          %1147 = vmatprep.subr.bf16.mxu0 0
          %1148 = vmatpush2.bf16.msra.mxu0 0
          %1149 = vmatprep.subr.bf16.mxu0 0
          %1150 = vmatpush2.bf16.msra.mxu0 0
          %1151 = vmatprep.subr.bf16.mxu0 0
          %1152 = vmatpush2.bf16.msra.mxu0 0
          %1153 = vmatprep.subr.bf16.mxu0 0
          %1154 = vmatpush2.bf16.msra.mxu0 0
          %1155 = vmatprep.subr.bf16.mxu0 0
          %1156 = vmatpush2.bf16.msra.mxu0 0
          %1157 = vmatprep.subr.bf16.mxu0 0
          %1158 = vmatpush2.bf16.msra.mxu0 0
          %1159 = vmatprep.subr.bf16.mxu0 0
          %1160 = vmatpush2.bf16.msra.mxu0 0
          %1161 = vmatprep.mubr.bf16.mxu0 0
          %1162 = vmatmul.mubr.bf16.gmra.mxu0 %v1127
          %v1163 = vpop.f32.mrf.mxu0
          %v1164 = vadd.f32 %v1111, %v1163
          %v1165 = vpop.f32.mrf.mxu0
          %v1166 = vpop.f32.mrf.mxu0
          %v1167 = vadd.f32 %v1111, %v1166
          %v1168 = vpop.f32.mrf.mxu0
          %1169 = vdwg.mxu0
          %1170 = vst.msk [vmem:[#allocation2] sm:$0xff] %vm1125, %v1164
          %1171 = vst.msk [vmem:[#allocation2 + $0x8] sm:$0xff] %vm1125, %v1167
          %v1172 = vld [vmem:[#allocation3] sm:$0x3]
          %vm1173 = vcmask 254976
          %1174 = vst.msk [vmem:[#allocation2 + $0x10] sm:$0x3] %vm1173, %v1172
        $region160: #{tpu_custom_call.1} parent=107 // pred_fallthru
          _
        %v1175 = vld [vmem:[#allocation2] sm:$0xff]
        %v1176 = vld [vmem:[#allocation2 + $0x8] sm:$0xff]
        %v1177 = vld [vmem:[#allocation2 + $0x10] sm:$0x3]
        %v1178 = vld [vmem:[%s896] sm:$0x1]
        %v1179 = vld [vmem:[%s904] sm:$0x1]
        %vm1180 = vcmask 261120
        %v1181 = vsel %vm1180, %v1175, 0.0
        %1182 = vadd.xlane.f32.xlu0 %v1181
        %v1183 = vpop.xlane.xlu0 %1182
        %v1184 = vsel %vm1180, %v1176, 0.0
        %1185 = vadd.xlane.f32.xlu0 %v1184
        %v1186 = vpop.xlane.xlu0 %1185
        %vm1187 = vcmask 254976
        %v1188 = vsel %vm1187, %v1177, 0.0
        %1189 = vadd.xlane.f32.xlu0 %v1188
        %v1190 = vpop.xlane.xlu0 %1189
        %v1191 = vrcp.pop 32.0
        %v1192 = vmul.f32 %v1183, %v1191
        %v1193 = vmul.f32 %v1186, %v1191
        %v1194 = vmul.f32 %v1190, %v1191
        %v1195 = vsub.f32 %v1175, %v1192
        %v1196 = vsub.f32 %v1176, %v1193
        %v1197 = vsub.f32 %v1177, %v1194
        %v1198 = vmul.f32 %v1195, %v1195
        %v1199 = vmul.f32 %v1196, %v1196
        %v1200 = vmul.f32 %v1197, %v1197
        %v1201 = vsel %vm1180, %v1198, 0.0
        %1202 = vadd.xlane.f32.xlu0 %v1201
        %v1203 = vpop.xlane.xlu0 %1202
        %v1204 = vsel %vm1180, %v1199, 0.0
        %1205 = vadd.xlane.f32.xlu0 %v1204
        %v1206 = vpop.xlane.xlu0 %1205
        %v1207 = vsel %vm1187, %v1200, 0.0
        %1208 = vadd.xlane.f32.xlu0 %v1207
        %v1209 = vpop.xlane.xlu0 %1208
        %v1210 = vmul.f32 %v1203, %v1191
        %v1211 = vmul.f32 %v1206, %v1191
        %v1212 = vmul.f32 %v1209, %v1191
        %v1213 = vadd.f32 %v1210, 1e-05
        %v1214 = vadd.f32 %v1211, 1e-05
        %v1215 = vadd.f32 %v1212, 1e-05
        %v1216 = vrsqrt.pop %v1213
        %v1217 = vrsqrt.pop %v1214
        %v1218 = vrsqrt.pop %v1215
        %v1219 = vmul.f32 %v1195, %v1216
        %v1220 = vmul.f32 %v1196, %v1217
        %v1221 = vmul.f32 %v1197, %v1218
        %v1223 = vlaneseq
        %v1224 = vshrl.u32 %v1223, 7
        %v1225 = vsub.s32 0, %v1224
        %v1226 = vrot.slane %v1178, %v1225
        %v1228 = vmul.f32 %v1219, %v1226
        %v1229 = vmul.f32 %v1220, %v1226
        %v1230 = vmul.f32 %v1221, %v1226
        %v1232 = vlaneseq
        %v1233 = vshrl.u32 %v1232, 7
        %v1234 = vsub.s32 0, %v1233
        %v1235 = vrot.slane %v1179, %v1234
        %v1237 = vadd.f32 %v1228, %v1235
        %v1238 = vadd.f32 %v1229, %v1235
        %v1239 = vadd.f32 %v1230, %v1235
        %v1240 = vpack.c.bf16 %v1238, %v1237
        %v1241 = vpack.c.bf16 %v1239, %v1239
        %v1242 = vld [vmem:[%s1083] sm:$0xf]
        %v1243 = vld [vmem:[%s1083 + $0x4] sm:$0xf]
        %v1244 = vld [vmem:[%s1083 + $0x8] sm:$0xf]
        %v1245 = vld [vmem:[%s1083 + $0xc] sm:$0xf]
        %v1246 = vld [vmem:[%s912] sm:$0x1]
        %v1248 = vlaneseq
        %v1249 = vshrl.u32 %v1248, 7
        %v1250 = vsub.s32 0, %v1249
        %v1251 = vrot.slane %v1246, %v1250
        %v1257 = vunpack.c.l.b16 %v1242
        %v1258 = vunpack.c.l.b16 %v1243
        %v1259 = vunpack.c.l.b16 %v1244
        %v1260 = vunpack.c.l.b16 %v1245
        %v1261 = vpack.c.b16 %v1258, %v1257
        %v1262 = vpack.c.b16 %v1260, %v1259
        %v1266 = vsel %vm1180, %v1240, 0
        %v1269 = vsel %vm1180, %v1241, 0
        %1271 = vmatprep.subr.bf16.mxu0 0
        %1272 = vmatpush1.bf16.msra.mxu0 0
        %1273 = vmatprep.subr.bf16.mxu0 0
        %1274 = vmatpush1.bf16.msra.mxu0 0
        %1275 = vmatprep.subr.bf16.mxu0 0
        %1276 = vmatpush1.bf16.msra.mxu0 0
        %1277 = vmatprep.subr.bf16.mxu0 0
        %1278 = vmatpush1.bf16.msra.mxu0 0
        %1279 = vmatprep.subr.bf16.mxu0 0
        %1280 = vmatpush1.bf16.msra.mxu0 0
        %1281 = vmatprep.subr.bf16.mxu0 0
        %1282 = vmatpush1.bf16.msra.mxu0 0
        %1283 = vmatprep.subr.bf16.mxu0 0
        %1284 = vmatpush1.bf16.msra.mxu0 %v1262
        %1285 = vmatprep.subr.bf16.mxu0 0
        %1286 = vmatpush1.bf16.msra.mxu0 %v1261
        %1287 = vmatprep.subr.bf16.mxu0 0
        %1288 = vmatpush2.bf16.msra.mxu0 0
        %1289 = vmatprep.subr.bf16.mxu0 0
        %1290 = vmatpush2.bf16.msra.mxu0 0
        %1291 = vmatprep.subr.bf16.mxu0 0
        %1292 = vmatpush2.bf16.msra.mxu0 0
        %1293 = vmatprep.subr.bf16.mxu0 0
        %1294 = vmatpush2.bf16.msra.mxu0 0
        %1295 = vmatprep.subr.bf16.mxu0 0
        %1296 = vmatpush2.bf16.msra.mxu0 0
        %1297 = vmatprep.subr.bf16.mxu0 0
        %1298 = vmatpush2.bf16.msra.mxu0 0
        %1299 = vmatprep.subr.bf16.mxu0 0
        %1300 = vmatpush2.bf16.msra.mxu0 0
        %1301 = vmatprep.subr.bf16.mxu0 0
        %1302 = vmatpush2.bf16.msra.mxu0 0
        %1303 = vmatprep.mubr.bf16.mxu0 0
        %1304 = vmatmul.mubr.bf16.gmra.mxu0 %v1266
        %v1305 = vpop.f32.mrf.mxu0
        %v1306 = vadd.f32 %v1251, %v1305
        %v1307 = vpop.f32.mrf.mxu0
        %v1308 = vpop.f32.mrf.mxu0
        %v1309 = vadd.f32 %v1251, %v1308
        %v1310 = vpop.f32.mrf.mxu0
        %1311 = vmatprep.mubr.bf16.mxu0 0
        %1312 = vmatmul.mubr.bf16.gmra.mxu0 %v1269
        %v1313 = vpop.f32.mrf.mxu0
        %v1314 = vadd.f32 %v1251, %v1313
        %v1315 = vpop.f32.mrf.mxu0
        %v1316 = vpop.f32.mrf.mxu0
        %v1317 = vpop.f32.mrf.mxu0
        %1318 = vdwg.mxu0
        %v1319 = vld [vmem:[%s1088] sm:$0xf]
        %v1320 = vld [vmem:[%s1088 + $0x4] sm:$0xf]
        %v1321 = vld [vmem:[%s1088 + $0x8] sm:$0xf]
        %v1322 = vld [vmem:[%s1088 + $0xc] sm:$0xf]
        %v1323 = vpack.c.bf16 %v1309, %v1306
        %v1324 = vpack.c.bf16 %v1314, %v1314
        %1327 = vrot.lane.b32.xlu0 %v1323, 96
        %v1328 = vpop.permute.xlu0 %1327
        %1329 = vrot.lane.b32.xlu0 %v1324, 96
        %v1330 = vpop.permute.xlu0 %1329
        %vm1331 = vcmask 130048
        %v1333 = vsel %vm1331, %v1323, 0
        %v1336 = vsel %vm1331, %v1324, 0
        %v1339 = vsel %vm1331, %v1328, 0
        %v1342 = vsel %vm1331, %v1330, 0
        %1344 = vmatprep.subr.bf16.mxu0 0
        %1345 = vmatpush1.bf16.xpose.msra.mxu0 0
        %1346 = vmatprep.subr.bf16.mxu0 0
        %1347 = vmatpush1.bf16.xpose.msra.mxu0 0
        %1348 = vmatprep.subr.bf16.mxu0 0
        %1349 = vmatpush1.bf16.xpose.msra.mxu0 0
        %1350 = vmatprep.subr.bf16.mxu0 0
        %1351 = vmatpush1.bf16.xpose.msra.mxu0 0
        %1352 = vmatprep.subr.bf16.mxu0 0
        %1353 = vmatpush1.bf16.xpose.msra.mxu0 0
        %1354 = vmatprep.subr.bf16.mxu0 0
        %1355 = vmatpush1.bf16.xpose.msra.mxu0 0
        %1356 = vmatprep.subr.bf16.mxu0 0
        %1357 = vmatpush1.bf16.xpose.msra.mxu0 %v1342
        %1358 = vmatprep.subr.bf16.mxu0 0
        %1359 = vmatpush1.bf16.xpose.msra.mxu0 %v1339
        %1360 = vmatprep.subr.bf16.mxu0 0
        %1361 = vmatpush2.bf16.xpose.msra.mxu0 0
        %1362 = vmatprep.subr.bf16.mxu0 0
        %1363 = vmatpush2.bf16.xpose.msra.mxu0 0
        %1364 = vmatprep.subr.bf16.mxu0 0
        %1365 = vmatpush2.bf16.xpose.msra.mxu0 0
        %1366 = vmatprep.subr.bf16.mxu0 0
        %1367 = vmatpush2.bf16.xpose.msra.mxu0 0
        %1368 = vmatprep.subr.bf16.mxu0 0
        %1369 = vmatpush2.bf16.xpose.msra.mxu0 0
        %1370 = vmatprep.subr.bf16.mxu0 0
        %1371 = vmatpush2.bf16.xpose.msra.mxu0 0
        %1372 = vmatprep.subr.bf16.mxu0 0
        %1373 = vmatpush2.bf16.xpose.msra.mxu0 0
        %1374 = vmatprep.subr.bf16.mxu0 0
        %1375 = vmatpush2.bf16.xpose.msra.mxu0 0
        %1376 = vmatprep.mubr.bf16.mxu0 0
        %1377 = vmatmul.mubr.bf16.gmra.mxu0 %v1333
        %v1378 = vpop.f32.mrf.mxu0
        %v1379 = vadd.f32 0.0, %v1378
        %v1380 = vpop.f32.mrf.mxu0
        %v1381 = vpop.f32.mrf.mxu0
        %v1382 = vadd.f32 0.0, %v1381
        %v1383 = vpop.f32.mrf.mxu0
        %1384 = vmatprep.mubr.bf16.mxu0 0
        %1385 = vmatmul.mubr.bf16.gmra.mxu0 %v1336
        %v1386 = vpop.f32.mrf.mxu0
        %v1387 = vadd.f32 0.0, %v1386
        %v1388 = vpop.f32.mrf.mxu0
        %v1389 = vpop.f32.mrf.mxu0
        %v1390 = vpop.f32.mrf.mxu0
        %1391 = vdwg.mxu0
        %v1392 = vmul.f32 %v1379, 0.25
        %v1393 = vmul.f32 %v1382, 0.25
        %v1394 = vmul.f32 %v1387, 0.25
        %vm1395 = vcmask 146432
        %v1396 = vsel %vm1395, %v1392, -inf
        %1397 = vmax.xlane.f32.xlu0 %v1396
        %v1398 = vpop.xlane.xlu0 %1397
        %v1399 = vsel %vm1395, %v1393, -inf
        %1400 = vmax.xlane.f32.xlu0 %v1399
        %v1401 = vpop.xlane.xlu0 %1400
        %vm1402 = vcmask 140288
        %v1403 = vsel %vm1402, %v1394, -inf
        %1404 = vmax.xlane.f32.xlu0 %v1403
        %v1405 = vpop.xlane.xlu0 %1404
        %v1406 = vsub.f32 %v1392, %v1398
        %v1407 = vsub.f32 %v1393, %v1401
        %v1408 = vsub.f32 %v1394, %v1405
        %v1409 = vmul.f32 %v1406, 1.442695
        %v1410 = vpow.pop %v1409
        %v1411 = vmul.f32 %v1407, 1.442695
        %v1412 = vpow.pop %v1411
        %v1413 = vmul.f32 %v1408, 1.442695
        %v1414 = vpow.pop %v1413
        %v1415 = vsel %vm1395, %v1410, 0.0
        %1416 = vadd.xlane.f32.xlu0 %v1415
        %v1417 = vpop.xlane.xlu0 %1416
        %v1418 = vsel %vm1395, %v1412, 0.0
        %1419 = vadd.xlane.f32.xlu0 %v1418
        %v1420 = vpop.xlane.xlu0 %1419
        %v1421 = vsel %vm1402, %v1414, 0.0
        %1422 = vadd.xlane.f32.xlu0 %v1421
        %v1423 = vpop.xlane.xlu0 %1422
        %v1424 = vrcp.pop %v1417
        %v1425 = vrcp.pop %v1420
        %v1426 = vrcp.pop %v1423
        %v1427 = vmul.f32 %v1410, %v1424
        %v1428 = vmul.f32 %v1412, %v1425
        %v1429 = vmul.f32 %v1414, %v1426
        %v1430 = vpack.c.bf16 %v1428, %v1427
        %v1431 = vpack.c.bf16 %v1429, %v1429
        %1432 = vrot.lane.b32.xlu0 %v1323, 64
        %v1433 = vpop.permute.xlu0 %1432
        %1434 = vrot.lane.b32.xlu0 %v1324, 64
        %v1435 = vpop.permute.xlu0 %1434
        %v1438 = vsel %vm1395, %v1430, 0
        %v1441 = vsel %vm1395, %v1431, 0
        %vm1443 = vcmask 1040384
        %v1445 = vsel %vm1443, %v1435, 0
        %1447 = vmatprep.subr.bf16.mxu0 0
        %1448 = vmatpush1.bf16.msra.mxu0 0
        %1449 = vmatprep.subr.bf16.mxu0 0
        %1450 = vmatpush1.bf16.msra.mxu0 0
        %1451 = vmatprep.subr.bf16.mxu0 0
        %1452 = vmatpush1.bf16.msra.mxu0 0
        %1453 = vmatprep.subr.bf16.mxu0 0
        %1454 = vmatpush1.bf16.msra.mxu0 0
        %1455 = vmatprep.subr.bf16.mxu0 0
        %1456 = vmatpush1.bf16.msra.mxu0 0
        %1457 = vmatprep.subr.bf16.mxu0 0
        %1458 = vmatpush1.bf16.msra.mxu0 0
        %1459 = vmatprep.subr.bf16.mxu0 0
        %1460 = vmatpush1.bf16.msra.mxu0 %v1445
        %1461 = vmatprep.subr.bf16.mxu0 0
        %1462 = vmatpush1.bf16.msra.mxu0 %v1433
        %1463 = vmatprep.subr.bf16.mxu0 0
        %1464 = vmatpush2.bf16.msra.mxu0 0
        %1465 = vmatprep.subr.bf16.mxu0 0
        %1466 = vmatpush2.bf16.msra.mxu0 0
        %1467 = vmatprep.subr.bf16.mxu0 0
        %1468 = vmatpush2.bf16.msra.mxu0 0
        %1469 = vmatprep.subr.bf16.mxu0 0
        %1470 = vmatpush2.bf16.msra.mxu0 0
        %1471 = vmatprep.subr.bf16.mxu0 0
        %1472 = vmatpush2.bf16.msra.mxu0 0
        %1473 = vmatprep.subr.bf16.mxu0 0
        %1474 = vmatpush2.bf16.msra.mxu0 0
        %1475 = vmatprep.subr.bf16.mxu0 0
        %1476 = vmatpush2.bf16.msra.mxu0 0
        %1477 = vmatprep.subr.bf16.mxu0 0
        %1478 = vmatpush2.bf16.msra.mxu0 0
        %1479 = vmatprep.mubr.bf16.mxu0 0
        %1480 = vmatmul.mubr.bf16.gmra.mxu0 %v1438
        %v1481 = vpop.f32.mrf.mxu0
        %v1482 = vadd.f32 0.0, %v1481
        %v1483 = vpop.f32.mrf.mxu0
        %v1484 = vpop.f32.mrf.mxu0
        %v1485 = vadd.f32 0.0, %v1484
        %v1486 = vpop.f32.mrf.mxu0
        %1487 = vmatprep.mubr.bf16.mxu0 0
        %1488 = vmatmul.mubr.bf16.gmra.mxu0 %v1441
        %v1489 = vpop.f32.mrf.mxu0
        %v1490 = vadd.f32 0.0, %v1489
        %v1491 = vpop.f32.mrf.mxu0
        %v1492 = vpop.f32.mrf.mxu0
        %v1493 = vpop.f32.mrf.mxu0
        %1494 = vdwg.mxu0
        %v1495 = vpack.c.bf16 %v1485, %v1482
        %v1496 = vpack.c.bf16 %v1490, %v1490
        %1497 = vrot.lane.b32.xlu0 %v1323, 112
        %v1498 = vpop.permute.xlu0 %1497
        %1499 = vrot.lane.b32.xlu0 %v1324, 112
        %v1500 = vpop.permute.xlu0 %1499
        %1501 = vrot.lane.b32.xlu0 %v1323, 80
        %v1502 = vpop.permute.xlu0 %1501
        %1503 = vrot.lane.b32.xlu0 %v1324, 80
        %v1504 = vpop.permute.xlu0 %1503
        %v1506 = vsel %vm1331, %v1498, 0
        %v1509 = vsel %vm1331, %v1500, 0
        %v1512 = vsel %vm1331, %v1502, 0
        %v1515 = vsel %vm1331, %v1504, 0
        %1517 = vmatprep.subr.bf16.mxu0 0
        %1518 = vmatpush1.bf16.xpose.msra.mxu0 0
        %1519 = vmatprep.subr.bf16.mxu0 0
        %1520 = vmatpush1.bf16.xpose.msra.mxu0 0
        %1521 = vmatprep.subr.bf16.mxu0 0
        %1522 = vmatpush1.bf16.xpose.msra.mxu0 0
        %1523 = vmatprep.subr.bf16.mxu0 0
        %1524 = vmatpush1.bf16.xpose.msra.mxu0 0
        %1525 = vmatprep.subr.bf16.mxu0 0
        %1526 = vmatpush1.bf16.xpose.msra.mxu0 0
        %1527 = vmatprep.subr.bf16.mxu0 0
        %1528 = vmatpush1.bf16.xpose.msra.mxu0 0
        %1529 = vmatprep.subr.bf16.mxu0 0
        %1530 = vmatpush1.bf16.xpose.msra.mxu0 %v1515
        %1531 = vmatprep.subr.bf16.mxu0 0
        %1532 = vmatpush1.bf16.xpose.msra.mxu0 %v1512
        %1533 = vmatprep.subr.bf16.mxu0 0
        %1534 = vmatpush2.bf16.xpose.msra.mxu0 0
        %1535 = vmatprep.subr.bf16.mxu0 0
        %1536 = vmatpush2.bf16.xpose.msra.mxu0 0
        %1537 = vmatprep.subr.bf16.mxu0 0
        %1538 = vmatpush2.bf16.xpose.msra.mxu0 0
        %1539 = vmatprep.subr.bf16.mxu0 0
        %1540 = vmatpush2.bf16.xpose.msra.mxu0 0
        %1541 = vmatprep.subr.bf16.mxu0 0
        %1542 = vmatpush2.bf16.xpose.msra.mxu0 0
        %1543 = vmatprep.subr.bf16.mxu0 0
        %1544 = vmatpush2.bf16.xpose.msra.mxu0 0
        %1545 = vmatprep.subr.bf16.mxu0 0
        %1546 = vmatpush2.bf16.xpose.msra.mxu0 0
        %1547 = vmatprep.subr.bf16.mxu0 0
        %1548 = vmatpush2.bf16.xpose.msra.mxu0 0
        %1549 = vmatprep.mubr.bf16.mxu0 0
        %1550 = vmatmul.mubr.bf16.gmra.mxu0 %v1506
        %v1551 = vpop.f32.mrf.mxu0
        %v1552 = vadd.f32 0.0, %v1551
        %v1553 = vpop.f32.mrf.mxu0
        %v1554 = vpop.f32.mrf.mxu0
        %v1555 = vadd.f32 0.0, %v1554
        %v1556 = vpop.f32.mrf.mxu0
        %1557 = vmatprep.mubr.bf16.mxu0 0
        %1558 = vmatmul.mubr.bf16.gmra.mxu0 %v1509
        %v1559 = vpop.f32.mrf.mxu0
        %v1560 = vadd.f32 0.0, %v1559
        %v1561 = vpop.f32.mrf.mxu0
        %v1562 = vpop.f32.mrf.mxu0
        %v1563 = vpop.f32.mrf.mxu0
        %1564 = vdwg.mxu0
        %v1565 = vmul.f32 %v1552, 0.25
        %v1566 = vmul.f32 %v1555, 0.25
        %v1567 = vmul.f32 %v1560, 0.25
        %v1568 = vsel %vm1395, %v1565, -inf
        %1569 = vmax.xlane.f32.xlu0 %v1568
        %v1570 = vpop.xlane.xlu0 %1569
        %v1571 = vsel %vm1395, %v1566, -inf
        %1572 = vmax.xlane.f32.xlu0 %v1571
        %v1573 = vpop.xlane.xlu0 %1572
        %v1574 = vsel %vm1402, %v1567, -inf
        %1575 = vmax.xlane.f32.xlu0 %v1574
        %v1576 = vpop.xlane.xlu0 %1575
        %v1577 = vsub.f32 %v1565, %v1570
        %v1578 = vsub.f32 %v1566, %v1573
        %v1579 = vsub.f32 %v1567, %v1576
        %v1580 = vmul.f32 %v1577, 1.442695
        %v1581 = vpow.pop %v1580
        %v1582 = vmul.f32 %v1578, 1.442695
        %v1583 = vpow.pop %v1582
        %v1584 = vmul.f32 %v1579, 1.442695
        %v1585 = vpow.pop %v1584
        %v1586 = vsel %vm1395, %v1581, 0.0
        %1587 = vadd.xlane.f32.xlu0 %v1586
        %v1588 = vpop.xlane.xlu0 %1587
        %v1589 = vsel %vm1395, %v1583, 0.0
        %1590 = vadd.xlane.f32.xlu0 %v1589
        %v1591 = vpop.xlane.xlu0 %1590
        %v1592 = vsel %vm1402, %v1585, 0.0
        %1593 = vadd.xlane.f32.xlu0 %v1592
        %v1594 = vpop.xlane.xlu0 %1593
        %v1595 = vrcp.pop %v1588
        %v1596 = vrcp.pop %v1591
        %v1597 = vrcp.pop %v1594
        %v1598 = vmul.f32 %v1581, %v1595
        %v1599 = vmul.f32 %v1583, %v1596
        %v1600 = vmul.f32 %v1585, %v1597
        %v1601 = vpack.c.bf16 %v1599, %v1598
        %v1602 = vpack.c.bf16 %v1600, %v1600
        %1603 = vrot.lane.b32.xlu0 %v1323, 48
        %v1604 = vpop.permute.xlu0 %1603
        %1605 = vrot.lane.b32.xlu0 %v1324, 48
        %v1606 = vpop.permute.xlu0 %1605
        %v1609 = vsel %vm1395, %v1601, 0
        %v1612 = vsel %vm1395, %v1602, 0
        %v1615 = vsel %vm1443, %v1606, 0
        %1617 = vmatprep.subr.bf16.mxu0 0
        %1618 = vmatpush1.bf16.msra.mxu0 0
        %1619 = vmatprep.subr.bf16.mxu0 0
        %1620 = vmatpush1.bf16.msra.mxu0 0
        %1621 = vmatprep.subr.bf16.mxu0 0
        %1622 = vmatpush1.bf16.msra.mxu0 0
        %1623 = vmatprep.subr.bf16.mxu0 0
        %1624 = vmatpush1.bf16.msra.mxu0 0
        %1625 = vmatprep.subr.bf16.mxu0 0
        %1626 = vmatpush1.bf16.msra.mxu0 0
        %1627 = vmatprep.subr.bf16.mxu0 0
        %1628 = vmatpush1.bf16.msra.mxu0 0
        %1629 = vmatprep.subr.bf16.mxu0 0
        %1630 = vmatpush1.bf16.msra.mxu0 %v1615
        %1631 = vmatprep.subr.bf16.mxu0 0
        %1632 = vmatpush1.bf16.msra.mxu0 %v1604
        %1633 = vmatprep.subr.bf16.mxu0 0
        %1634 = vmatpush2.bf16.msra.mxu0 0
        %1635 = vmatprep.subr.bf16.mxu0 0
        %1636 = vmatpush2.bf16.msra.mxu0 0
        %1637 = vmatprep.subr.bf16.mxu0 0
        %1638 = vmatpush2.bf16.msra.mxu0 0
        %1639 = vmatprep.subr.bf16.mxu0 0
        %1640 = vmatpush2.bf16.msra.mxu0 0
        %1641 = vmatprep.subr.bf16.mxu0 0
        %1642 = vmatpush2.bf16.msra.mxu0 0
        %1643 = vmatprep.subr.bf16.mxu0 0
        %1644 = vmatpush2.bf16.msra.mxu0 0
        %1645 = vmatprep.subr.bf16.mxu0 0
        %1646 = vmatpush2.bf16.msra.mxu0 0
        %1647 = vmatprep.subr.bf16.mxu0 0
        %1648 = vmatpush2.bf16.msra.mxu0 0
        %1649 = vmatprep.mubr.bf16.mxu0 0
        %1650 = vmatmul.mubr.bf16.gmra.mxu0 %v1609
        %v1651 = vpop.f32.mrf.mxu0
        %v1652 = vadd.f32 0.0, %v1651
        %v1653 = vpop.f32.mrf.mxu0
        %v1654 = vpop.f32.mrf.mxu0
        %v1655 = vadd.f32 0.0, %v1654
        %v1656 = vpop.f32.mrf.mxu0
        %1657 = vmatprep.mubr.bf16.mxu0 0
        %1658 = vmatmul.mubr.bf16.gmra.mxu0 %v1612
        %v1659 = vpop.f32.mrf.mxu0
        %v1660 = vadd.f32 0.0, %v1659
        %v1661 = vpop.f32.mrf.mxu0
        %v1662 = vpop.f32.mrf.mxu0
        %v1663 = vpop.f32.mrf.mxu0
        %1664 = vdwg.mxu0
        %v1665 = vpack.c.bf16 %v1655, %v1652
        %v1666 = vpack.c.bf16 %v1660, %v1660
        %v1669 = vunpack.c.l.b16 %v1321
        %v1670 = vunpack.c.l.b16 %v1322
        %v1671 = vpack.c.b16 %v1670, %v1669
        %v1674 = vsel %vm1331, %v1665, 0
        %v1677 = vsel %vm1331, %v1666, 0
        %1679 = vmatprep.subr.bf16.mxu0 0
        %1680 = vmatpush1.bf16.msra.mxu0 0
        %1681 = vmatprep.subr.bf16.mxu0 0
        %1682 = vmatpush1.bf16.msra.mxu0 0
        %1683 = vmatprep.subr.bf16.mxu0 0
        %1684 = vmatpush1.bf16.msra.mxu0 0
        %1685 = vmatprep.subr.bf16.mxu0 0
        %1686 = vmatpush1.bf16.msra.mxu0 0
        %1687 = vmatprep.subr.bf16.mxu0 0
        %1688 = vmatpush1.bf16.msra.mxu0 0
        %1689 = vmatprep.subr.bf16.mxu0 0
        %1690 = vmatpush1.bf16.msra.mxu0 0
        %1691 = vmatprep.subr.bf16.mxu0 0
        %1692 = vmatpush1.bf16.msra.mxu0 0
        %1693 = vmatprep.subr.bf16.mxu0 0
        %1694 = vmatpush1.bf16.msra.mxu0 %v1671
        %1695 = vmatprep.subr.bf16.mxu0 0
        %1696 = vmatpush2.bf16.msra.mxu0 0
        %1697 = vmatprep.subr.bf16.mxu0 0
        %1698 = vmatpush2.bf16.msra.mxu0 0
        %1699 = vmatprep.subr.bf16.mxu0 0
        %1700 = vmatpush2.bf16.msra.mxu0 0
        %1701 = vmatprep.subr.bf16.mxu0 0
        %1702 = vmatpush2.bf16.msra.mxu0 0
        %1703 = vmatprep.subr.bf16.mxu0 0
        %1704 = vmatpush2.bf16.msra.mxu0 0
        %1705 = vmatprep.subr.bf16.mxu0 0
        %1706 = vmatpush2.bf16.msra.mxu0 0
        %1707 = vmatprep.subr.bf16.mxu0 0
        %1708 = vmatpush2.bf16.msra.mxu0 0
        %1709 = vmatprep.subr.bf16.mxu0 0
        %1710 = vmatpush2.bf16.msra.mxu0 0
        %1711 = vmatprep.mubr.bf16.mxu0 0
        %1712 = vmatmul.mubr.bf16.gmra.mxu0 %v1674
        %v1713 = vpop.f32.mrf.mxu0
        %v1714 = vadd.f32 0.0, %v1713
        %v1715 = vpop.f32.mrf.mxu0
        %v1716 = vpop.f32.mrf.mxu0
        %v1717 = vadd.f32 0.0, %v1716
        %v1718 = vpop.f32.mrf.mxu0
        %1719 = vmatprep.mubr.bf16.mxu0 0
        %1720 = vmatmul.mubr.bf16.gmra.mxu0 %v1677
        %v1721 = vpop.f32.mrf.mxu0
        %v1722 = vadd.f32 0.0, %v1721
        %v1723 = vpop.f32.mrf.mxu0
        %v1724 = vpop.f32.mrf.mxu0
        %v1725 = vpop.f32.mrf.mxu0
        %1726 = vdwg.mxu0
        %v1729 = vunpack.c.l.b16 %v1319
        %v1730 = vunpack.c.l.b16 %v1320
        %v1731 = vpack.c.b16 %v1730, %v1729
        %v1734 = vsel %vm1331, %v1495, 0
        %v1737 = vsel %vm1331, %v1496, 0
        %1739 = vmatprep.subr.bf16.mxu0 0
        %1740 = vmatpush1.bf16.msra.mxu0 0
        %1741 = vmatprep.subr.bf16.mxu0 0
        %1742 = vmatpush1.bf16.msra.mxu0 0
        %1743 = vmatprep.subr.bf16.mxu0 0
        %1744 = vmatpush1.bf16.msra.mxu0 0
        %1745 = vmatprep.subr.bf16.mxu0 0
        %1746 = vmatpush1.bf16.msra.mxu0 0
        %1747 = vmatprep.subr.bf16.mxu0 0
        %1748 = vmatpush1.bf16.msra.mxu0 0
        %1749 = vmatprep.subr.bf16.mxu0 0
        %1750 = vmatpush1.bf16.msra.mxu0 0
        %1751 = vmatprep.subr.bf16.mxu0 0
        %1752 = vmatpush1.bf16.msra.mxu0 0
        %1753 = vmatprep.subr.bf16.mxu0 0
        %1754 = vmatpush1.bf16.msra.mxu0 %v1731
        %1755 = vmatprep.subr.bf16.mxu0 0
        %1756 = vmatpush2.bf16.msra.mxu0 0
        %1757 = vmatprep.subr.bf16.mxu0 0
        %1758 = vmatpush2.bf16.msra.mxu0 0
        %1759 = vmatprep.subr.bf16.mxu0 0
        %1760 = vmatpush2.bf16.msra.mxu0 0
        %1761 = vmatprep.subr.bf16.mxu0 0
        %1762 = vmatpush2.bf16.msra.mxu0 0
        %1763 = vmatprep.subr.bf16.mxu0 0
        %1764 = vmatpush2.bf16.msra.mxu0 0
        %1765 = vmatprep.subr.bf16.mxu0 0
        %1766 = vmatpush2.bf16.msra.mxu0 0
        %1767 = vmatprep.subr.bf16.mxu0 0
        %1768 = vmatpush2.bf16.msra.mxu0 0
        %1769 = vmatprep.subr.bf16.mxu0 0
        %1770 = vmatpush2.bf16.msra.mxu0 0
        %1771 = vmatprep.mubr.bf16.mxu0 0
        %1772 = vmatmul.mubr.bf16.gmra.mxu0 %v1734
        %v1773 = vpop.f32.mrf.mxu0
        %v1774 = vadd.f32 %v1714, %v1773
        %v1775 = vpop.f32.mrf.mxu0
        %v1776 = vpop.f32.mrf.mxu0
        %v1777 = vadd.f32 %v1717, %v1776
        %v1778 = vpop.f32.mrf.mxu0
        %1779 = vmatprep.mubr.bf16.mxu0 0
        %1780 = vmatmul.mubr.bf16.gmra.mxu0 %v1737
        %v1781 = vpop.f32.mrf.mxu0
        %v1782 = vadd.f32 %v1722, %v1781
        %v1783 = vpop.f32.mrf.mxu0
        %v1784 = vpop.f32.mrf.mxu0
        %v1785 = vpop.f32.mrf.mxu0
        %1786 = vdwg.mxu0
        %v1787 = vadd.f32 %v1175, %v1774
        %v1788 = vadd.f32 %v1176, %v1777
        %v1789 = vadd.f32 %v1177, %v1782
        %v1790 = vld [vmem:[%s920] sm:$0x1]
        %v1792 = vlaneseq
        %v1793 = vshrl.u32 %v1792, 7
        %v1794 = vsub.s32 0, %v1793
        %v1795 = vrot.slane %v1790, %v1794
        %v1797 = vadd.f32 %v1787, %v1795
        %v1798 = vadd.f32 %v1788, %v1795
        %v1799 = vadd.f32 %v1789, %v1795
        %v1800 = vld [vmem:[%s928] sm:$0x1]
        %v1801 = vld [vmem:[%s936] sm:$0x1]
        %v1802 = vsel %vm1180, %v1797, 0.0
        %1803 = vadd.xlane.f32.xlu0 %v1802
        %v1804 = vpop.xlane.xlu0 %1803
        %v1805 = vsel %vm1180, %v1798, 0.0
        %1806 = vadd.xlane.f32.xlu0 %v1805
        %v1807 = vpop.xlane.xlu0 %1806
        %v1808 = vsel %vm1187, %v1799, 0.0
        %1809 = vadd.xlane.f32.xlu0 %v1808
        %v1810 = vpop.xlane.xlu0 %1809
        %v1811 = vmul.f32 %v1804, %v1191
        %v1812 = vmul.f32 %v1807, %v1191
        %v1813 = vmul.f32 %v1810, %v1191
        %v1814 = vsub.f32 %v1797, %v1811
        %v1815 = vsub.f32 %v1798, %v1812
        %v1816 = vsub.f32 %v1799, %v1813
        %v1817 = vmul.f32 %v1814, %v1814
        %v1818 = vmul.f32 %v1815, %v1815
        %v1819 = vmul.f32 %v1816, %v1816
        %v1820 = vsel %vm1180, %v1817, 0.0
        %1821 = vadd.xlane.f32.xlu0 %v1820
        %v1822 = vpop.xlane.xlu0 %1821
        %v1823 = vsel %vm1180, %v1818, 0.0
        %1824 = vadd.xlane.f32.xlu0 %v1823
        %v1825 = vpop.xlane.xlu0 %1824
        %v1826 = vsel %vm1187, %v1819, 0.0
        %1827 = vadd.xlane.f32.xlu0 %v1826
        %v1828 = vpop.xlane.xlu0 %1827
        %v1829 = vmul.f32 %v1822, %v1191
        %v1830 = vmul.f32 %v1825, %v1191
        %v1831 = vmul.f32 %v1828, %v1191
        %v1832 = vadd.f32 %v1829, 1e-05
        %v1833 = vadd.f32 %v1830, 1e-05
        %v1834 = vadd.f32 %v1831, 1e-05
        %v1835 = vrsqrt.pop %v1832
        %v1836 = vrsqrt.pop %v1833
        %v1837 = vrsqrt.pop %v1834
        %v1838 = vmul.f32 %v1814, %v1835
        %v1839 = vmul.f32 %v1815, %v1836
        %v1840 = vmul.f32 %v1816, %v1837
        %v1842 = vlaneseq
        %v1843 = vshrl.u32 %v1842, 7
        %v1844 = vsub.s32 0, %v1843
        %v1845 = vrot.slane %v1800, %v1844
        %v1847 = vmul.f32 %v1838, %v1845
        %v1848 = vmul.f32 %v1839, %v1845
        %v1849 = vmul.f32 %v1840, %v1845
        %v1851 = vlaneseq
        %v1852 = vshrl.u32 %v1851, 7
        %v1853 = vsub.s32 0, %v1852
        %v1854 = vrot.slane %v1801, %v1853
        %v1856 = vadd.f32 %v1847, %v1854
        %v1857 = vadd.f32 %v1848, %v1854
        %v1858 = vadd.f32 %v1849, %v1854
        %v1859 = vpack.c.bf16 %v1857, %v1856
        %v1860 = vpack.c.bf16 %v1858, %v1858
        %v1861 = vld [vmem:[%s945] sm:$0xf]
        %v1862 = vld [vmem:[%s945 + $0x4] sm:$0xf]
        %v1863 = vld [vmem:[%s945 + $0x8] sm:$0xf]
        %v1864 = vld [vmem:[%s945 + $0xc] sm:$0xf]
        %v1865 = vld [vmem:[%s953] sm:$0x1]
        %v1867 = vlaneseq
        %v1868 = vshrl.u32 %v1867, 7
        %v1869 = vsub.s32 0, %v1868
        %v1870 = vrot.slane %v1865, %v1869
        %v1876 = vunpack.c.l.b16 %v1861
        %v1877 = vunpack.c.l.b16 %v1862
        %v1878 = vunpack.c.l.b16 %v1863
        %v1879 = vunpack.c.l.b16 %v1864
        %v1880 = vpack.c.b16 %v1877, %v1876
        %v1881 = vpack.c.b16 %v1879, %v1878
        %v1885 = vsel %vm1180, %v1859, 0
        %v1888 = vsel %vm1180, %v1860, 0
        %1890 = vmatprep.subr.bf16.mxu0 0
        %1891 = vmatpush1.bf16.msra.mxu0 0
        %1892 = vmatprep.subr.bf16.mxu0 0
        %1893 = vmatpush1.bf16.msra.mxu0 0
        %1894 = vmatprep.subr.bf16.mxu0 0
        %1895 = vmatpush1.bf16.msra.mxu0 0
        %1896 = vmatprep.subr.bf16.mxu0 0
        %1897 = vmatpush1.bf16.msra.mxu0 0
        %1898 = vmatprep.subr.bf16.mxu0 0
        %1899 = vmatpush1.bf16.msra.mxu0 0
        %1900 = vmatprep.subr.bf16.mxu0 0
        %1901 = vmatpush1.bf16.msra.mxu0 0
        %1902 = vmatprep.subr.bf16.mxu0 0
        %1903 = vmatpush1.bf16.msra.mxu0 %v1881
        %1904 = vmatprep.subr.bf16.mxu0 0
        %1905 = vmatpush1.bf16.msra.mxu0 %v1880
        %1906 = vmatprep.subr.bf16.mxu0 0
        %1907 = vmatpush2.bf16.msra.mxu0 0
        %1908 = vmatprep.subr.bf16.mxu0 0
        %1909 = vmatpush2.bf16.msra.mxu0 0
        %1910 = vmatprep.subr.bf16.mxu0 0
        %1911 = vmatpush2.bf16.msra.mxu0 0
        %1912 = vmatprep.subr.bf16.mxu0 0
        %1913 = vmatpush2.bf16.msra.mxu0 0
        %1914 = vmatprep.subr.bf16.mxu0 0
        %1915 = vmatpush2.bf16.msra.mxu0 0
        %1916 = vmatprep.subr.bf16.mxu0 0
        %1917 = vmatpush2.bf16.msra.mxu0 0
        %1918 = vmatprep.subr.bf16.mxu0 0
        %1919 = vmatpush2.bf16.msra.mxu0 0
        %1920 = vmatprep.subr.bf16.mxu0 0
        %1921 = vmatpush2.bf16.msra.mxu0 0
        %1922 = vmatprep.mubr.bf16.mxu0 0
        %1923 = vmatmul.mubr.bf16.gmra.mxu0 %v1885
        %v1924 = vpop.f32.mrf.mxu0
        %v1925 = vadd.f32 %v1870, %v1924
        %v1926 = vpop.f32.mrf.mxu0
        %v1927 = vpop.f32.mrf.mxu0
        %v1928 = vadd.f32 %v1870, %v1927
        %v1929 = vpop.f32.mrf.mxu0
        %1930 = vmatprep.mubr.bf16.mxu0 0
        %1931 = vmatmul.mubr.bf16.gmra.mxu0 %v1888
        %v1932 = vpop.f32.mrf.mxu0
        %v1933 = vadd.f32 %v1870, %v1932
        %v1934 = vpop.f32.mrf.mxu0
        %v1935 = vpop.f32.mrf.mxu0
        %v1936 = vpop.f32.mrf.mxu0
        %1937 = vdwg.mxu0
        %v1938 = vmul.f32 %v1925, 0.5
        %v1939 = vmul.f32 %v1928, 0.5
        %v1940 = vmul.f32 %v1933, 0.5
        %v1941 = vmul.f32 %v1925, 0.70710677
        %v1942 = vmul.f32 %v1928, 0.70710677
        %v1943 = vmul.f32 %v1933, 0.70710677
        %vm1944 = vcmp.lt.f32.partialorder %v1941, 0.0
        %vm1945 = vcmp.lt.f32.partialorder %v1942, 0.0
        %vm1946 = vcmp.lt.f32.partialorder %v1943, 0.0
        %v1947 = vsel %vm1944, -1.0, 1.0
        %v1948 = vsel %vm1945, -1.0, 1.0
        %v1949 = vsel %vm1946, -1.0, 1.0
        %v1950 = vand.u32 2147483647, %v1941
        %v1951 = vand.u32 2147483647, %v1942
        %v1952 = vand.u32 2147483647, %v1943
        %v1953 = vmul.f32 %v1950, 0.3275911
        %v1954 = vmul.f32 %v1951, 0.3275911
        %v1955 = vmul.f32 %v1952, 0.3275911
        %v1956 = vadd.f32 %v1953, 1.0
        %v1957 = vadd.f32 %v1954, 1.0
        %v1958 = vadd.f32 %v1955, 1.0
        %v1959 = vrcp.pop %v1956
        %v1960 = vmul.f32 1.0, %v1959
        %v1961 = vrcp.pop %v1957
        %v1962 = vmul.f32 1.0, %v1961
        %v1963 = vrcp.pop %v1958
        %v1964 = vmul.f32 1.0, %v1963
        %v1965 = vmul.f32 %v1960, 1.0614054
        %v1966 = vmul.f32 %v1962, 1.0614054
        %v1967 = vmul.f32 %v1964, 1.0614054
        %v1968 = vadd.f32 %v1965, -1.4531521
        %v1969 = vadd.f32 %v1966, -1.4531521
        %v1970 = vadd.f32 %v1967, -1.4531521
        %v1971 = vmul.f32 %v1968, %v1960
        %v1972 = vmul.f32 %v1969, %v1962
        %v1973 = vmul.f32 %v1970, %v1964
        %v1974 = vadd.f32 %v1971, 1.4214138
        %v1975 = vadd.f32 %v1972, 1.4214138
        %v1976 = vadd.f32 %v1973, 1.4214138
        %v1977 = vmul.f32 %v1974, %v1960
        %v1978 = vmul.f32 %v1975, %v1962
        %v1979 = vmul.f32 %v1976, %v1964
        %v1980 = vadd.f32 %v1977, -0.28449672
        %v1981 = vadd.f32 %v1978, -0.28449672
        %v1982 = vadd.f32 %v1979, -0.28449672
        %v1983 = vmul.f32 %v1980, %v1960
        %v1984 = vmul.f32 %v1981, %v1962
        %v1985 = vmul.f32 %v1982, %v1964
        %v1986 = vadd.f32 %v1983, 0.2548296
        %v1987 = vadd.f32 %v1984, 0.2548296
        %v1988 = vadd.f32 %v1985, 0.2548296
        %v1989 = vmul.f32 %v1986, %v1960
        %v1990 = vmul.f32 %v1987, %v1962
        %v1991 = vmul.f32 %v1988, %v1964
        %v1992 = vsub.f32 0.0, %v1950
        %v1993 = vsub.f32 0.0, %v1951
        %v1994 = vsub.f32 0.0, %v1952
        %v1995 = vmul.f32 %v1992, %v1950
        %v1996 = vmul.f32 %v1993, %v1951
        %v1997 = vmul.f32 %v1994, %v1952
        %v1998 = vmul.f32 %v1995, 1.442695
        %v1999 = vpow.pop %v1998
        %v2000 = vmul.f32 %v1996, 1.442695
        %v2001 = vpow.pop %v2000
        %v2002 = vmul.f32 %v1997, 1.442695
        %v2003 = vpow.pop %v2002
        %v2004 = vmul.f32 %v1989, %v1999
        %v2005 = vmul.f32 %v1990, %v2001
        %v2006 = vmul.f32 %v1991, %v2003
        %v2007 = vsub.f32 1.0, %v2004
        %v2008 = vsub.f32 1.0, %v2005
        %v2009 = vsub.f32 1.0, %v2006
        %v2010 = vmul.f32 %v1947, %v2007
        %v2011 = vmul.f32 %v1948, %v2008
        %v2012 = vmul.f32 %v1949, %v2009
        %v2013 = vadd.f32 %v2010, 1.0
        %v2014 = vadd.f32 %v2011, 1.0
        %v2015 = vadd.f32 %v2012, 1.0
        %v2016 = vmul.f32 %v1938, %v2013
        %v2017 = vmul.f32 %v1939, %v2014
        %v2018 = vmul.f32 %v1940, %v2015
        %v2019 = vpack.c.bf16 %v2017, %v2016
        %v2020 = vpack.c.bf16 %v2018, %v2018
        %v2021 = vld [vmem:[%s1093] sm:$0xf]
        %v2022 = vld [vmem:[%s1093 + $0x4] sm:$0xf]
        %v2023 = vld [vmem:[%s1093 + $0x8] sm:$0xf]
        %v2024 = vld [vmem:[%s1093 + $0xc] sm:$0xf]
        %v2025 = vld [vmem:[%s1093 + $0x10] sm:$0xf]
        %v2026 = vld [vmem:[%s1093 + $0x14] sm:$0xf]
        %v2027 = vld [vmem:[%s1093 + $0x18] sm:$0xf]
        %v2028 = vld [vmem:[%s1093 + $0x1c] sm:$0xf]
        %v2037 = vunpack.c.l.b16 %v2021
        %v2038 = vunpack.c.l.b16 %v2022
        %v2039 = vunpack.c.l.b16 %v2023
        %v2040 = vunpack.c.l.b16 %v2024
        %v2041 = vunpack.c.l.b16 %v2025
        %v2042 = vunpack.c.l.b16 %v2026
        %v2043 = vunpack.c.l.b16 %v2027
        %v2044 = vunpack.c.l.b16 %v2028
        %v2045 = vpack.c.b16 %v2038, %v2037
        %v2046 = vpack.c.b16 %v2040, %v2039
        %v2047 = vpack.c.b16 %v2042, %v2041
        %v2048 = vpack.c.b16 %v2044, %v2043
        %vm2053 = vcmask 523264
        %v2055 = vsel %vm2053, %v2019, 0
        %v2058 = vsel %vm2053, %v2020, 0
        %2060 = vmatprep.subr.bf16.mxu0 0
        %2061 = vmatpush1.bf16.msra.mxu0 0
        %2062 = vmatprep.subr.bf16.mxu0 0
        %2063 = vmatpush1.bf16.msra.mxu0 0
        %2064 = vmatprep.subr.bf16.mxu0 0
        %2065 = vmatpush1.bf16.msra.mxu0 0
        %2066 = vmatprep.subr.bf16.mxu0 0
        %2067 = vmatpush1.bf16.msra.mxu0 0
        %2068 = vmatprep.subr.bf16.mxu0 0
        %2069 = vmatpush1.bf16.msra.mxu0 %v2048
        %2070 = vmatprep.subr.bf16.mxu0 0
        %2071 = vmatpush1.bf16.msra.mxu0 %v2047
        %2072 = vmatprep.subr.bf16.mxu0 0
        %2073 = vmatpush1.bf16.msra.mxu0 %v2046
        %2074 = vmatprep.subr.bf16.mxu0 0
        %2075 = vmatpush1.bf16.msra.mxu0 %v2045
        %2076 = vmatprep.subr.bf16.mxu0 0
        %2077 = vmatpush2.bf16.msra.mxu0 0
        %2078 = vmatprep.subr.bf16.mxu0 0
        %2079 = vmatpush2.bf16.msra.mxu0 0
        %2080 = vmatprep.subr.bf16.mxu0 0
        %2081 = vmatpush2.bf16.msra.mxu0 0
        %2082 = vmatprep.subr.bf16.mxu0 0
        %2083 = vmatpush2.bf16.msra.mxu0 0
        %2084 = vmatprep.subr.bf16.mxu0 0
        %2085 = vmatpush2.bf16.msra.mxu0 0
        %2086 = vmatprep.subr.bf16.mxu0 0
        %2087 = vmatpush2.bf16.msra.mxu0 0
        %2088 = vmatprep.subr.bf16.mxu0 0
        %2089 = vmatpush2.bf16.msra.mxu0 0
        %2090 = vmatprep.subr.bf16.mxu0 0
        %2091 = vmatpush2.bf16.msra.mxu0 0
        %2092 = vmatprep.mubr.bf16.mxu0 0
        %2093 = vmatmul.mubr.bf16.gmra.mxu0 %v2055
        %v2094 = vpop.f32.mrf.mxu0
        %v2095 = vadd.f32 0.0, %v2094
        %v2096 = vpop.f32.mrf.mxu0
        %v2097 = vpop.f32.mrf.mxu0
        %v2098 = vadd.f32 0.0, %v2097
        %v2099 = vpop.f32.mrf.mxu0
        %2100 = vmatprep.mubr.bf16.mxu0 0
        %2101 = vmatmul.mubr.bf16.gmra.mxu0 %v2058
        %v2102 = vpop.f32.mrf.mxu0
        %v2103 = vadd.f32 0.0, %v2102
        %v2104 = vpop.f32.mrf.mxu0
        %v2105 = vpop.f32.mrf.mxu0
        %v2106 = vpop.f32.mrf.mxu0
        %2107 = vdwg.mxu0
        %v2108 = vadd.f32 %v1797, %v2095
        %v2109 = vadd.f32 %v1798, %v2098
        %v2110 = vadd.f32 %v1799, %v2103
        %v2111 = vld [vmem:[%s961] sm:$0x1]
        %v2113 = vlaneseq
        %v2114 = vshrl.u32 %v2113, 7
        %v2115 = vsub.s32 0, %v2114
        %v2116 = vrot.slane %v2111, %v2115
        %v2118 = vadd.f32 %v2108, %v2116
        %v2119 = vadd.f32 %v2109, %v2116
        %v2120 = vadd.f32 %v2110, %v2116
        %2121 = vst.msk [vmem:[#allocation2] sm:$0xff] %vm1180, %v2118
        %2122 = vst.msk [vmem:[#allocation2 + $0x8] sm:$0xff] %vm1180, %v2119
        %2123 = vst.msk [vmem:[#allocation2 + $0x10] sm:$0x3] %vm1187, %v2120
        %p2124 = scmp.eq.s32.totalorder %s58, 1
        // Predicated region
        $region161: #{tpu_custom_call.1} parent=107 // pred_check
          %p2125 = pneg %p2124
        $region162: #{tpu_custom_call.1} parent=107 // pred_check_branch
          %2127 = sbr.rel (%p2125) target = $region164
        $region163: #{tpu_custom_call.1} parent=107 // pred_region
          %v2128 = vld [vmem:[%s16] sm:$0x1]
          %v2129 = vld [vmem:[%s17] sm:$0x1]
          %v2130 = vsel %vm1180, %v2118, 0.0
          %2131 = vadd.xlane.f32.xlu0 %v2130
          %v2132 = vpop.xlane.xlu0 %2131
          %v2133 = vsel %vm1180, %v2119, 0.0
          %2134 = vadd.xlane.f32.xlu0 %v2133
          %v2135 = vpop.xlane.xlu0 %2134
          %v2136 = vsel %vm1187, %v2120, 0.0
          %2137 = vadd.xlane.f32.xlu0 %v2136
          %v2138 = vpop.xlane.xlu0 %2137
          %v2139 = vmul.f32 %v2132, %v1191
          %v2140 = vmul.f32 %v2135, %v1191
          %v2141 = vmul.f32 %v2138, %v1191
          %v2142 = vsub.f32 %v2118, %v2139
          %v2143 = vsub.f32 %v2119, %v2140
          %v2144 = vsub.f32 %v2120, %v2141
          %v2145 = vmul.f32 %v2142, %v2142
          %v2146 = vmul.f32 %v2143, %v2143
          %v2147 = vmul.f32 %v2144, %v2144
          %v2148 = vsel %vm1180, %v2145, 0.0
          %2149 = vadd.xlane.f32.xlu0 %v2148
          %v2150 = vpop.xlane.xlu0 %2149
          %v2151 = vsel %vm1180, %v2146, 0.0
          %2152 = vadd.xlane.f32.xlu0 %v2151
          %v2153 = vpop.xlane.xlu0 %2152
          %v2154 = vsel %vm1187, %v2147, 0.0
          %2155 = vadd.xlane.f32.xlu0 %v2154
          %v2156 = vpop.xlane.xlu0 %2155
          %v2157 = vmul.f32 %v2150, %v1191
          %v2158 = vmul.f32 %v2153, %v1191
          %v2159 = vmul.f32 %v2156, %v1191
          %v2160 = vadd.f32 %v2157, 1e-05
          %v2161 = vadd.f32 %v2158, 1e-05
          %v2162 = vadd.f32 %v2159, 1e-05
          %v2163 = vrsqrt.pop %v2160
          %v2164 = vrsqrt.pop %v2161
          %v2165 = vrsqrt.pop %v2162
          %v2166 = vmul.f32 %v2142, %v2163
          %v2167 = vmul.f32 %v2143, %v2164
          %v2168 = vmul.f32 %v2144, %v2165
          %v2170 = vlaneseq
          %v2171 = vshrl.u32 %v2170, 7
          %v2172 = vsub.s32 0, %v2171
          %v2173 = vrot.slane %v2128, %v2172
          %v2175 = vmul.f32 %v2166, %v2173
          %v2176 = vmul.f32 %v2167, %v2173
          %v2177 = vmul.f32 %v2168, %v2173
          %v2179 = vlaneseq
          %v2180 = vshrl.u32 %v2179, 7
          %v2181 = vsub.s32 0, %v2180
          %v2182 = vrot.slane %v2129, %v2181
          %v2184 = vadd.f32 %v2175, %v2182
          %v2185 = vadd.f32 %v2176, %v2182
          %v2186 = vadd.f32 %v2177, %v2182
          %v2187 = vpack.c.bf16 %v2185, %v2184
          %v2188 = vld [vmem:[%s18] sm:$0xf]
          %v2189 = vld [vmem:[%s18 + $0x4] sm:$0xf]
          %v2190 = vld [vmem:[%s18 + $0x8] sm:$0xf]
          %v2191 = vld [vmem:[%s18 + $0xc] sm:$0xf]
          %v2196 = vunpack.c.l.b16 %v2188
          %v2197 = vunpack.c.l.b16 %v2189
          %v2198 = vunpack.c.l.b16 %v2190
          %v2199 = vunpack.c.l.b16 %v2191
          %v2200 = vpack.c.b16 %v2197, %v2196
          %v2201 = vpack.c.b16 %v2199, %v2198
          %v2205 = vsel %vm1180, %v2187, 0
          %2207 = vmatprep.subr.bf16.mxu0 0
          %2208 = vmatpush1.bf16.msra.mxu0 0
          %2209 = vmatprep.subr.bf16.mxu0 0
          %2210 = vmatpush1.bf16.msra.mxu0 0
          %2211 = vmatprep.subr.bf16.mxu0 0
          %2212 = vmatpush1.bf16.msra.mxu0 0
          %2213 = vmatprep.subr.bf16.mxu0 0
          %2214 = vmatpush1.bf16.msra.mxu0 0
          %2215 = vmatprep.subr.bf16.mxu0 0
          %2216 = vmatpush1.bf16.msra.mxu0 0
          %2217 = vmatprep.subr.bf16.mxu0 0
          %2218 = vmatpush1.bf16.msra.mxu0 0
          %2219 = vmatprep.subr.bf16.mxu0 0
          %2220 = vmatpush1.bf16.msra.mxu0 %v2201
          %2221 = vmatprep.subr.bf16.mxu0 0
          %2222 = vmatpush1.bf16.msra.mxu0 %v2200
          %2223 = vmatprep.subr.bf16.mxu0 0
          %2224 = vmatpush2.bf16.msra.mxu0 0
          %2225 = vmatprep.subr.bf16.mxu0 0
          %2226 = vmatpush2.bf16.msra.mxu0 0
          %2227 = vmatprep.subr.bf16.mxu0 0
          %2228 = vmatpush2.bf16.msra.mxu0 0
          %2229 = vmatprep.subr.bf16.mxu0 0
          %2230 = vmatpush2.bf16.msra.mxu0 0
          %2231 = vmatprep.subr.bf16.mxu0 0
          %2232 = vmatpush2.bf16.msra.mxu0 0
          %2233 = vmatprep.subr.bf16.mxu0 0
          %2234 = vmatpush2.bf16.msra.mxu0 0
          %2235 = vmatprep.subr.bf16.mxu0 0
          %2236 = vmatpush2.bf16.msra.mxu0 0
          %2237 = vmatprep.subr.bf16.mxu0 0
          %2238 = vmatpush2.bf16.msra.mxu0 0
          %2239 = vmatprep.mubr.bf16.mxu0 0
          %2240 = vmatmul.mubr.bf16.gmra.mxu0 %v2205
          %v2241 = vpop.f32.mrf.mxu0
          %v2242 = vadd.f32 0.0, %v2241
          %v2243 = vpop.f32.mrf.mxu0
          %v2244 = vpop.f32.mrf.mxu0
          %v2245 = vadd.f32 0.0, %v2244
          %v2246 = vpop.f32.mrf.mxu0
          %2247 = vdwg.mxu0
          %v2248 = vpack.c.bf16 %v2186, %v2186
          %v2249 = vld [vmem:[%s19] sm:$0xf]
          %v2250 = vld [vmem:[%s19 + $0x4] sm:$0xf]
          %v2251 = vld [vmem:[%s19 + $0x8] sm:$0xf]
          %v2252 = vld [vmem:[%s19 + $0xc] sm:$0xf]
          %v2257 = vunpack.c.l.b16 %v2249
          %v2258 = vunpack.c.l.b16 %v2250
          %v2259 = vunpack.c.l.b16 %v2251
          %v2260 = vunpack.c.l.b16 %v2252
          %v2261 = vpack.c.b16 %v2258, %v2257
          %v2262 = vpack.c.b16 %v2260, %v2259
          %v2266 = vsel %vm1180, %v2248, 0
          %2268 = vmatprep.subr.bf16.mxu0 0
          %2269 = vmatpush1.bf16.msra.mxu0 0
          %2270 = vmatprep.subr.bf16.mxu0 0
          %2271 = vmatpush1.bf16.msra.mxu0 0
          %2272 = vmatprep.subr.bf16.mxu0 0
          %2273 = vmatpush1.bf16.msra.mxu0 0
          %2274 = vmatprep.subr.bf16.mxu0 0
          %2275 = vmatpush1.bf16.msra.mxu0 0
          %2276 = vmatprep.subr.bf16.mxu0 0
          %2277 = vmatpush1.bf16.msra.mxu0 0
          %2278 = vmatprep.subr.bf16.mxu0 0
          %2279 = vmatpush1.bf16.msra.mxu0 0
          %2280 = vmatprep.subr.bf16.mxu0 0
          %2281 = vmatpush1.bf16.msra.mxu0 %v2262
          %2282 = vmatprep.subr.bf16.mxu0 0
          %2283 = vmatpush1.bf16.msra.mxu0 %v2261
          %2284 = vmatprep.subr.bf16.mxu0 0
          %2285 = vmatpush2.bf16.msra.mxu0 0
          %2286 = vmatprep.subr.bf16.mxu0 0
          %2287 = vmatpush2.bf16.msra.mxu0 0
          %2288 = vmatprep.subr.bf16.mxu0 0
          %2289 = vmatpush2.bf16.msra.mxu0 0
          %2290 = vmatprep.subr.bf16.mxu0 0
          %2291 = vmatpush2.bf16.msra.mxu0 0
          %2292 = vmatprep.subr.bf16.mxu0 0
          %2293 = vmatpush2.bf16.msra.mxu0 0
          %2294 = vmatprep.subr.bf16.mxu0 0
          %2295 = vmatpush2.bf16.msra.mxu0 0
          %2296 = vmatprep.subr.bf16.mxu0 0
          %2297 = vmatpush2.bf16.msra.mxu0 0
          %2298 = vmatprep.subr.bf16.mxu0 0
          %2299 = vmatpush2.bf16.msra.mxu0 0
          %2300 = vmatprep.mubr.bf16.mxu0 0
          %2301 = vmatmul.mubr.bf16.gmra.mxu0 %v2266
          %v2302 = vpop.f32.mrf.mxu0
          %v2303 = vadd.f32 0.0, %v2302
          %v2304 = vpop.f32.mrf.mxu0
          %v2305 = vpop.f32.mrf.mxu0
          %v2306 = vpop.f32.mrf.mxu0
          %2307 = vdwg.mxu0
          %v2308 = vmul.f32 %v2242, %v2242
          %v2309 = vmul.f32 %v2245, %v2245
          %v2310 = vsel %vm1180, %v2308, 0.0
          %2311 = vadd.xlane.f32.xlu0 %v2310
          %v2312 = vpop.xlane.xlu0 %2311
          %v2313 = vsel %vm1180, %v2309, 0.0
          %2314 = vadd.xlane.f32.xlu0 %v2313
          %v2315 = vpop.xlane.xlu0 %2314
          %v2316 = vadd.f32 %v2312, 1e-12
          %v2317 = vadd.f32 %v2315, 1e-12
          %v2318 = vrsqrt.pop %v2316
          %v2319 = vrsqrt.pop %v2317
          %v2320 = vmul.f32 %v2242, %v2318
          %v2321 = vmul.f32 %v2245, %v2319
          %v2322 = vmul.f32 %v2303, %v2303
          %v2323 = vsel %vm1187, %v2322, 0.0
          %2324 = vadd.xlane.f32.xlu0 %v2323
          %v2325 = vpop.xlane.xlu0 %2324
          %v2326 = vadd.f32 %v2325, 1e-12
          %v2327 = vrsqrt.pop %v2326
          %v2328 = vmul.f32 %v2303, %v2327
          %v2330 = vsel %vm1180, %v2328, 0
          %v2333 = vsel %vm1180, %v2320, 0
          %v2336 = vsel %vm1180, %v2321, 0
          %2338 = vmatprep.subr.mxu0 0.0
          %2339 = vmatpush1.xpose.msra.mxu0 0.0
          %2340 = vmatprep.subr.mxu0 0.0
          %2341 = vmatpush1.xpose.msra.mxu0 0.0
          %2342 = vmatprep.subr.mxu0 0.0
          %2343 = vmatpush1.xpose.msra.mxu0 0.0
          %2344 = vmatprep.subr.mxu0 0.0
          %2345 = vmatpush1.xpose.msra.mxu0 0.0
          %2346 = vmatprep.subr.mxu0 0.0
          %2347 = vmatpush1.xpose.msra.mxu0 0.0
          %2348 = vmatprep.subr.mxu0 0.0
          %2349 = vmatpush1.xpose.msra.mxu0 0.0
          %2350 = vmatprep.subr.mxu0 0.0
          %2351 = vmatpush1.xpose.msra.mxu0 0.0
          %2352 = vmatprep.subr.mxu0 0.0
          %2353 = vmatpush1.xpose.msra.mxu0 0.0
          %2354 = vmatprep.subr.mxu0 0.0
          %2355 = vmatpush1.xpose.msra.mxu0 0.0
          %2356 = vmatprep.subr.mxu0 0.0
          %2357 = vmatpush1.xpose.msra.mxu0 0.0
          %2358 = vmatprep.subr.mxu0 0.0
          %2359 = vmatpush1.xpose.msra.mxu0 0.0
          %2360 = vmatprep.subr.mxu0 0.0
          %2361 = vmatpush1.xpose.msra.mxu0 0.0
          %2362 = vmatprep.subr.mxu0 0.0
          %2363 = vmatpush1.xpose.msra.mxu0 0.0
          %2364 = vmatprep.subr.mxu0 0.0
          %2365 = vmatpush1.xpose.msra.mxu0 0.0
          %2366 = vmatprep.subr.mxu0 0.0
          %2367 = vmatpush1.xpose.msra.mxu0 %v2336
          %2368 = vmatprep.subr.mxu0 0.0
          %2369 = vmatpush1.xpose.msra.mxu0 %v2333
          %2370 = vmatprep.subr.mxu0 0.0
          %2371 = vmatpush2.xpose.msra.mxu0 0.0
          %2372 = vmatprep.subr.mxu0 0.0
          %2373 = vmatpush2.xpose.msra.mxu0 0.0
          %2374 = vmatprep.subr.mxu0 0.0
          %2375 = vmatpush2.xpose.msra.mxu0 0.0
          %2376 = vmatprep.subr.mxu0 0.0
          %2377 = vmatpush2.xpose.msra.mxu0 0.0
          %2378 = vmatprep.subr.mxu0 0.0
          %2379 = vmatpush2.xpose.msra.mxu0 0.0
          %2380 = vmatprep.subr.mxu0 0.0
          %2381 = vmatpush2.xpose.msra.mxu0 0.0
          %2382 = vmatprep.subr.mxu0 0.0
          %2383 = vmatpush2.xpose.msra.mxu0 0.0
          %2384 = vmatprep.subr.mxu0 0.0
          %2385 = vmatpush2.xpose.msra.mxu0 0.0
          %2386 = vmatprep.subr.mxu0 0.0
          %2387 = vmatpush2.xpose.msra.mxu0 0.0
          %2388 = vmatprep.subr.mxu0 0.0
          %2389 = vmatpush2.xpose.msra.mxu0 0.0
          %2390 = vmatprep.subr.mxu0 0.0
          %2391 = vmatpush2.xpose.msra.mxu0 0.0
          %2392 = vmatprep.subr.mxu0 0.0
          %2393 = vmatpush2.xpose.msra.mxu0 0.0
          %2394 = vmatprep.subr.mxu0 0.0
          %2395 = vmatpush2.xpose.msra.mxu0 0.0
          %2396 = vmatprep.subr.mxu0 0.0
          %2397 = vmatpush2.xpose.msra.mxu0 0.0
          %2398 = vmatprep.subr.mxu0 0.0
          %2399 = vmatpush2.xpose.msra.mxu0 0.0
          %2400 = vmatprep.subr.mxu0 0.0
          %2401 = vmatpush2.xpose.msra.mxu0 0.0
          %2402 = vmatprep.mubr.f32.mxu0 0.0
          %2403 = vmatmul.mubr.f32.gmra.mxu0 %v2330
          %v2404 = vpop.f32.mrf.mxu0
          %v2405 = vadd.f32 0.0, %v2404
          %v2406 = vpop.f32.mrf.mxu0
          %2407 = vdwg.mxu0
          %vm2408 = vcmask 123904
          %v2409 = vsel %vm2408, %v2405, 0.0
          %v2410 = vrot.slane %v2409, 4
          %v2411 = vadd.f32 %v2409, %v2410
          %v2412 = vrot.slane %v2411, 2
          %v2413 = vadd.f32 %v2411, %v2412
          %v2414 = vrot.slane %v2413, 1
          %v2415 = vadd.f32 %v2413, %v2414
          %v2416 = vrcp.pop 2.0
          %v2417 = vmul.f32 %v2415, %v2416
          %v2418 = vsub.f32 %v2405, %v2417
          %v2419 = vmul.f32 %v2418, %v2418
          %v2420 = vsel %vm2408, %v2419, 0.0
          %v2421 = vrot.slane %v2420, 4
          %v2422 = vadd.f32 %v2420, %v2421
          %v2423 = vrot.slane %v2422, 2
          %v2424 = vadd.f32 %v2422, %v2423
          %v2425 = vrot.slane %v2424, 1
          %v2426 = vadd.f32 %v2424, %v2425
          %v2427 = vmul.f32 %v2426, %v2416
          %v2428 = vadd.f32 %v2427, 1e-05
          %v2429 = vrsqrt.pop %v2428
          %v2430 = vmul.f32 %v2418, %v2429
          %v2431 = vld [vmem:[%s20] sm:$0x3]
          %2433 = vset.pattern.permute.xlu0 0
          %2434 = vperm.xlu0 %2433, %v2431
          %v2435 = vpop.permute.xlu0 %2434
          %v2437 = vmul.f32 %v2430, %v2435
          %v2438 = vld [vmem:[%s21] sm:$0x3]
          %2440 = vset.pattern.permute.xlu0 0
          %2441 = vperm.xlu0 %2440, %v2438
          %v2442 = vpop.permute.xlu0 %2441
          %v2444 = vadd.f32 %v2437, %v2442
          %2445 = vst.msk [vmem:[%s1073] sm:$0x3] %vm2408, %v2444
        $region164: #{tpu_custom_call.1} parent=107 // pred_fallthru
          _
        %s2446 = sand.u32 %s600, 1
        %s2447 = scalar_lea.sflag [#allocation5], %s2446
        %s2448 = sand.u32 %s600, 1
        %s2449 = smul.addr %s2448, 2
        %s2450 = scalar_lea.vmem [#allocation23], %s2449
        // Predicated region
        $region165: #{tpu_custom_call.1} parent=107 // pred_check
          %p2451 = pneg %p610
        $region166: #{tpu_custom_call.1} parent=107 // pred_check_branch
          %2453 = sbr.rel (%p2451) target = $region168
        $region167: #{tpu_custom_call.1} parent=107 // pred_region
          %s2455 = ssub.s32 32, 32
          %2456 = vsyncadd %s2447, %s2455
          %s2457 = smul.addr %s57, 32
          %s2458 = scalar_lea.hbm %s22, %s2457
          %s2460 = sshll.u32 %s2450, 4
          %s2461 = int_to_ptr.vmem [resolvable:$true] %s2460
          %2463 = dma.vmem_to_hbm [thread:$0]  %s2461, 32, %s2458, %s2447
        $region168: #{tpu_custom_call.1} parent=107 // pred_fallthru
          _
      $region108: #{tpu_custom_call.1} parent=5 // pred_fallthru
        _
      %p2464 = scmp.le.s32.totalorder 2, %s48
      // Predicated region
      $region169: #{tpu_custom_call.1} parent=5 // pred_check
        %p2465 = pneg %p2464
      $region170: #{tpu_custom_call.1} parent=5 // pred_check_branch
        %2467 = sbr.rel (%p2465) target = $region172
      $region171: #{tpu_custom_call.1} parent=5 // pred_region
        %s2468 = ssub.s32 %s48, 2
        // Predicated region
        $region173: #{tpu_custom_call.1} parent=171 // pred_check
          %p2469 = pneg %p616
        $region174: #{tpu_custom_call.1} parent=171 // pred_check_branch
          %2471 = sbr.rel (%p2469) target = $region176
        $region175: #{tpu_custom_call.1} parent=171 // pred_region
          %s2472 = sand.u32 %s601, 1
          %s2473 = scalar_lea.sflag [#allocation5], %s2472
          %s2474 = sand.u32 %s601, 1
          %s2475 = smul.addr %s2474, 2
          %s2476 = scalar_lea.vmem [#allocation23], %s2475
          %2477 = dma.done %s2473, 32
        $region176: #{tpu_custom_call.1} parent=171 // pred_fallthru
          _
      $region172: #{tpu_custom_call.1} parent=5 // pred_fallthru
        _
    $region6: #{tpu_custom_call.1} parent=1 // loop_footer
      %s52 = sadd.s32 1, %s48
    $region7: #{tpu_custom_call.1} parent=1 // loop_footer_branch
      %47 = sbr.rel target = $region3
    $region8: #{tpu_custom_call.1} parent=1 // loop_exit
      _
    %2478 = vsyncpa [#allocation4], 1
    %s2479 = scalar_lea.sflag [#allocation4], 1
    %2480 = vsyncpa %s2479, 1
    %2481 = vsyncpa [#allocation7], 1
    %2482 = vsyncpa [#allocation10], 1
    %s2483 = scalar_lea.sflag [#allocation10], 1
    %2484 = vsyncpa %s2483, 1
    %2485 = vsyncpa [#allocation13], 1
    %s2486 = scalar_lea.sflag [#allocation13], 1
    %2487 = vsyncpa %s2486, 1
    %2488 = vsyncpa [#allocation16], 1
    %s2489 = scalar_lea.sflag [#allocation16], 1
    %2490 = vsyncpa %s2489, 1
    %2491 = vsyncpa [#allocation19], 1
    %s2492 = scalar_lea.sflag [#allocation19], 1
    %2493 = vsyncpa %s2492, 1
    %2494 = vsyncpa [#allocation22], 1
    %s2495 = scalar_lea.sflag [#allocation22], 1
    %2496 = vsyncpa %s2495, 1
    %2497 = vsyncpa [#allocation5], 1
    %s2498 = scalar_lea.sflag [#allocation5], 1
    %2499 = vsyncpa %s2498, 1

</llo_original>
